<compile_context>
chip_gen: v6e
topology: v6e:2x2x1
jax: 0.10.0
libtpu: 0.0.40
codegen_flags: <defaults>
</compile_context>

<pallas_src>
import jax
import jax.numpy as jnp
from jax.experimental import pallas as pl
from jax.experimental.pallas import tpu as pltpu

LEAKY_SLOPE = 0.01  # nn.LeakyReLU default
BN_EPS = 1e-5       # nn.BatchNorm2d default


def _round_up(x, m):
    return (x + m - 1) // m * m


# ---------------------------------------------------------------------------
# Pallas kernels
# ---------------------------------------------------------------------------
def _make_down_conv_kernel(L, Wh, c_in, c_out, use_mxu):
    """3x3 stride-2 conv + folded-BN bias + LeakyReLU for one batch element.

    x_ref : (1, Sp, 4*c_in)  flattened stride-2 parity planes (phases on lanes)
    w_ref : (9*c_in, c_out)  BN scale already folded in
    b_ref : (1, c_out)
    o_ref : (1, L, c_out)    L = Ho*(Wo+1); the junk (Wo-th) column of every
                             output row is dropped by the wrapper.
    """
    taps = []
    for kh in range(3):
        for kw in range(3):
            plane = (kh % 2) * 2 + (kw % 2)        # parity phase of this tap
            start = (kh // 2) * Wh + (kw // 2)     # flat offset inside phase
            taps.append((kh * 3 + kw, plane, start))

    def kernel(x_ref, w_ref, b_ref, o_ref):
        acc = jnp.zeros((L, c_out), jnp.float32)
        for t, plane, start in taps:
            chunk = x_ref[0, pl.ds(start, L), pl.ds(plane * c_in, c_in)]
            w_t = w_ref[pl.ds(t * c_in, c_in), :]
            if use_mxu:
                acc = acc + jnp.dot(chunk, w_t,
                                    preferred_element_type=jnp.float32)
            else:  # c_in == 1: K=1 matmul is pure MXU waste -> VPU broadcast FMA
                acc = acc + chunk.astype(jnp.float32) * w_t.astype(jnp.float32)
        y = acc + b_ref[...]
        o_ref[0] = jnp.where(y > 0, y, LEAKY_SLOPE * y).astype(o_ref.dtype)

    return kernel


def _make_out_conv_pool_sigmoid_kernel(L, Wp, c_in):
    """Fused Out_Conv (3x3, c_in->1, stride 1) + BN + LeakyReLU
       + 8x8 mask-window mean (== 3x AvgPool2d(2)) + sigmoid, per batch element.

    The single-output-channel conv is a VPU multiply + lane reduction."""
    taps = [(kh * 3 + kw, kh * Wp + kw) for kh in range(3) for kw in range(3)]

    def kernel(x_ref, w_ref, b_ref, mwin_ref, o_ref):
        acc = jnp.zeros((L, 1), jnp.float32)
        for t, start in taps:
            chunk = x_ref[0, pl.ds(start, L), :].astype(jnp.float32)   # (L, C)
            w_t = w_ref[pl.ds(t, 1), :]                                # (1, C)
            acc = acc + jnp.sum(chunk * w_t, axis=-1, keepdims=True)
        y = acc + b_ref[...]
        y = jnp.where(y > 0, y, LEAKY_SLOPE * y)
        m = jnp.mean(mwin_ref[0], axis=-1, keepdims=True)              # (L, 1)
        o_ref[0] = jax.nn.sigmoid(m * y).astype(o_ref.dtype)

    return kernel


# ---------------------------------------------------------------------------
# Layer wrappers (layout plumbing in plain JAX; compute in Pallas)
# ---------------------------------------------------------------------------
def down_conv_bn_lrelu(x_nhwc, p):
    """Dis_Down_Conv: Conv2d(3x3, stride=2, pad=1) + BatchNorm2d + LeakyReLU."""
    N, H, W, c_in = x_nhwc.shape
    c_out = p["w"].shape[0]
    assert H % 2 == 0 and W % 2 == 0, (H, W)
    Ho, Wo = H // 2, W // 2
    Hh, Wh = Ho + 1, Wo + 1            # parity-plane extents = (H+2)/2
    L = Ho * Wh                        # output rows incl. one junk column/row
    use_mxu = c_in >= 8
    cdtype = jnp.bfloat16 if use_mxu else jnp.float32

    # pad=1, split into the 4 stride-2 parity phases with phases on lanes:
    # planes[n, h*Wh + w, (ph*2 + pw)*c_in + c] = xpad[n, 2h+ph, 2w+pw, c]
    xp = jnp.pad(x_nhwc, ((0, 0), (1, 1), (1, 1), (0, 0)))
    planes = (xp.reshape(N, Hh, 2, Wh, 2, c_in)
                .transpose(0, 1, 3, 2, 4, 5)
                .reshape(N, Hh * Wh, 4 * c_in)
                .astype(cdtype))
    S = Hh * Wh
    Sp = _round_up(S + 1, 8)           # room for the furthest shifted tap read
    planes = jnp.pad(planes, ((0, 0), (0, Sp - S), (0, 0)))

    # torch weight [c_out, c_in, kh, kw] -> [(kh,kw,c_in), c_out]; fold BN scale.
    scale = p["gamma"] / jnp.sqrt(p["var"] + BN_EPS)
    wmat = jnp.transpose(p["w"], (2, 3, 1, 0)).reshape(9 * c_in, c_out)
    wmat = (wmat * scale[None, :]).astype(cdtype)
    bias = ((p["conv_b"] - p["mean"]) * scale + p["beta"])
    bias = bias.reshape(1, c_out).astype(jnp.float32)

    kernel = _make_down_conv_kernel(L, Wh, c_in, c_out, use_mxu)
    out = pl.pallas_call(
        kernel,
        out_shape=jax.ShapeDtypeStruct((N, L, c_out), jnp.bfloat16),
        grid_spec=pltpu.PrefetchScalarGridSpec(
            num_scalar_prefetch=0,
            grid=(N,),
            in_specs=[
                pl.BlockSpec((1, Sp, 4 * c_in), lambda n: (n, 0, 0)),
                pl.BlockSpec((9 * c_in, c_out), lambda n: (0, 0)),
                pl.BlockSpec((1, c_out), lambda n: (0, 0)),
            ],
            out_specs=pl.BlockSpec((1, L, c_out), lambda n: (n, 0, 0)),
        ),
        compiler_params=pltpu.CompilerParams(
            dimension_semantics=("parallel",)),
    )(planes, wmat, bias)

    # drop the junk column and return clean NHWC (bf16 feeds the next MXU layer)
    return out.reshape(N, Ho, Wh, c_out)[:, :, :Wo, :]


def out_conv_pool_sigmoid(x_nhwc, mask_nchw, p):
    """sigmoid( AvgPool2d(2)^3(mask) * LeakyReLU(BN(Conv2d(256->1,3x3,p=1)(x))) )."""
    N, H3, W3, c_in = x_nhwc.shape
    Hp, Wp = H3 + 2, W3 + 2
    L = H3 * Wp                              # output rows incl. 2 junk columns

    xp = jnp.pad(x_nhwc, ((0, 0), (1, 1), (1, 1), (0, 0))).astype(jnp.bfloat16)
    S = Hp * Wp
    Sp = _round_up(S + 2, 8)
    xflat = jnp.pad(xp.reshape(N, S, c_in), ((0, 0), (0, Sp - S), (0, 0)))

    scale = p["gamma"] / jnp.sqrt(p["var"] + BN_EPS)           # shape (1,)
    w9 = (jnp.transpose(p["w"][0], (1, 2, 0)).reshape(9, c_in) * scale)
    w9 = w9.astype(jnp.float32)
    bias = ((p["conv_b"] - p["mean"]) * scale + p["beta"])
    bias = bias.reshape(1, 1).astype(jnp.float32)

    # TODO(synk): 3x AvgPool2d(2) is implemented as a single (Hm/H3)x(Wm/W3)
    #   window mean; this equals the three floor-mode pools only when every
    #   stage divides exactly (true for the shapes used here).
    Hm, Wm = mask_nchw.shape[2], mask_nchw.shape[3]
    ph, pw = Hm // H3, Wm // W3
    mwin = (mask_nchw[:, 0]
            .reshape(N, H3, ph, W3, pw)
            .transpose(0, 1, 3, 2, 4)
            .reshape(N, H3, W3, ph * pw))
    mwin = jnp.pad(mwin, ((0, 0), (0, 0), (0, Wp - W3), (0, 0)))
    mwin = mwin.reshape(N, L, ph * pw).astype(jnp.float32)

    kernel = _make_out_conv_pool_sigmoid_kernel(L, Wp, c_in)
    out = pl.pallas_call(
        kernel,
        out_shape=jax.ShapeDtypeStruct((N, L, 1), jnp.float32),
        grid_spec=pltpu.PrefetchScalarGridSpec(
            num_scalar_prefetch=0,
            grid=(N,),
            in_specs=[
                pl.BlockSpec((1, Sp, c_in), lambda n: (n, 0, 0)),
                pl.BlockSpec((9, c_in), lambda n: (0, 0)),
                pl.BlockSpec((1, 1), lambda n: (0, 0)),
                pl.BlockSpec((1, L, ph * pw), lambda n: (n, 0, 0)),
            ],
            out_specs=pl.BlockSpec((1, L, 1), lambda n: (n, 0, 0)),
        ),
        compiler_params=pltpu.CompilerParams(
            dimension_semantics=("parallel",)),
    )(xflat, w9, bias, mwin)

    # The final result is only N*H3*W3 scalars, written once and never re-read
    # by another kernel; layout back to NCHW is free metadata work in XLA.
    out = out.reshape(N, H3, Wp, 1)[:, :, :W3, :]
    return jnp.transpose(out, (0, 3, 1, 2))


# ---------------------------------------------------------------------------
# Parameters (deterministic, synthetic)
# ---------------------------------------------------------------------------
def init_conv_block(key, c_in, c_out):
    std = (2.0 / (c_out * 9)) ** 0.5            # kaiming_normal_, mode='fan_out'
    return dict(
        w=jax.random.normal(key, (c_out, c_in, 3, 3), jnp.float32) * std,
        conv_b=jnp.zeros((c_out,), jnp.float32),
        gamma=jnp.ones((c_out,), jnp.float32),
        beta=jnp.zeros((c_out,), jnp.float32),
        mean=jnp.zeros((c_out,), jnp.float32),
        var=jnp.ones((c_out,), jnp.float32),
    )


def init_params(key):
    k1, k2, k3, k4 = jax.random.split(key, 4)
    return dict(
        down1=init_conv_block(k1, 1, 64),
        down2=init_conv_block(k2, 64, 128),
        down3=init_conv_block(k3, 128, 256),
        out=init_conv_block(k4, 256, 1),
    )


# ---------------------------------------------------------------------------
# Full forward
# ---------------------------------------------------------------------------
def cnn_d_forward(image_nchw, mask_nchw, params):
    x = jnp.transpose(image_nchw, (0, 2, 3, 1))        # NCHW -> NHWC
    x = down_conv_bn_lrelu(x, params["down1"])         # Dis_Down_Conv 1
    x = down_conv_bn_lrelu(x, params["down2"])         # Dis_Down_Conv 2
    x = down_conv_bn_lrelu(x, params["down3"])         # Dis_Down_Conv 3
    # Out_Conv + BN + LeakyReLU + AvgPool^3(mask) + sigmoid, fused:
    return out_conv_pool_sigmoid(x, mask_nchw, params["out"])


if __name__ == "__main__":
    key = jax.random.PRNGKey(0)
    k_img, k_mask, k_params = jax.random.split(key, 3)

    image = jax.random.normal(k_img, (2, 1, 16, 16), jnp.float32)
    mask = jax.random.uniform(k_mask, (2, 1, 16, 16), jnp.float32)
    params = init_params(k_params)

    out = jax.jit(cnn_d_forward)(image, mask, params)
    out = jax.block_until_ready(out)

    assert out.shape == (2, 1, 2, 2), out.shape
    assert bool(jnp.all(jnp.isfinite(out)))
    print("KERNEL_OK")
</pallas_src>

<mosaic_0001>
module attributes {stable_mosaic.version = 11 : i64} {
  func.func @kernel(%arg0: i32, %arg1: memref<1x88x4xf32, #tpu.memory_space<vmem>>, %arg2: memref<9x64xf32, #tpu.memory_space<vmem>>, %arg3: memref<1x64xf32, #tpu.memory_space<vmem>>, %arg4: memref<1x72x64xbf16, #tpu.memory_space<vmem>>) attributes {dimension_semantics = [#tpu.dimension_semantics<parallel>], iteration_bounds = array<i64: 2>, scalar_prefetch = 0 : i64, scratch_operands = 0 : i64, tpu.core_type = #tpu.core_type<tc>, window_params = [{transform_indices = @transform_0, window_bounds = array<i64: 1, 88, 4>}, {pipeline_mode = #tpu.pipeline_mode<synchronous>, transform_indices = @transform_1, window_bounds = array<i64: 9, 64>}, {pipeline_mode = #tpu.pipeline_mode<synchronous>, transform_indices = @transform_2, window_bounds = array<i64: 1, 64>}, {transform_indices = @transform_3, window_bounds = array<i64: 1, 72, 64>}]} {
    %cst = arith.constant 0.000000e+00 : f32
    %0 = vector.broadcast %cst : f32 to vector<72x64xf32>
    %c0 = arith.constant 0 : index
    %c0_0 = arith.constant 0 : index
    %c0_1 = arith.constant 0 : index
    %1 = vector.load %arg1[%c0, %c0_0, %c0_1] : memref<1x88x4xf32, #tpu.memory_space<vmem>>, vector<1x72x1xf32>
    %2 = vector.shape_cast %1 : vector<1x72x1xf32> to vector<72x1xf32>
    %c0_2 = arith.constant 0 : index
    %c0_3 = arith.constant 0 : index
    %3 = vector.load %arg2[%c0_2, %c0_3] : memref<9x64xf32, #tpu.memory_space<vmem>>, vector<1x64xf32>
    %4 = vector.broadcast %2 : vector<72x1xf32> to vector<72x64xf32>
    %5 = vector.broadcast %3 : vector<1x64xf32> to vector<72x64xf32>
    %6 = arith.mulf %4, %5 : vector<72x64xf32>
    %7 = arith.addf %0, %6 : vector<72x64xf32>
    %c0_4 = arith.constant 0 : index
    %c0_5 = arith.constant 0 : index
    %c1 = arith.constant 1 : index
    %8 = vector.load %arg1[%c0_4, %c0_5, %c1] : memref<1x88x4xf32, #tpu.memory_space<vmem>>, vector<1x72x1xf32>
    %9 = vector.shape_cast %8 : vector<1x72x1xf32> to vector<72x1xf32>
    %c1_6 = arith.constant 1 : index
    %c0_7 = arith.constant 0 : index
    %10 = vector.load %arg2[%c1_6, %c0_7] : memref<9x64xf32, #tpu.memory_space<vmem>>, vector<1x64xf32>
    %11 = vector.broadcast %9 : vector<72x1xf32> to vector<72x64xf32>
    %12 = vector.broadcast %10 : vector<1x64xf32> to vector<72x64xf32>
    %13 = arith.mulf %11, %12 : vector<72x64xf32>
    %14 = arith.addf %7, %13 : vector<72x64xf32>
    %c0_8 = arith.constant 0 : index
    %c1_9 = arith.constant 1 : index
    %c0_10 = arith.constant 0 : index
    %15 = vector.load %arg1[%c0_8, %c1_9, %c0_10] : memref<1x88x4xf32, #tpu.memory_space<vmem>>, vector<1x72x1xf32>
    %16 = vector.shape_cast %15 : vector<1x72x1xf32> to vector<72x1xf32>
    %c2 = arith.constant 2 : index
    %c0_11 = arith.constant 0 : index
    %17 = vector.load %arg2[%c2, %c0_11] : memref<9x64xf32, #tpu.memory_space<vmem>>, vector<1x64xf32>
    %18 = vector.broadcast %16 : vector<72x1xf32> to vector<72x64xf32>
    %19 = vector.broadcast %17 : vector<1x64xf32> to vector<72x64xf32>
    %20 = arith.mulf %18, %19 : vector<72x64xf32>
    %21 = arith.addf %14, %20 : vector<72x64xf32>
    %c0_12 = arith.constant 0 : index
    %c0_13 = arith.constant 0 : index
    %c2_14 = arith.constant 2 : index
    %22 = vector.load %arg1[%c0_12, %c0_13, %c2_14] : memref<1x88x4xf32, #tpu.memory_space<vmem>>, vector<1x72x1xf32>
    %23 = vector.shape_cast %22 : vector<1x72x1xf32> to vector<72x1xf32>
    %c3 = arith.constant 3 : index
    %c0_15 = arith.constant 0 : index
    %24 = vector.load %arg2[%c3, %c0_15] : memref<9x64xf32, #tpu.memory_space<vmem>>, vector<1x64xf32>
    %25 = vector.broadcast %23 : vector<72x1xf32> to vector<72x64xf32>
    %26 = vector.broadcast %24 : vector<1x64xf32> to vector<72x64xf32>
    %27 = arith.mulf %25, %26 : vector<72x64xf32>
    %28 = arith.addf %21, %27 : vector<72x64xf32>
    %c0_16 = arith.constant 0 : index
    %c0_17 = arith.constant 0 : index
    %c3_18 = arith.constant 3 : index
    %29 = vector.load %arg1[%c0_16, %c0_17, %c3_18] : memref<1x88x4xf32, #tpu.memory_space<vmem>>, vector<1x72x1xf32>
    %30 = vector.shape_cast %29 : vector<1x72x1xf32> to vector<72x1xf32>
    %c4 = arith.constant 4 : index
    %c0_19 = arith.constant 0 : index
    %31 = vector.load %arg2[%c4, %c0_19] : memref<9x64xf32, #tpu.memory_space<vmem>>, vector<1x64xf32>
    %32 = vector.broadcast %30 : vector<72x1xf32> to vector<72x64xf32>
    %33 = vector.broadcast %31 : vector<1x64xf32> to vector<72x64xf32>
    %34 = arith.mulf %32, %33 : vector<72x64xf32>
    %35 = arith.addf %28, %34 : vector<72x64xf32>
    %c0_20 = arith.constant 0 : index
    %c1_21 = arith.constant 1 : index
    %c2_22 = arith.constant 2 : index
    %36 = vector.load %arg1[%c0_20, %c1_21, %c2_22] : memref<1x88x4xf32, #tpu.memory_space<vmem>>, vector<1x72x1xf32>
    %37 = vector.shape_cast %36 : vector<1x72x1xf32> to vector<72x1xf32>
    %c5 = arith.constant 5 : index
    %c0_23 = arith.constant 0 : index
    %38 = vector.load %arg2[%c5, %c0_23] : memref<9x64xf32, #tpu.memory_space<vmem>>, vector<1x64xf32>
    %39 = vector.broadcast %37 : vector<72x1xf32> to vector<72x64xf32>
    %40 = vector.broadcast %38 : vector<1x64xf32> to vector<72x64xf32>
    %41 = arith.mulf %39, %40 : vector<72x64xf32>
    %42 = arith.addf %35, %41 : vector<72x64xf32>
    %c0_24 = arith.constant 0 : index
    %c9 = arith.constant 9 : index
    %c0_25 = arith.constant 0 : index
    %43 = vector.load %arg1[%c0_24, %c9, %c0_25] : memref<1x88x4xf32, #tpu.memory_space<vmem>>, vector<1x72x1xf32>
    %44 = vector.shape_cast %43 : vector<1x72x1xf32> to vector<72x1xf32>
    %c6 = arith.constant 6 : index
    %c0_26 = arith.constant 0 : index
    %45 = vector.load %arg2[%c6, %c0_26] : memref<9x64xf32, #tpu.memory_space<vmem>>, vector<1x64xf32>
    %46 = vector.broadcast %44 : vector<72x1xf32> to vector<72x64xf32>
    %47 = vector.broadcast %45 : vector<1x64xf32> to vector<72x64xf32>
    %48 = arith.mulf %46, %47 : vector<72x64xf32>
    %49 = arith.addf %42, %48 : vector<72x64xf32>
    %c0_27 = arith.constant 0 : index
    %c9_28 = arith.constant 9 : index
    %c1_29 = arith.constant 1 : index
    %50 = vector.load %arg1[%c0_27, %c9_28, %c1_29] : memref<1x88x4xf32, #tpu.memory_space<vmem>>, vector<1x72x1xf32>
    %51 = vector.shape_cast %50 : vector<1x72x1xf32> to vector<72x1xf32>
    %c7 = arith.constant 7 : index
    %c0_30 = arith.constant 0 : index
    %52 = vector.load %arg2[%c7, %c0_30] : memref<9x64xf32, #tpu.memory_space<vmem>>, vector<1x64xf32>
    %53 = vector.broadcast %51 : vector<72x1xf32> to vector<72x64xf32>
    %54 = vector.broadcast %52 : vector<1x64xf32> to vector<72x64xf32>
    %55 = arith.mulf %53, %54 : vector<72x64xf32>
    %56 = arith.addf %49, %55 : vector<72x64xf32>
    %c0_31 = arith.constant 0 : index
    %c10 = arith.constant 10 : index
    %c0_32 = arith.constant 0 : index
    %57 = vector.load %arg1[%c0_31, %c10, %c0_32] : memref<1x88x4xf32, #tpu.memory_space<vmem>>, vector<1x72x1xf32>
    %58 = vector.shape_cast %57 : vector<1x72x1xf32> to vector<72x1xf32>
    %c8 = arith.constant 8 : index
    %c0_33 = arith.constant 0 : index
    %59 = vector.load %arg2[%c8, %c0_33] : memref<9x64xf32, #tpu.memory_space<vmem>>, vector<1x64xf32>
    %60 = vector.broadcast %58 : vector<72x1xf32> to vector<72x64xf32>
    %61 = vector.broadcast %59 : vector<1x64xf32> to vector<72x64xf32>
    %62 = arith.mulf %60, %61 : vector<72x64xf32>
    %63 = arith.addf %56, %62 : vector<72x64xf32>
    %c0_34 = arith.constant 0 : index
    %c0_35 = arith.constant 0 : index
    %64 = vector.load %arg3[%c0_34, %c0_35] : memref<1x64xf32, #tpu.memory_space<vmem>>, vector<1x64xf32>
    %65 = vector.broadcast %64 : vector<1x64xf32> to vector<72x64xf32>
    %66 = arith.addf %63, %65 : vector<72x64xf32>
    %cst_36 = arith.constant 0.000000e+00 : f32
    %67 = vector.broadcast %cst_36 : f32 to vector<72x64xf32>
    %68 = arith.cmpf ogt, %66, %67 : vector<72x64xf32>
    %cst_37 = arith.constant 0.00999999977 : f32
    %69 = vector.broadcast %cst_37 : f32 to vector<72x64xf32>
    %70 = arith.mulf %69, %66 : vector<72x64xf32>
    %71 = arith.select %68, %66, %70 : vector<72x64xi1>, vector<72x64xf32>
    %72 = arith.truncf %71 : vector<72x64xf32> to vector<72x64xbf16>
    %c0_38 = arith.constant 0 : index
    %c0_39 = arith.constant 0 : index
    %c0_40 = arith.constant 0 : index
    %73 = vector.load %arg4[%c0_38, %c0_39, %c0_40] : memref<1x72x64xbf16, #tpu.memory_space<vmem>>, vector<1x72x64xbf16>
    %74 = vector.shape_cast %73 : vector<1x72x64xbf16> to vector<72x64xbf16>
    %75 = vector.shape_cast %72 : vector<72x64xbf16> to vector<1x72x64xbf16>
    tpu.vector_store %arg4[%c0_38, %c0_39, %c0_40], %75 {strides = array<i32>} : memref<1x72x64xbf16, #tpu.memory_space<vmem>>, vector<1x72x64xbf16>,
    return
  }
  func.func @transform_0(%arg0: i32) -> (i32, i32, i32) {
    %c0_i32 = arith.constant 0 : i32
    %c0_i32_0 = arith.constant 0 : i32
    %c0_i32_1 = arith.constant 0 : i32
    return %arg0, %c0_i32, %c0_i32_0 : i32, i32, i32
  }
  func.func @transform_1(%arg0: i32) -> (i32, i32) {
    %c0_i32 = arith.constant 0 : i32
    %c0_i32_0 = arith.constant 0 : i32
    %c0_i32_1 = arith.constant 0 : i32
    return %c0_i32, %c0_i32_0 : i32, i32
  }
  func.func @transform_2(%arg0: i32) -> (i32, i32) {
    %c0_i32 = arith.constant 0 : i32
    %c0_i32_0 = arith.constant 0 : i32
    %c0_i32_1 = arith.constant 0 : i32
    return %c0_i32, %c0_i32_0 : i32, i32
  }
  func.func @transform_3(%arg0: i32) -> (i32, i32, i32) {
    %c0_i32 = arith.constant 0 : i32
    %c0_i32_0 = arith.constant 0 : i32
    %c0_i32_1 = arith.constant 0 : i32
    return %arg0, %c0_i32, %c0_i32_0 : i32, i32, i32
  }
}

module attributes {stable_mosaic.version = 11 : i64} {
  func.func @kernel(%arg0: i32, %arg1: memref<1x32x256xbf16, #tpu.memory_space<vmem>>, %arg2: memref<576x128xbf16, #tpu.memory_space<vmem>>, %arg3: memref<1x128xf32, #tpu.memory_space<vmem>>, %arg4: memref<1x20x128xbf16, #tpu.memory_space<vmem>>) attributes {dimension_semantics = [#tpu.dimension_semantics<parallel>], iteration_bounds = array<i64: 2>, scalar_prefetch = 0 : i64, scratch_operands = 0 : i64, tpu.core_type = #tpu.core_type<tc>, window_params = [{transform_indices = @transform_0, window_bounds = array<i64: 1, 32, 256>}, {pipeline_mode = #tpu.pipeline_mode<synchronous>, transform_indices = @transform_1, window_bounds = array<i64: 576, 128>}, {pipeline_mode = #tpu.pipeline_mode<synchronous>, transform_indices = @transform_2, window_bounds = array<i64: 1, 128>}, {transform_indices = @transform_3, window_bounds = array<i64: 1, 20, 128>}]} {
    %cst = arith.constant 0.000000e+00 : f32
    %0 = vector.broadcast %cst : f32 to vector<20x128xf32>
    %c0 = arith.constant 0 : index
    %c0_0 = arith.constant 0 : index
    %c0_1 = arith.constant 0 : index
    %1 = vector.load %arg1[%c0, %c0_0, %c0_1] : memref<1x32x256xbf16, #tpu.memory_space<vmem>>, vector<1x20x64xbf16>
    %2 = vector.shape_cast %1 : vector<1x20x64xbf16> to vector<20x64xbf16>
    %c0_2 = arith.constant 0 : index
    %c0_3 = arith.constant 0 : index
    %3 = vector.load %arg2[%c0_2, %c0_3] : memref<576x128xbf16, #tpu.memory_space<vmem>>, vector<64x128xbf16>
    %cst_4 = arith.constant dense<0.000000e+00> : vector<20x128xf32>
    %4 = tpu.matmul %2, %3, %cst_4 {dimension_numbers = #tpu.dot_dimension_numbers<[1], [0], [0], [1], [0, 0, 1, 1], [], []>} : vector<20x64xbf16>, vector<64x128xbf16>, vector<20x128xf32> -> vector<20x128xf32>
    %5 = arith.addf %0, %4 : vector<20x128xf32>
    %c0_5 = arith.constant 0 : index
    %c0_6 = arith.constant 0 : index
    %c64 = arith.constant 64 : index
    %6 = vector.load %arg1[%c0_5, %c0_6, %c64] : memref<1x32x256xbf16, #tpu.memory_space<vmem>>, vector<1x20x64xbf16>
    %7 = vector.shape_cast %6 : vector<1x20x64xbf16> to vector<20x64xbf16>
    %c64_7 = arith.constant 64 : index
    %c0_8 = arith.constant 0 : index
    %8 = vector.load %arg2[%c64_7, %c0_8] : memref<576x128xbf16, #tpu.memory_space<vmem>>, vector<64x128xbf16>
    %cst_9 = arith.constant dense<0.000000e+00> : vector<20x128xf32>
    %9 = tpu.matmul %7, %8, %cst_9 {dimension_numbers = #tpu.dot_dimension_numbers<[1], [0], [0], [1], [0, 0, 1, 1], [], []>} : vector<20x64xbf16>, vector<64x128xbf16>, vector<20x128xf32> -> vector<20x128xf32>
    %10 = arith.addf %5, %9 : vector<20x128xf32>
    %c0_10 = arith.constant 0 : index
    %c1 = arith.constant 1 : index
    %c0_11 = arith.constant 0 : index
    %11 = vector.load %arg1[%c0_10, %c1, %c0_11] : memref<1x32x256xbf16, #tpu.memory_space<vmem>>, vector<1x20x64xbf16>
    %12 = vector.shape_cast %11 : vector<1x20x64xbf16> to vector<20x64xbf16>
    %c128 = arith.constant 128 : index
    %c0_12 = arith.constant 0 : index
    %13 = vector.load %arg2[%c128, %c0_12] : memref<576x128xbf16, #tpu.memory_space<vmem>>, vector<64x128xbf16>
    %cst_13 = arith.constant dense<0.000000e+00> : vector<20x128xf32>
    %14 = tpu.matmul %12, %13, %cst_13 {dimension_numbers = #tpu.dot_dimension_numbers<[1], [0], [0], [1], [0, 0, 1, 1], [], []>} : vector<20x64xbf16>, vector<64x128xbf16>, vector<20x128xf32> -> vector<20x128xf32>
    %15 = arith.addf %10, %14 : vector<20x128xf32>
    %c0_14 = arith.constant 0 : index
    %c0_15 = arith.constant 0 : index
    %c128_16 = arith.constant 128 : index
    %16 = vector.load %arg1[%c0_14, %c0_15, %c128_16] : memref<1x32x256xbf16, #tpu.memory_space<vmem>>, vector<1x20x64xbf16>
    %17 = vector.shape_cast %16 : vector<1x20x64xbf16> to vector<20x64xbf16>
    %c192 = arith.constant 192 : index
    %c0_17 = arith.constant 0 : index
    %18 = vector.load %arg2[%c192, %c0_17] : memref<576x128xbf16, #tpu.memory_space<vmem>>, vector<64x128xbf16>
    %cst_18 = arith.constant dense<0.000000e+00> : vector<20x128xf32>
    %19 = tpu.matmul %17, %18, %cst_18 {dimension_numbers = #tpu.dot_dimension_numbers<[1], [0], [0], [1], [0, 0, 1, 1], [], []>} : vector<20x64xbf16>, vector<64x128xbf16>, vector<20x128xf32> -> vector<20x128xf32>
    %20 = arith.addf %15, %19 : vector<20x128xf32>
    %c0_19 = arith.constant 0 : index
    %c0_20 = arith.constant 0 : index
    %c192_21 = arith.constant 192 : index
    %21 = vector.load %arg1[%c0_19, %c0_20, %c192_21] : memref<1x32x256xbf16, #tpu.memory_space<vmem>>, vector<1x20x64xbf16>
    %22 = vector.shape_cast %21 : vector<1x20x64xbf16> to vector<20x64xbf16>
    %c256 = arith.constant 256 : index
    %c0_22 = arith.constant 0 : index
    %23 = vector.load %arg2[%c256, %c0_22] : memref<576x128xbf16, #tpu.memory_space<vmem>>, vector<64x128xbf16>
    %cst_23 = arith.constant dense<0.000000e+00> : vector<20x128xf32>
    %24 = tpu.matmul %22, %23, %cst_23 {dimension_numbers = #tpu.dot_dimension_numbers<[1], [0], [0], [1], [0, 0, 1, 1], [], []>} : vector<20x64xbf16>, vector<64x128xbf16>, vector<20x128xf32> -> vector<20x128xf32>
    %25 = arith.addf %20, %24 : vector<20x128xf32>
    %c0_24 = arith.constant 0 : index
    %c1_25 = arith.constant 1 : index
    %c128_26 = arith.constant 128 : index
    %26 = vector.load %arg1[%c0_24, %c1_25, %c128_26] : memref<1x32x256xbf16, #tpu.memory_space<vmem>>, vector<1x20x64xbf16>
    %27 = vector.shape_cast %26 : vector<1x20x64xbf16> to vector<20x64xbf16>
    %c320 = arith.constant 320 : index
    %c0_27 = arith.constant 0 : index
    %28 = vector.load %arg2[%c320, %c0_27] : memref<576x128xbf16, #tpu.memory_space<vmem>>, vector<64x128xbf16>
    %cst_28 = arith.constant dense<0.000000e+00> : vector<20x128xf32>
    %29 = tpu.matmul %27, %28, %cst_28 {dimension_numbers = #tpu.dot_dimension_numbers<[1], [0], [0], [1], [0, 0, 1, 1], [], []>} : vector<20x64xbf16>, vector<64x128xbf16>, vector<20x128xf32> -> vector<20x128xf32>
    %30 = arith.addf %25, %29 : vector<20x128xf32>
    %c0_29 = arith.constant 0 : index
    %c5 = arith.constant 5 : index
    %c0_30 = arith.constant 0 : index
    %31 = vector.load %arg1[%c0_29, %c5, %c0_30] : memref<1x32x256xbf16, #tpu.memory_space<vmem>>, vector<1x20x64xbf16>
    %32 = vector.shape_cast %31 : vector<1x20x64xbf16> to vector<20x64xbf16>
    %c384 = arith.constant 384 : index
    %c0_31 = arith.constant 0 : index
    %33 = vector.load %arg2[%c384, %c0_31] : memref<576x128xbf16, #tpu.memory_space<vmem>>, vector<64x128xbf16>
    %cst_32 = arith.constant dense<0.000000e+00> : vector<20x128xf32>
    %34 = tpu.matmul %32, %33, %cst_32 {dimension_numbers = #tpu.dot_dimension_numbers<[1], [0], [0], [1], [0, 0, 1, 1], [], []>} : vector<20x64xbf16>, vector<64x128xbf16>, vector<20x128xf32> -> vector<20x128xf32>
    %35 = arith.addf %30, %34 : vector<20x128xf32>
    %c0_33 = arith.constant 0 : index
    %c5_34 = arith.constant 5 : index
    %c64_35 = arith.constant 64 : index
    %36 = vector.load %arg1[%c0_33, %c5_34, %c64_35] : memref<1x32x256xbf16, #tpu.memory_space<vmem>>, vector<1x20x64xbf16>
    %37 = vector.shape_cast %36 : vector<1x20x64xbf16> to vector<20x64xbf16>
    %c448 = arith.constant 448 : index
    %c0_36 = arith.constant 0 : index
    %38 = vector.load %arg2[%c448, %c0_36] : memref<576x128xbf16, #tpu.memory_space<vmem>>, vector<64x128xbf16>
    %cst_37 = arith.constant dense<0.000000e+00> : vector<20x128xf32>
    %39 = tpu.matmul %37, %38, %cst_37 {dimension_numbers = #tpu.dot_dimension_numbers<[1], [0], [0], [1], [0, 0, 1, 1], [], []>} : vector<20x64xbf16>, vector<64x128xbf16>, vector<20x128xf32> -> vector<20x128xf32>
    %40 = arith.addf %35, %39 : vector<20x128xf32>
    %c0_38 = arith.constant 0 : index
    %c6 = arith.constant 6 : index
    %c0_39 = arith.constant 0 : index
    %41 = vector.load %arg1[%c0_38, %c6, %c0_39] : memref<1x32x256xbf16, #tpu.memory_space<vmem>>, vector<1x20x64xbf16>
    %42 = vector.shape_cast %41 : vector<1x20x64xbf16> to vector<20x64xbf16>
    %c512 = arith.constant 512 : index
    %c0_40 = arith.constant 0 : index
    %43 = vector.load %arg2[%c512, %c0_40] : memref<576x128xbf16, #tpu.memory_space<vmem>>, vector<64x128xbf16>
    %cst_41 = arith.constant dense<0.000000e+00> : vector<20x128xf32>
    %44 = tpu.matmul %42, %43, %cst_41 {dimension_numbers = #tpu.dot_dimension_numbers<[1], [0], [0], [1], [0, 0, 1, 1], [], []>} : vector<20x64xbf16>, vector<64x128xbf16>, vector<20x128xf32> -> vector<20x128xf32>
    %45 = arith.addf %40, %44 : vector<20x128xf32>
    %c0_42 = arith.constant 0 : index
    %c0_43 = arith.constant 0 : index
    %46 = vector.load %arg3[%c0_42, %c0_43] : memref<1x128xf32, #tpu.memory_space<vmem>>, vector<1x128xf32>
    %47 = vector.broadcast %46 : vector<1x128xf32> to vector<20x128xf32>
    %48 = arith.addf %45, %47 : vector<20x128xf32>
    %cst_44 = arith.constant 0.000000e+00 : f32
    %49 = vector.broadcast %cst_44 : f32 to vector<20x128xf32>
    %50 = arith.cmpf ogt, %48, %49 : vector<20x128xf32>
    %cst_45 = arith.constant 0.00999999977 : f32
    %51 = vector.broadcast %cst_45 : f32 to vector<20x128xf32>
    %52 = arith.mulf %51, %48 : vector<20x128xf32>
    %53 = arith.select %50, %48, %52 : vector<20x128xi1>, vector<20x128xf32>
    %54 = arith.truncf %53 : vector<20x128xf32> to vector<20x128xbf16>
    %c0_46 = arith.constant 0 : index
    %c0_47 = arith.constant 0 : index
    %c0_48 = arith.constant 0 : index
    %55 = vector.load %arg4[%c0_46, %c0_47, %c0_48] : memref<1x20x128xbf16, #tpu.memory_space<vmem>>, vector<1x20x128xbf16>
    %56 = vector.shape_cast %55 : vector<1x20x128xbf16> to vector<20x128xbf16>
    %57 = vector.shape_cast %54 : vector<20x128xbf16> to vector<1x20x128xbf16>
    tpu.vector_store %arg4[%c0_46, %c0_47, %c0_48], %57 {strides = array<i32>} : memref<1x20x128xbf16, #tpu.memory_space<vmem>>, vector<1x20x128xbf16>,
    return
  }
  func.func @transform_0(%arg0: i32) -> (i32, i32, i32) {
    %c0_i32 = arith.constant 0 : i32
    %c0_i32_0 = arith.constant 0 : i32
    %c0_i32_1 = arith.constant 0 : i32
    return %arg0, %c0_i32, %c0_i32_0 : i32, i32, i32
  }
  func.func @transform_1(%arg0: i32) -> (i32, i32) {
    %c0_i32 = arith.constant 0 : i32
    %c0_i32_0 = arith.constant 0 : i32
    %c0_i32_1 = arith.constant 0 : i32
    return %c0_i32, %c0_i32_0 : i32, i32
  }
  func.func @transform_2(%arg0: i32) -> (i32, i32) {
    %c0_i32 = arith.constant 0 : i32
    %c0_i32_0 = arith.constant 0 : i32
    %c0_i32_1 = arith.constant 0 : i32
    return %c0_i32, %c0_i32_0 : i32, i32
  }
  func.func @transform_3(%arg0: i32) -> (i32, i32, i32) {
    %c0_i32 = arith.constant 0 : i32
    %c0_i32_0 = arith.constant 0 : i32
    %c0_i32_1 = arith.constant 0 : i32
    return %arg0, %c0_i32, %c0_i32_0 : i32, i32, i32
  }
}

module attributes {stable_mosaic.version = 11 : i64} {
  func.func @kernel(%arg0: i32, %arg1: memref<1x16x512xbf16, #tpu.memory_space<vmem>>, %arg2: memref<1152x256xbf16, #tpu.memory_space<vmem>>, %arg3: memref<1x256xf32, #tpu.memory_space<vmem>>, %arg4: memref<1x6x256xbf16, #tpu.memory_space<vmem>>) attributes {dimension_semantics = [#tpu.dimension_semantics<parallel>], iteration_bounds = array<i64: 2>, scalar_prefetch = 0 : i64, scratch_operands = 0 : i64, tpu.core_type = #tpu.core_type<tc>, window_params = [{transform_indices = @transform_0, window_bounds = array<i64: 1, 16, 512>}, {pipeline_mode = #tpu.pipeline_mode<synchronous>, transform_indices = @transform_1, window_bounds = array<i64: 1152, 256>}, {pipeline_mode = #tpu.pipeline_mode<synchronous>, transform_indices = @transform_2, window_bounds = array<i64: 1, 256>}, {transform_indices = @transform_3, window_bounds = array<i64: 1, 6, 256>}]} {
    %cst = arith.constant 0.000000e+00 : f32
    %0 = vector.broadcast %cst : f32 to vector<6x256xf32>
    %c0 = arith.constant 0 : index
    %c0_0 = arith.constant 0 : index
    %c0_1 = arith.constant 0 : index
    %1 = vector.load %arg1[%c0, %c0_0, %c0_1] : memref<1x16x512xbf16, #tpu.memory_space<vmem>>, vector<1x6x128xbf16>
    %2 = vector.shape_cast %1 : vector<1x6x128xbf16> to vector<6x128xbf16>
    %c0_2 = arith.constant 0 : index
    %c0_3 = arith.constant 0 : index
    %3 = vector.load %arg2[%c0_2, %c0_3] : memref<1152x256xbf16, #tpu.memory_space<vmem>>, vector<128x256xbf16>
    %cst_4 = arith.constant dense<0.000000e+00> : vector<6x256xf32>
    %4 = tpu.matmul %2, %3, %cst_4 {dimension_numbers = #tpu.dot_dimension_numbers<[1], [0], [0], [1], [0, 0, 1, 1], [], []>} : vector<6x128xbf16>, vector<128x256xbf16>, vector<6x256xf32> -> vector<6x256xf32>
    %5 = arith.addf %0, %4 : vector<6x256xf32>
    %c0_5 = arith.constant 0 : index
    %c0_6 = arith.constant 0 : index
    %c128 = arith.constant 128 : index
    %6 = vector.load %arg1[%c0_5, %c0_6, %c128] : memref<1x16x512xbf16, #tpu.memory_space<vmem>>, vector<1x6x128xbf16>
    %7 = vector.shape_cast %6 : vector<1x6x128xbf16> to vector<6x128xbf16>
    %c128_7 = arith.constant 128 : index
    %c0_8 = arith.constant 0 : index
    %8 = vector.load %arg2[%c128_7, %c0_8] : memref<1152x256xbf16, #tpu.memory_space<vmem>>, vector<128x256xbf16>
    %cst_9 = arith.constant dense<0.000000e+00> : vector<6x256xf32>
    %9 = tpu.matmul %7, %8, %cst_9 {dimension_numbers = #tpu.dot_dimension_numbers<[1], [0], [0], [1], [0, 0, 1, 1], [], []>} : vector<6x128xbf16>, vector<128x256xbf16>, vector<6x256xf32> -> vector<6x256xf32>
    %10 = arith.addf %5, %9 : vector<6x256xf32>
    %c0_10 = arith.constant 0 : index
    %c1 = arith.constant 1 : index
    %c0_11 = arith.constant 0 : index
    %11 = vector.load %arg1[%c0_10, %c1, %c0_11] : memref<1x16x512xbf16, #tpu.memory_space<vmem>>, vector<1x6x128xbf16>
    %12 = vector.shape_cast %11 : vector<1x6x128xbf16> to vector<6x128xbf16>
    %c256 = arith.constant 256 : index
    %c0_12 = arith.constant 0 : index
    %13 = vector.load %arg2[%c256, %c0_12] : memref<1152x256xbf16, #tpu.memory_space<vmem>>, vector<128x256xbf16>
    %cst_13 = arith.constant dense<0.000000e+00> : vector<6x256xf32>
    %14 = tpu.matmul %12, %13, %cst_13 {dimension_numbers = #tpu.dot_dimension_numbers<[1], [0], [0], [1], [0, 0, 1, 1], [], []>} : vector<6x128xbf16>, vector<128x256xbf16>, vector<6x256xf32> -> vector<6x256xf32>
    %15 = arith.addf %10, %14 : vector<6x256xf32>
    %c0_14 = arith.constant 0 : index
    %c0_15 = arith.constant 0 : index
    %c256_16 = arith.constant 256 : index
    %16 = vector.load %arg1[%c0_14, %c0_15, %c256_16] : memref<1x16x512xbf16, #tpu.memory_space<vmem>>, vector<1x6x128xbf16>
    %17 = vector.shape_cast %16 : vector<1x6x128xbf16> to vector<6x128xbf16>
    %c384 = arith.constant 384 : index
    %c0_17 = arith.constant 0 : index
    %18 = vector.load %arg2[%c384, %c0_17] : memref<1152x256xbf16, #tpu.memory_space<vmem>>, vector<128x256xbf16>
    %cst_18 = arith.constant dense<0.000000e+00> : vector<6x256xf32>
    %19 = tpu.matmul %17, %18, %cst_18 {dimension_numbers = #tpu.dot_dimension_numbers<[1], [0], [0], [1], [0, 0, 1, 1], [], []>} : vector<6x128xbf16>, vector<128x256xbf16>, vector<6x256xf32> -> vector<6x256xf32>
    %20 = arith.addf %15, %19 : vector<6x256xf32>
    %c0_19 = arith.constant 0 : index
    %c0_20 = arith.constant 0 : index
    %c384_21 = arith.constant 384 : index
    %21 = vector.load %arg1[%c0_19, %c0_20, %c384_21] : memref<1x16x512xbf16, #tpu.memory_space<vmem>>, vector<1x6x128xbf16>
    %22 = vector.shape_cast %21 : vector<1x6x128xbf16> to vector<6x128xbf16>
    %c512 = arith.constant 512 : index
    %c0_22 = arith.constant 0 : index
    %23 = vector.load %arg2[%c512, %c0_22] : memref<1152x256xbf16, #tpu.memory_space<vmem>>, vector<128x256xbf16>
    %cst_23 = arith.constant dense<0.000000e+00> : vector<6x256xf32>
    %24 = tpu.matmul %22, %23, %cst_23 {dimension_numbers = #tpu.dot_dimension_numbers<[1], [0], [0], [1], [0, 0, 1, 1], [], []>} : vector<6x128xbf16>, vector<128x256xbf16>, vector<6x256xf32> -> vector<6x256xf32>
    %25 = arith.addf %20, %24 : vector<6x256xf32>
    %c0_24 = arith.constant 0 : index
    %c1_25 = arith.constant 1 : index
    %c256_26 = arith.constant 256 : index
    %26 = vector.load %arg1[%c0_24, %c1_25, %c256_26] : memref<1x16x512xbf16, #tpu.memory_space<vmem>>, vector<1x6x128xbf16>
    %27 = vector.shape_cast %26 : vector<1x6x128xbf16> to vector<6x128xbf16>
    %c640 = arith.constant 640 : index
    %c0_27 = arith.constant 0 : index
    %28 = vector.load %arg2[%c640, %c0_27] : memref<1152x256xbf16, #tpu.memory_space<vmem>>, vector<128x256xbf16>
    %cst_28 = arith.constant dense<0.000000e+00> : vector<6x256xf32>
    %29 = tpu.matmul %27, %28, %cst_28 {dimension_numbers = #tpu.dot_dimension_numbers<[1], [0], [0], [1], [0, 0, 1, 1], [], []>} : vector<6x128xbf16>, vector<128x256xbf16>, vector<6x256xf32> -> vector<6x256xf32>
    %30 = arith.addf %25, %29 : vector<6x256xf32>
    %c0_29 = arith.constant 0 : index
    %c3 = arith.constant 3 : index
    %c0_30 = arith.constant 0 : index
    %31 = vector.load %arg1[%c0_29, %c3, %c0_30] : memref<1x16x512xbf16, #tpu.memory_space<vmem>>, vector<1x6x128xbf16>
    %32 = vector.shape_cast %31 : vector<1x6x128xbf16> to vector<6x128xbf16>
    %c768 = arith.constant 768 : index
    %c0_31 = arith.constant 0 : index
    %33 = vector.load %arg2[%c768, %c0_31] : memref<1152x256xbf16, #tpu.memory_space<vmem>>, vector<128x256xbf16>
    %cst_32 = arith.constant dense<0.000000e+00> : vector<6x256xf32>
    %34 = tpu.matmul %32, %33, %cst_32 {dimension_numbers = #tpu.dot_dimension_numbers<[1], [0], [0], [1], [0, 0, 1, 1], [], []>} : vector<6x128xbf16>, vector<128x256xbf16>, vector<6x256xf32> -> vector<6x256xf32>
    %35 = arith.addf %30, %34 : vector<6x256xf32>
    %c0_33 = arith.constant 0 : index
    %c3_34 = arith.constant 3 : index
    %c128_35 = arith.constant 128 : index
    %36 = vector.load %arg1[%c0_33, %c3_34, %c128_35] : memref<1x16x512xbf16, #tpu.memory_space<vmem>>, vector<1x6x128xbf16>
    %37 = vector.shape_cast %36 : vector<1x6x128xbf16> to vector<6x128xbf16>
    %c896 = arith.constant 896 : index
    %c0_36 = arith.constant 0 : index
    %38 = vector.load %arg2[%c896, %c0_36] : memref<1152x256xbf16, #tpu.memory_space<vmem>>, vector<128x256xbf16>
    %cst_37 = arith.constant dense<0.000000e+00> : vector<6x256xf32>
    %39 = tpu.matmul %37, %38, %cst_37 {dimension_numbers = #tpu.dot_dimension_numbers<[1], [0], [0], [1], [0, 0, 1, 1], [], []>} : vector<6x128xbf16>, vector<128x256xbf16>, vector<6x256xf32> -> vector<6x256xf32>
    %40 = arith.addf %35, %39 : vector<6x256xf32>
    %c0_38 = arith.constant 0 : index
    %c4 = arith.constant 4 : index
    %c0_39 = arith.constant 0 : index
    %41 = vector.load %arg1[%c0_38, %c4, %c0_39] : memref<1x16x512xbf16, #tpu.memory_space<vmem>>, vector<1x6x128xbf16>
    %42 = vector.shape_cast %41 : vector<1x6x128xbf16> to vector<6x128xbf16>
    %c1024 = arith.constant 1024 : index
    %c0_40 = arith.constant 0 : index
    %43 = vector.load %arg2[%c1024, %c0_40] : memref<1152x256xbf16, #tpu.memory_space<vmem>>, vector<128x256xbf16>
    %cst_41 = arith.constant dense<0.000000e+00> : vector<6x256xf32>
    %44 = tpu.matmul %42, %43, %cst_41 {dimension_numbers = #tpu.dot_dimension_numbers<[1], [0], [0], [1], [0, 0, 1, 1], [], []>} : vector<6x128xbf16>, vector<128x256xbf16>, vector<6x256xf32> -> vector<6x256xf32>
    %45 = arith.addf %40, %44 : vector<6x256xf32>
    %c0_42 = arith.constant 0 : index
    %c0_43 = arith.constant 0 : index
    %46 = vector.load %arg3[%c0_42, %c0_43] : memref<1x256xf32, #tpu.memory_space<vmem>>, vector<1x256xf32>
    %47 = vector.broadcast %46 : vector<1x256xf32> to vector<6x256xf32>
    %48 = arith.addf %45, %47 : vector<6x256xf32>
    %cst_44 = arith.constant 0.000000e+00 : f32
    %49 = vector.broadcast %cst_44 : f32 to vector<6x256xf32>
    %50 = arith.cmpf ogt, %48, %49 : vector<6x256xf32>
    %cst_45 = arith.constant 0.00999999977 : f32
    %51 = vector.broadcast %cst_45 : f32 to vector<6x256xf32>
    %52 = arith.mulf %51, %48 : vector<6x256xf32>
    %53 = arith.select %50, %48, %52 : vector<6x256xi1>, vector<6x256xf32>
    %54 = arith.truncf %53 : vector<6x256xf32> to vector<6x256xbf16>
    %c0_46 = arith.constant 0 : index
    %c0_47 = arith.constant 0 : index
    %c0_48 = arith.constant 0 : index
    %55 = vector.load %arg4[%c0_46, %c0_47, %c0_48] : memref<1x6x256xbf16, #tpu.memory_space<vmem>>, vector<1x6x256xbf16>
    %56 = vector.shape_cast %55 : vector<1x6x256xbf16> to vector<6x256xbf16>
    %57 = vector.shape_cast %54 : vector<6x256xbf16> to vector<1x6x256xbf16>
    tpu.vector_store %arg4[%c0_46, %c0_47, %c0_48], %57 {strides = array<i32>} : memref<1x6x256xbf16, #tpu.memory_space<vmem>>, vector<1x6x256xbf16>,
    return
  }
  func.func @transform_0(%arg0: i32) -> (i32, i32, i32) {
    %c0_i32 = arith.constant 0 : i32
    %c0_i32_0 = arith.constant 0 : i32
    %c0_i32_1 = arith.constant 0 : i32
    return %arg0, %c0_i32, %c0_i32_0 : i32, i32, i32
  }
  func.func @transform_1(%arg0: i32) -> (i32, i32) {
    %c0_i32 = arith.constant 0 : i32
    %c0_i32_0 = arith.constant 0 : i32
    %c0_i32_1 = arith.constant 0 : i32
    return %c0_i32, %c0_i32_0 : i32, i32
  }
  func.func @transform_2(%arg0: i32) -> (i32, i32) {
    %c0_i32 = arith.constant 0 : i32
    %c0_i32_0 = arith.constant 0 : i32
    %c0_i32_1 = arith.constant 0 : i32
    return %c0_i32, %c0_i32_0 : i32, i32
  }
  func.func @transform_3(%arg0: i32) -> (i32, i32, i32) {
    %c0_i32 = arith.constant 0 : i32
    %c0_i32_0 = arith.constant 0 : i32
    %c0_i32_1 = arith.constant 0 : i32
    return %arg0, %c0_i32, %c0_i32_0 : i32, i32, i32
  }
}

module attributes {stable_mosaic.version = 11 : i64} {
  func.func @kernel(%arg0: i32, %arg1: memref<1x24x256xbf16, #tpu.memory_space<vmem>>, %arg2: memref<9x256xf32, #tpu.memory_space<vmem>>, %arg3: memref<1x1xf32, #tpu.memory_space<vmem>>, %arg4: memref<1x8x64xf32, #tpu.memory_space<vmem>>, %arg5: memref<1x8x1xf32, #tpu.memory_space<vmem>>) attributes {dimension_semantics = [#tpu.dimension_semantics<parallel>], iteration_bounds = array<i64: 2>, scalar_prefetch = 0 : i64, scratch_operands = 0 : i64, tpu.core_type = #tpu.core_type<tc>, window_params = [{transform_indices = @transform_0, window_bounds = array<i64: 1, 24, 256>}, {pipeline_mode = #tpu.pipeline_mode<synchronous>, transform_indices = @transform_1, window_bounds = array<i64: 9, 256>}, {pipeline_mode = #tpu.pipeline_mode<synchronous>, transform_indices = @transform_2, window_bounds = array<i64: 1, 1>}, {transform_indices = @transform_3, window_bounds = array<i64: 1, 8, 64>}, {transform_indices = @transform_4, window_bounds = array<i64: 1, 8, 1>}]} {
    %cst = arith.constant 0.000000e+00 : f32
    %0 = vector.broadcast %cst : f32 to vector<8x1xf32>
    %c0 = arith.constant 0 : index
    %c0_0 = arith.constant 0 : index
    %c0_1 = arith.constant 0 : index
    %1 = vector.load %arg1[%c0, %c0_0, %c0_1] : memref<1x24x256xbf16, #tpu.memory_space<vmem>>, vector<1x8x256xbf16>
    %2 = vector.shape_cast %1 : vector<1x8x256xbf16> to vector<8x256xbf16>
    %3 = arith.extf %2 : vector<8x256xbf16> to vector<8x256xf32>
    %c0_2 = arith.constant 0 : index
    %c0_3 = arith.constant 0 : index
    %4 = vector.load %arg2[%c0_2, %c0_3] : memref<9x256xf32, #tpu.memory_space<vmem>>, vector<1x256xf32>
    %5 = vector.broadcast %4 : vector<1x256xf32> to vector<8x256xf32>
    %6 = arith.mulf %3, %5 : vector<8x256xf32>
    %cst_4 = arith.constant dense<0.000000e+00> : vector<8xf32>
    %7 = vector.multi_reduction <add>, %6, %cst_4 [1] : vector<8x256xf32> to vector<8xf32>
    %8 = vector.shape_cast %7 : vector<8xf32> to vector<8x1xf32>
    %9 = arith.addf %0, %8 : vector<8x1xf32>
    %c0_5 = arith.constant 0 : index
    %c1 = arith.constant 1 : index
    %c0_6 = arith.constant 0 : index
    %10 = vector.load %arg1[%c0_5, %c1, %c0_6] : memref<1x24x256xbf16, #tpu.memory_space<vmem>>, vector<1x8x256xbf16>
    %11 = vector.shape_cast %10 : vector<1x8x256xbf16> to vector<8x256xbf16>
    %12 = arith.extf %11 : vector<8x256xbf16> to vector<8x256xf32>
    %c1_7 = arith.constant 1 : index
    %c0_8 = arith.constant 0 : index
    %13 = vector.load %arg2[%c1_7, %c0_8] : memref<9x256xf32, #tpu.memory_space<vmem>>, vector<1x256xf32>
    %14 = vector.broadcast %13 : vector<1x256xf32> to vector<8x256xf32>
    %15 = arith.mulf %12, %14 : vector<8x256xf32>
    %cst_9 = arith.constant dense<0.000000e+00> : vector<8xf32>
    %16 = vector.multi_reduction <add>, %15, %cst_9 [1] : vector<8x256xf32> to vector<8xf32>
    %17 = vector.shape_cast %16 : vector<8xf32> to vector<8x1xf32>
    %18 = arith.addf %9, %17 : vector<8x1xf32>
    %c0_10 = arith.constant 0 : index
    %c2 = arith.constant 2 : index
    %c0_11 = arith.constant 0 : index
    %19 = vector.load %arg1[%c0_10, %c2, %c0_11] : memref<1x24x256xbf16, #tpu.memory_space<vmem>>, vector<1x8x256xbf16>
    %20 = vector.shape_cast %19 : vector<1x8x256xbf16> to vector<8x256xbf16>
    %21 = arith.extf %20 : vector<8x256xbf16> to vector<8x256xf32>
    %c2_12 = arith.constant 2 : index
    %c0_13 = arith.constant 0 : index
    %22 = vector.load %arg2[%c2_12, %c0_13] : memref<9x256xf32, #tpu.memory_space<vmem>>, vector<1x256xf32>
    %23 = vector.broadcast %22 : vector<1x256xf32> to vector<8x256xf32>
    %24 = arith.mulf %21, %23 : vector<8x256xf32>
    %cst_14 = arith.constant dense<0.000000e+00> : vector<8xf32>
    %25 = vector.multi_reduction <add>, %24, %cst_14 [1] : vector<8x256xf32> to vector<8xf32>
    %26 = vector.shape_cast %25 : vector<8xf32> to vector<8x1xf32>
    %27 = arith.addf %18, %26 : vector<8x1xf32>
    %c0_15 = arith.constant 0 : index
    %c4 = arith.constant 4 : index
    %c0_16 = arith.constant 0 : index
    %28 = vector.load %arg1[%c0_15, %c4, %c0_16] : memref<1x24x256xbf16, #tpu.memory_space<vmem>>, vector<1x8x256xbf16>
    %29 = vector.shape_cast %28 : vector<1x8x256xbf16> to vector<8x256xbf16>
    %30 = arith.extf %29 : vector<8x256xbf16> to vector<8x256xf32>
    %c3 = arith.constant 3 : index
    %c0_17 = arith.constant 0 : index
    %31 = vector.load %arg2[%c3, %c0_17] : memref<9x256xf32, #tpu.memory_space<vmem>>, vector<1x256xf32>
    %32 = vector.broadcast %31 : vector<1x256xf32> to vector<8x256xf32>
    %33 = arith.mulf %30, %32 : vector<8x256xf32>
    %cst_18 = arith.constant dense<0.000000e+00> : vector<8xf32>
    %34 = vector.multi_reduction <add>, %33, %cst_18 [1] : vector<8x256xf32> to vector<8xf32>
    %35 = vector.shape_cast %34 : vector<8xf32> to vector<8x1xf32>
    %36 = arith.addf %27, %35 : vector<8x1xf32>
    %c0_19 = arith.constant 0 : index
    %c5 = arith.constant 5 : index
    %c0_20 = arith.constant 0 : index
    %37 = vector.load %arg1[%c0_19, %c5, %c0_20] : memref<1x24x256xbf16, #tpu.memory_space<vmem>>, vector<1x8x256xbf16>
    %38 = vector.shape_cast %37 : vector<1x8x256xbf16> to vector<8x256xbf16>
    %39 = arith.extf %38 : vector<8x256xbf16> to vector<8x256xf32>
    %c4_21 = arith.constant 4 : index
    %c0_22 = arith.constant 0 : index
    %40 = vector.load %arg2[%c4_21, %c0_22] : memref<9x256xf32, #tpu.memory_space<vmem>>, vector<1x256xf32>
    %41 = vector.broadcast %40 : vector<1x256xf32> to vector<8x256xf32>
    %42 = arith.mulf %39, %41 : vector<8x256xf32>
    %cst_23 = arith.constant dense<0.000000e+00> : vector<8xf32>
    %43 = vector.multi_reduction <add>, %42, %cst_23 [1] : vector<8x256xf32> to vector<8xf32>
    %44 = vector.shape_cast %43 : vector<8xf32> to vector<8x1xf32>
    %45 = arith.addf %36, %44 : vector<8x1xf32>
    %c0_24 = arith.constant 0 : index
    %c6 = arith.constant 6 : index
    %c0_25 = arith.constant 0 : index
    %46 = vector.load %arg1[%c0_24, %c6, %c0_25] : memref<1x24x256xbf16, #tpu.memory_space<vmem>>, vector<1x8x256xbf16>
    %47 = vector.shape_cast %46 : vector<1x8x256xbf16> to vector<8x256xbf16>
    %48 = arith.extf %47 : vector<8x256xbf16> to vector<8x256xf32>
    %c5_26 = arith.constant 5 : index
    %c0_27 = arith.constant 0 : index
    %49 = vector.load %arg2[%c5_26, %c0_27] : memref<9x256xf32, #tpu.memory_space<vmem>>, vector<1x256xf32>
    %50 = vector.broadcast %49 : vector<1x256xf32> to vector<8x256xf32>
    %51 = arith.mulf %48, %50 : vector<8x256xf32>
    %cst_28 = arith.constant dense<0.000000e+00> : vector<8xf32>
    %52 = vector.multi_reduction <add>, %51, %cst_28 [1] : vector<8x256xf32> to vector<8xf32>
    %53 = vector.shape_cast %52 : vector<8xf32> to vector<8x1xf32>
    %54 = arith.addf %45, %53 : vector<8x1xf32>
    %c0_29 = arith.constant 0 : index
    %c8 = arith.constant 8 : index
    %c0_30 = arith.constant 0 : index
    %55 = vector.load %arg1[%c0_29, %c8, %c0_30] : memref<1x24x256xbf16, #tpu.memory_space<vmem>>, vector<1x8x256xbf16>
    %56 = vector.shape_cast %55 : vector<1x8x256xbf16> to vector<8x256xbf16>
    %57 = arith.extf %56 : vector<8x256xbf16> to vector<8x256xf32>
    %c6_31 = arith.constant 6 : index
    %c0_32 = arith.constant 0 : index
    %58 = vector.load %arg2[%c6_31, %c0_32] : memref<9x256xf32, #tpu.memory_space<vmem>>, vector<1x256xf32>
    %59 = vector.broadcast %58 : vector<1x256xf32> to vector<8x256xf32>
    %60 = arith.mulf %57, %59 : vector<8x256xf32>
    %cst_33 = arith.constant dense<0.000000e+00> : vector<8xf32>
    %61 = vector.multi_reduction <add>, %60, %cst_33 [1] : vector<8x256xf32> to vector<8xf32>
    %62 = vector.shape_cast %61 : vector<8xf32> to vector<8x1xf32>
    %63 = arith.addf %54, %62 : vector<8x1xf32>
    %c0_34 = arith.constant 0 : index
    %c9 = arith.constant 9 : index
    %c0_35 = arith.constant 0 : index
    %64 = vector.load %arg1[%c0_34, %c9, %c0_35] : memref<1x24x256xbf16, #tpu.memory_space<vmem>>, vector<1x8x256xbf16>
    %65 = vector.shape_cast %64 : vector<1x8x256xbf16> to vector<8x256xbf16>
    %66 = arith.extf %65 : vector<8x256xbf16> to vector<8x256xf32>
    %c7 = arith.constant 7 : index
    %c0_36 = arith.constant 0 : index
    %67 = vector.load %arg2[%c7, %c0_36] : memref<9x256xf32, #tpu.memory_space<vmem>>, vector<1x256xf32>
    %68 = vector.broadcast %67 : vector<1x256xf32> to vector<8x256xf32>
    %69 = arith.mulf %66, %68 : vector<8x256xf32>
    %cst_37 = arith.constant dense<0.000000e+00> : vector<8xf32>
    %70 = vector.multi_reduction <add>, %69, %cst_37 [1] : vector<8x256xf32> to vector<8xf32>
    %71 = vector.shape_cast %70 : vector<8xf32> to vector<8x1xf32>
    %72 = arith.addf %63, %71 : vector<8x1xf32>
    %c0_38 = arith.constant 0 : index
    %c10 = arith.constant 10 : index
    %c0_39 = arith.constant 0 : index
    %73 = vector.load %arg1[%c0_38, %c10, %c0_39] : memref<1x24x256xbf16, #tpu.memory_space<vmem>>, vector<1x8x256xbf16>
    %74 = vector.shape_cast %73 : vector<1x8x256xbf16> to vector<8x256xbf16>
    %75 = arith.extf %74 : vector<8x256xbf16> to vector<8x256xf32>
    %c8_40 = arith.constant 8 : index
    %c0_41 = arith.constant 0 : index
    %76 = vector.load %arg2[%c8_40, %c0_41] : memref<9x256xf32, #tpu.memory_space<vmem>>, vector<1x256xf32>
    %77 = vector.broadcast %76 : vector<1x256xf32> to vector<8x256xf32>
    %78 = arith.mulf %75, %77 : vector<8x256xf32>
    %cst_42 = arith.constant dense<0.000000e+00> : vector<8xf32>
    %79 = vector.multi_reduction <add>, %78, %cst_42 [1] : vector<8x256xf32> to vector<8xf32>
    %80 = vector.shape_cast %79 : vector<8xf32> to vector<8x1xf32>
    %81 = arith.addf %72, %80 : vector<8x1xf32>
    %c0_43 = arith.constant 0 : index
    %c0_44 = arith.constant 0 : index
    %82 = vector.load %arg3[%c0_43, %c0_44] : memref<1x1xf32, #tpu.memory_space<vmem>>, vector<1x1xf32>
    %83 = vector.broadcast %82 : vector<1x1xf32> to vector<8x1xf32>
    %84 = arith.addf %81, %83 : vector<8x1xf32>
    %cst_45 = arith.constant 0.000000e+00 : f32
    %85 = vector.broadcast %cst_45 : f32 to vector<8x1xf32>
    %86 = arith.cmpf ogt, %84, %85 : vector<8x1xf32>
    %cst_46 = arith.constant 0.00999999977 : f32
    %87 = vector.broadcast %cst_46 : f32 to vector<8x1xf32>
    %88 = arith.mulf %87, %84 : vector<8x1xf32>
    %89 = arith.select %86, %84, %88 : vector<8x1xi1>, vector<8x1xf32>
    %c0_47 = arith.constant 0 : index
    %c0_48 = arith.constant 0 : index
    %c0_49 = arith.constant 0 : index
    %90 = vector.load %arg4[%c0_47, %c0_48, %c0_49] : memref<1x8x64xf32, #tpu.memory_space<vmem>>, vector<1x8x64xf32>
    %91 = vector.shape_cast %90 : vector<1x8x64xf32> to vector<8x64xf32>
    %cst_50 = arith.constant dense<0.000000e+00> : vector<8xf32>
    %92 = vector.multi_reduction <add>, %91, %cst_50 [1] : vector<8x64xf32> to vector<8xf32>
    %93 = vector.shape_cast %92 : vector<8xf32> to vector<8x1xf32>
    %cst_51 = arith.constant 6.400000e+01 : f32
    %94 = vector.broadcast %cst_51 : f32 to vector<8x1xf32>
    %95 = arith.divf %93, %94 : vector<8x1xf32>
    %96 = arith.mulf %95, %89 : vector<8x1xf32>
    %97 = arith.negf %96 : vector<8x1xf32>
    %98 = math.exp %97 : vector<8x1xf32>
    %cst_52 = arith.constant 1.000000e+00 : f32
    %99 = vector.broadcast %cst_52 : f32 to vector<8x1xf32>
    %100 = arith.addf %99, %98 : vector<8x1xf32>
    %101 = arith.divf %99, %100 : vector<8x1xf32>
    %c0_53 = arith.constant 0 : index
    %c0_54 = arith.constant 0 : index
    %c0_55 = arith.constant 0 : index
    %102 = vector.load %arg5[%c0_53, %c0_54, %c0_55] : memref<1x8x1xf32, #tpu.memory_space<vmem>>, vector<1x8x1xf32>
    %103 = vector.shape_cast %102 : vector<1x8x1xf32> to vector<8x1xf32>
    %104 = vector.shape_cast %101 : vector<8x1xf32> to vector<1x8x1xf32>
    tpu.vector_store %arg5[%c0_53, %c0_54, %c0_55], %104 {strides = array<i32>} : memref<1x8x1xf32, #tpu.memory_space<vmem>>, vector<1x8x1xf32>,
    return
  }
  func.func @transform_0(%arg0: i32) -> (i32, i32, i32) {
    %c0_i32 = arith.constant 0 : i32
    %c0_i32_0 = arith.constant 0 : i32
    %c0_i32_1 = arith.constant 0 : i32
    return %arg0, %c0_i32, %c0_i32_0 : i32, i32, i32
  }
  func.func @transform_1(%arg0: i32) -> (i32, i32) {
    %c0_i32 = arith.constant 0 : i32
    %c0_i32_0 = arith.constant 0 : i32
    %c0_i32_1 = arith.constant 0 : i32
    return %c0_i32, %c0_i32_0 : i32, i32
  }
  func.func @transform_2(%arg0: i32) -> (i32, i32) {
    %c0_i32 = arith.constant 0 : i32
    %c0_i32_0 = arith.constant 0 : i32
    %c0_i32_1 = arith.constant 0 : i32
    return %c0_i32, %c0_i32_0 : i32, i32
  }
  func.func @transform_3(%arg0: i32) -> (i32, i32, i32) {
    %c0_i32 = arith.constant 0 : i32
    %c0_i32_0 = arith.constant 0 : i32
    %c0_i32_1 = arith.constant 0 : i32
    return %arg0, %c0_i32, %c0_i32_0 : i32, i32, i32
  }
  func.func @transform_4(%arg0: i32) -> (i32, i32, i32) {
    %c0_i32 = arith.constant 0 : i32
    %c0_i32_0 = arith.constant 0 : i32
    %c0_i32_1 = arith.constant 0 : i32
    return %arg0, %c0_i32, %c0_i32_0 : i32, i32, i32
  }
}

</mosaic_0001>

<llo_original>
// kernel: cnn_d_forward.4
$region0: #{cnn_d_forward.4}
  #allocation0 [shape = 'u32[]', space=smem, size = 0x4, offset = 0x4, fixed_abs, tag = 'smem constant byte address 0x4 - core index']
  #allocation1 [shape = 'u32[144,128]{1,0:T(1,128)}', space=vmem, size = 0x12000, scoped, tag = 'internal scratch']
  %s0 = inlined_call_operand.vmem [shape: f32[2,88,4], index: 0, kind: input, shape index: {}]
  %s1 = inlined_call_operand.vmem [shape: f32[9,64], index: 1, kind: input, shape index: {}]
  %s2 = inlined_call_operand.vmem [shape: f32[1,64], index: 2, kind: input, shape index: {}]
  %s3 = inlined_call_operand.vmem [shape: bf16[2,72,64], index: 3, kind: output, shape index: {}]
  %s4 = sld [smem:[#allocation0]]
  $region45: #{cnn_d_forward.4} parent=0
    _
  %s6 = ssub.s32 1, %s4
  %s7 = scalar_select 0, %s6, %s4
  loop: start=0, step=1, limit=4
  $region2: #{cnn_d_forward.4} parent=0 // loop_pre_header
    _
  $region3: #{cnn_d_forward.4} parent=0 // loop_header
    %s9 = sphi 0, %s13
    %p10 = scmp.ge.s32.totalorder %s9, 4
    %s19 = sphi 0, %s21
    %s22 = sphi 0, %s19
    %s23 = sphi 0, %s22
    %s39 = sphi 0, %s23
    %s43 = sphi 0, %s43
    %s45 = sphi 0, %s43
    %s46 = sphi 0, %s45
    %s60 = sphi 0, %s46
    %s64 = sphi 0, %s64
    %s66 = sphi 0, %s64
    %s67 = sphi 0, %s66
    %s81 = sphi 0, %s67
    %s87 = sphi 0, %s89
    %s90 = sphi 0, %s87
    %s91 = sphi 0, %s90
    %s107 = sphi 0, %s91
  $region4: #{cnn_d_forward.4} parent=0 // loop_header_branch
    %12 = sbr.rel (%p10) target = $region8
  $region5: #{cnn_d_forward.4} parent=0 // loop_body
    %s14 = ssub.s32 %s9, 1
    %s15 = ssub.s32 %s9, 2
    %s16 = sadd.s32 %s9, 1
    %s17 = ssub.s32 %s9, %s16
    %p18 = scmp.eq.s32.totalorder %s17, 0
    %s20 = sadd.s32 %s19, 1
    %s21 = scalar_select %p18, %s19, %s20
    %p24 = pneg %p18
    %p25 = scmp.eq.s32.totalorder %s9, 1
    %p26 = por %p24, %p25
    %p27 = scmp.ne.s32.totalorder %s19, %s22
    %p28 = scmp.eq.s32.totalorder %s9, 0
    %p29 = por %p27, %p28
    %p30 = scmp.ne.s32.totalorder %s19, %s22
    %p31 = scmp.eq.s32.totalorder %s14, 1
    %p32 = por %p30, %p31
    %p33 = scmp.ne.s32.totalorder %s22, %s23
    %p34 = scmp.eq.s32.totalorder %s14, 0
    %p35 = por %p33, %p34
    %p36 = scmp.ne.s32.totalorder %s22, %s23
    %p37 = scmp.eq.s32.totalorder %s15, 1
    %p38 = por %p36, %p37
    %p40 = scmp.ne.s32.totalorder %s23, %s39
    %p41 = scmp.eq.s32.totalorder %s15, 0
    %p42 = por %p40, %p41
    %s44 = sadd.s32 %s43, 1
    %p47 = scmp.eq.s32.totalorder %s9, 1
    %p48 = scmp.ne.s32.totalorder %s43, %s45
    %p49 = scmp.eq.s32.totalorder %s9, 0
    %p50 = por %p48, %p49
    %p51 = scmp.ne.s32.totalorder %s43, %s45
    %p52 = scmp.eq.s32.totalorder %s14, 1
    %p53 = por %p51, %p52
    %p54 = scmp.ne.s32.totalorder %s45, %s46
    %p55 = scmp.eq.s32.totalorder %s14, 0
    %p56 = por %p54, %p55
    %p57 = scmp.ne.s32.totalorder %s45, %s46
    %p58 = scmp.eq.s32.totalorder %s15, 1
    %p59 = por %p57, %p58
    %p61 = scmp.ne.s32.totalorder %s46, %s60
    %p62 = scmp.eq.s32.totalorder %s15, 0
    %p63 = por %p61, %p62
    %s65 = sadd.s32 %s64, 1
    %p68 = scmp.eq.s32.totalorder %s9, 1
    %p69 = scmp.ne.s32.totalorder %s64, %s66
    %p70 = scmp.eq.s32.totalorder %s9, 0
    %p71 = por %p69, %p70
    %p72 = scmp.ne.s32.totalorder %s64, %s66
    %p73 = scmp.eq.s32.totalorder %s14, 1
    %p74 = por %p72, %p73
    %p75 = scmp.ne.s32.totalorder %s66, %s67
    %p76 = scmp.eq.s32.totalorder %s14, 0
    %p77 = por %p75, %p76
    %p78 = scmp.ne.s32.totalorder %s66, %s67
    %p79 = scmp.eq.s32.totalorder %s15, 1
    %p80 = por %p78, %p79
    %p82 = scmp.ne.s32.totalorder %s67, %s81
    %p83 = scmp.eq.s32.totalorder %s15, 0
    %p84 = por %p82, %p83
    %s85 = ssub.s32 %s9, %s16
    %p86 = scmp.eq.s32.totalorder %s85, 0
    %s88 = sadd.s32 %s87, 1
    %s89 = scalar_select %p86, %s87, %s88
    %p92 = pneg %p86
    %p93 = scmp.eq.s32.totalorder %s9, 1
    %p94 = por %p92, %p93
    %p95 = scmp.ne.s32.totalorder %s87, %s90
    %p96 = scmp.eq.s32.totalorder %s9, 0
    %p97 = por %p95, %p96
    %p98 = scmp.ne.s32.totalorder %s87, %s90
    %p99 = scmp.eq.s32.totalorder %s14, 1
    %p100 = por %p98, %p99
    %p101 = scmp.ne.s32.totalorder %s90, %s91
    %p102 = scmp.eq.s32.totalorder %s14, 0
    %p103 = por %p101, %p102
    %p104 = scmp.ne.s32.totalorder %s90, %s91
    %p105 = scmp.eq.s32.totalorder %s15, 1
    %p106 = por %p104, %p105
    %p108 = scmp.ne.s32.totalorder %s91, %s107
    %p109 = scmp.eq.s32.totalorder %s15, 0
    %p110 = por %p108, %p109
    %p111 = scmp.le.s32.totalorder 1, %s9
    %p112 = scmp.lt.s32.totalorder %s9, 3
    %p113 = pnand %p111, %p112
    %p114 = pneg %p113
    // Predicated region
    $region9: #{cnn_d_forward.4} parent=5 // pred_check
      _
    $region10: #{cnn_d_forward.4} parent=5 // pred_check_branch
      %116 = sbr.rel (%p113) target = $region12
    $region11: #{cnn_d_forward.4} parent=5 // pred_region
      %s117 = ssub.s32 %s9, 1
      // Predicated region
      $region13: #{cnn_d_forward.4} parent=11 // pred_check
        %p118 = pneg %p56
      $region14: #{cnn_d_forward.4} parent=11 // pred_check_branch
        %120 = sbr.rel (%p118) target = $region16
      $region15: #{cnn_d_forward.4} parent=11 // pred_region
        _
      $region16: #{cnn_d_forward.4} parent=11 // pred_fallthru
        _
      // Predicated region
      $region17: #{cnn_d_forward.4} parent=11 // pred_check
        %p121 = pneg %p77
      $region18: #{cnn_d_forward.4} parent=11 // pred_check_branch
        %123 = sbr.rel (%p121) target = $region20
      $region19: #{cnn_d_forward.4} parent=11 // pred_region
        _
      $region20: #{cnn_d_forward.4} parent=11 // pred_fallthru
        _
    $region12: #{cnn_d_forward.4} parent=5 // pred_fallthru
      _
    %p124 = scmp.lt.s32.totalorder %s9, 2
    // Predicated region
    $region21: #{cnn_d_forward.4} parent=5 // pred_check
      %p125 = pneg %p124
    $region22: #{cnn_d_forward.4} parent=5 // pred_check_branch
      %127 = sbr.rel (%p125) target = $region24
    $region23: #{cnn_d_forward.4} parent=5 // pred_region
      // Predicated region
      $region25: #{cnn_d_forward.4} parent=23 // pred_check
        %p128 = pneg %p29
      $region26: #{cnn_d_forward.4} parent=23 // pred_check_branch
        %130 = sbr.rel (%p128) target = $region28
      $region27: #{cnn_d_forward.4} parent=23 // pred_region
        %p131 = scmp.lt.s32.totalorder %s9, 1
        %s132 = scalar_select %p131, %s9, 1
        %s133 = smul.addr %s132, 11
        %s134 = smul.addr %s133, 8
        %s135 = scalar_lea.vmem %s0, %s134
      $region28: #{cnn_d_forward.4} parent=23 // pred_fallthru
        _
    $region24: #{cnn_d_forward.4} parent=5 // pred_fallthru
      _
    %p136 = scmp.le.s32.totalorder 1, %s9
    %p137 = scmp.lt.s32.totalorder %s9, 3
    %p138 = pnand %p136, %p137
    %p139 = pneg %p138
    // Predicated region
    $region29: #{cnn_d_forward.4} parent=5 // pred_check
      _
    $region30: #{cnn_d_forward.4} parent=5 // pred_check_branch
      %141 = sbr.rel (%p138) target = $region32
    $region31: #{cnn_d_forward.4} parent=5 // pred_region
      %s142 = ssub.s32 %s9, 1
      %p143 = scmp.lt.s32.totalorder %s14, 1
      %s144 = scalar_select %p143, %s14, 1
      %s145 = smul.addr %s144, 11
      %s146 = smul.addr %s145, 8
      %s147 = scalar_lea.vmem %s0, %s146
      %p148 = pneg %p35
      %p149 = pneg %p32
      %p150 = pneg %p56
      %p151 = pneg %p53
      %p152 = pneg %p77
      %p153 = pneg %p74
      %p154 = pneg %p103
      %p155 = pneg %p100
      %p156 = scmp.lt.s32.totalorder %s14, 1
      %s157 = scalar_select %p156, %s14, 1
      %s158 = smul.addr %s157, 9
      %s159 = smul.addr %s158, 4
      %s160 = scalar_lea.vmem %s3, %s159
      %p161 = scmp.lt.s32.totalorder %s14, 1
      %s162 = scalar_select %p161, %s14, 1
      %s163 = smul.addr %s162, 11
      %s164 = smul.addr %s163, 8
      %s165 = scalar_lea.vmem %s0, %s164
      %p166 = scmp.lt.s32.totalorder %s14, 1
      %s167 = scalar_select %p166, %s14, 1
      %s168 = smul.addr %s167, 9
      %s169 = smul.addr %s168, 4
      %s170 = scalar_lea.vmem %s3, %s169
      %v171 = vld [vmem:[%s165] sm:$0xff]
      %v172 = vld [vmem:[%s165 + $0x8] sm:$0xff]
      %v173 = vld [vmem:[%s165 + $0x10] sm:$0xff]
      %v174 = vld [vmem:[%s165 + $0x18] sm:$0xff]
      %v175 = vld [vmem:[%s165 + $0x20] sm:$0xff]
      %v176 = vld [vmem:[%s165 + $0x28] sm:$0xff]
      %v177 = vld [vmem:[%s165 + $0x30] sm:$0xff]
      %v178 = vld [vmem:[%s165 + $0x38] sm:$0xff]
      %v179 = vld [vmem:[%s165 + $0x40] sm:$0xff]
      %v180 = vld [vmem:[%s1] sm:$0x1]
      %182 = vset.pattern.permute.xlu0 0
      %183 = vperm.xlu0 %182, %v171
      %v184 = vpop.permute.xlu0 %183
      %187 = vset.pattern.permute.xlu0 0
      %188 = vperm.xlu0 %187, %v172
      %v189 = vpop.permute.xlu0 %188
      %192 = vset.pattern.permute.xlu0 0
      %193 = vperm.xlu0 %192, %v173
      %v194 = vpop.permute.xlu0 %193
      %197 = vset.pattern.permute.xlu0 0
      %198 = vperm.xlu0 %197, %v174
      %v199 = vpop.permute.xlu0 %198
      %202 = vset.pattern.permute.xlu0 0
      %203 = vperm.xlu0 %202, %v175
      %v204 = vpop.permute.xlu0 %203
      %207 = vset.pattern.permute.xlu0 0
      %208 = vperm.xlu0 %207, %v176
      %v209 = vpop.permute.xlu0 %208
      %212 = vset.pattern.permute.xlu0 0
      %213 = vperm.xlu0 %212, %v177
      %v214 = vpop.permute.xlu0 %213
      %217 = vset.pattern.permute.xlu0 0
      %218 = vperm.xlu0 %217, %v178
      %v219 = vpop.permute.xlu0 %218
      %222 = vset.pattern.permute.xlu0 0
      %223 = vperm.xlu0 %222, %v179
      %v224 = vpop.permute.xlu0 %223
      %v226 = vlaneseq
      %v227 = vshrl.u32 %v226, 7
      %v228 = vsub.s32 0, %v227
      %v229 = vrot.slane %v180, %v228
      %v230 = vmul.f32 %v184, %v229
      %v231 = vmul.f32 %v189, %v229
      %v232 = vmul.f32 %v194, %v229
      %v233 = vmul.f32 %v199, %v229
      %v234 = vmul.f32 %v204, %v229
      %v235 = vmul.f32 %v209, %v229
      %v236 = vmul.f32 %v214, %v229
      %v237 = vmul.f32 %v219, %v229
      %v238 = vmul.f32 %v224, %v229
      %v239 = vadd.f32 %v230, 0.0
      %v240 = vadd.f32 %v231, 0.0
      %v241 = vadd.f32 %v232, 0.0
      %v242 = vadd.f32 %v233, 0.0
      %v243 = vadd.f32 %v234, 0.0
      %v244 = vadd.f32 %v235, 0.0
      %v245 = vadd.f32 %v236, 0.0
      %v246 = vadd.f32 %v237, 0.0
      %v247 = vadd.f32 %v238, 0.0
      %v248 = vld [vmem:[%s1 + $0x1] sm:$0x1]
      %249 = vset.pattern.permute.xlu0 1
      %250 = vperm.xlu0 %249, %v171
      %v251 = vpop.permute.xlu0 %250
      %253 = vset.pattern.permute.xlu0 1
      %254 = vperm.xlu0 %253, %v172
      %v255 = vpop.permute.xlu0 %254
      %257 = vset.pattern.permute.xlu0 1
      %258 = vperm.xlu0 %257, %v173
      %v259 = vpop.permute.xlu0 %258
      %261 = vset.pattern.permute.xlu0 1
      %262 = vperm.xlu0 %261, %v174
      %v263 = vpop.permute.xlu0 %262
      %265 = vset.pattern.permute.xlu0 1
      %266 = vperm.xlu0 %265, %v175
      %v267 = vpop.permute.xlu0 %266
      %269 = vset.pattern.permute.xlu0 1
      %270 = vperm.xlu0 %269, %v176
      %v271 = vpop.permute.xlu0 %270
      %273 = vset.pattern.permute.xlu0 1
      %274 = vperm.xlu0 %273, %v177
      %v275 = vpop.permute.xlu0 %274
      %277 = vset.pattern.permute.xlu0 1
      %278 = vperm.xlu0 %277, %v178
      %v279 = vpop.permute.xlu0 %278
      %281 = vset.pattern.permute.xlu0 1
      %282 = vperm.xlu0 %281, %v179
      %v283 = vpop.permute.xlu0 %282
      %v285 = vlaneseq
      %v286 = vshrl.u32 %v285, 7
      %v287 = vsub.s32 0, %v286
      %v288 = vrot.slane %v248, %v287
      %v289 = vmul.f32 %v251, %v288
      %v290 = vmul.f32 %v255, %v288
      %v291 = vmul.f32 %v259, %v288
      %v292 = vmul.f32 %v263, %v288
      %v293 = vmul.f32 %v267, %v288
      %v294 = vmul.f32 %v271, %v288
      %v295 = vmul.f32 %v275, %v288
      %v296 = vmul.f32 %v279, %v288
      %v297 = vmul.f32 %v283, %v288
      %v298 = vadd.f32 %v239, %v289
      %v299 = vadd.f32 %v240, %v290
      %v300 = vadd.f32 %v241, %v291
      %v301 = vadd.f32 %v242, %v292
      %v302 = vadd.f32 %v243, %v293
      %v303 = vadd.f32 %v244, %v294
      %v304 = vadd.f32 %v245, %v295
      %v305 = vadd.f32 %v246, %v296
      %v306 = vadd.f32 %v247, %v297
      %v307 = vld [vmem:[%s165 + $0x1] sm:$0xff]
      %v308 = vld [vmem:[%s165 + $0x9] sm:$0xff]
      %v309 = vld [vmem:[%s165 + $0x11] sm:$0xff]
      %v310 = vld [vmem:[%s165 + $0x19] sm:$0xff]
      %v311 = vld [vmem:[%s165 + $0x21] sm:$0xff]
      %v312 = vld [vmem:[%s165 + $0x29] sm:$0xff]
      %v313 = vld [vmem:[%s165 + $0x31] sm:$0xff]
      %v314 = vld [vmem:[%s165 + $0x39] sm:$0xff]
      %v315 = vld [vmem:[%s165 + $0x41] sm:$0xff]
      %v316 = vld [vmem:[%s1 + $0x2] sm:$0x1]
      %318 = vset.pattern.permute.xlu0 0
      %319 = vperm.xlu0 %318, %v307
      %v320 = vpop.permute.xlu0 %319
      %323 = vset.pattern.permute.xlu0 0
      %324 = vperm.xlu0 %323, %v308
      %v325 = vpop.permute.xlu0 %324
      %328 = vset.pattern.permute.xlu0 0
      %329 = vperm.xlu0 %328, %v309
      %v330 = vpop.permute.xlu0 %329
      %333 = vset.pattern.permute.xlu0 0
      %334 = vperm.xlu0 %333, %v310
      %v335 = vpop.permute.xlu0 %334
      %338 = vset.pattern.permute.xlu0 0
      %339 = vperm.xlu0 %338, %v311
      %v340 = vpop.permute.xlu0 %339
      %343 = vset.pattern.permute.xlu0 0
      %344 = vperm.xlu0 %343, %v312
      %v345 = vpop.permute.xlu0 %344
      %348 = vset.pattern.permute.xlu0 0
      %349 = vperm.xlu0 %348, %v313
      %v350 = vpop.permute.xlu0 %349
      %353 = vset.pattern.permute.xlu0 0
      %354 = vperm.xlu0 %353, %v314
      %v355 = vpop.permute.xlu0 %354
      %358 = vset.pattern.permute.xlu0 0
      %359 = vperm.xlu0 %358, %v315
      %v360 = vpop.permute.xlu0 %359
      %v362 = vlaneseq
      %v363 = vshrl.u32 %v362, 7
      %v364 = vsub.s32 0, %v363
      %v365 = vrot.slane %v316, %v364
      %v366 = vmul.f32 %v320, %v365
      %v367 = vmul.f32 %v325, %v365
      %v368 = vmul.f32 %v330, %v365
      %v369 = vmul.f32 %v335, %v365
      %v370 = vmul.f32 %v340, %v365
      %v371 = vmul.f32 %v345, %v365
      %v372 = vmul.f32 %v350, %v365
      %v373 = vmul.f32 %v355, %v365
      %v374 = vmul.f32 %v360, %v365
      %v375 = vadd.f32 %v298, %v366
      %v376 = vadd.f32 %v299, %v367
      %v377 = vadd.f32 %v300, %v368
      %v378 = vadd.f32 %v301, %v369
      %v379 = vadd.f32 %v302, %v370
      %v380 = vadd.f32 %v303, %v371
      %v381 = vadd.f32 %v304, %v372
      %v382 = vadd.f32 %v305, %v373
      %v383 = vadd.f32 %v306, %v374
      %v384 = vld [vmem:[%s1 + $0x3] sm:$0x1]
      %385 = vset.pattern.permute.xlu0 2
      %386 = vperm.xlu0 %385, %v171
      %v387 = vpop.permute.xlu0 %386
      %389 = vset.pattern.permute.xlu0 2
      %390 = vperm.xlu0 %389, %v172
      %v391 = vpop.permute.xlu0 %390
      %393 = vset.pattern.permute.xlu0 2
      %394 = vperm.xlu0 %393, %v173
      %v395 = vpop.permute.xlu0 %394
      %397 = vset.pattern.permute.xlu0 2
      %398 = vperm.xlu0 %397, %v174
      %v399 = vpop.permute.xlu0 %398
      %401 = vset.pattern.permute.xlu0 2
      %402 = vperm.xlu0 %401, %v175
      %v403 = vpop.permute.xlu0 %402
      %405 = vset.pattern.permute.xlu0 2
      %406 = vperm.xlu0 %405, %v176
      %v407 = vpop.permute.xlu0 %406
      %409 = vset.pattern.permute.xlu0 2
      %410 = vperm.xlu0 %409, %v177
      %v411 = vpop.permute.xlu0 %410
      %413 = vset.pattern.permute.xlu0 2
      %414 = vperm.xlu0 %413, %v178
      %v415 = vpop.permute.xlu0 %414
      %417 = vset.pattern.permute.xlu0 2
      %418 = vperm.xlu0 %417, %v179
      %v419 = vpop.permute.xlu0 %418
      %v421 = vlaneseq
      %v422 = vshrl.u32 %v421, 7
      %v423 = vsub.s32 0, %v422
      %v424 = vrot.slane %v384, %v423
      %v425 = vmul.f32 %v387, %v424
      %v426 = vmul.f32 %v391, %v424
      %v427 = vmul.f32 %v395, %v424
      %v428 = vmul.f32 %v399, %v424
      %v429 = vmul.f32 %v403, %v424
      %v430 = vmul.f32 %v407, %v424
      %v431 = vmul.f32 %v411, %v424
      %v432 = vmul.f32 %v415, %v424
      %v433 = vmul.f32 %v419, %v424
      %v434 = vadd.f32 %v375, %v425
      %v435 = vadd.f32 %v376, %v426
      %v436 = vadd.f32 %v377, %v427
      %v437 = vadd.f32 %v378, %v428
      %v438 = vadd.f32 %v379, %v429
      %v439 = vadd.f32 %v380, %v430
      %v440 = vadd.f32 %v381, %v431
      %v441 = vadd.f32 %v382, %v432
      %v442 = vadd.f32 %v383, %v433
      %v443 = vld [vmem:[%s1 + $0x4] sm:$0x1]
      %444 = vset.pattern.permute.xlu0 3
      %445 = vperm.xlu0 %444, %v171
      %v446 = vpop.permute.xlu0 %445
      %448 = vset.pattern.permute.xlu0 3
      %449 = vperm.xlu0 %448, %v172
      %v450 = vpop.permute.xlu0 %449
      %452 = vset.pattern.permute.xlu0 3
      %453 = vperm.xlu0 %452, %v173
      %v454 = vpop.permute.xlu0 %453
      %456 = vset.pattern.permute.xlu0 3
      %457 = vperm.xlu0 %456, %v174
      %v458 = vpop.permute.xlu0 %457
      %460 = vset.pattern.permute.xlu0 3
      %461 = vperm.xlu0 %460, %v175
      %v462 = vpop.permute.xlu0 %461
      %464 = vset.pattern.permute.xlu0 3
      %465 = vperm.xlu0 %464, %v176
      %v466 = vpop.permute.xlu0 %465
      %468 = vset.pattern.permute.xlu0 3
      %469 = vperm.xlu0 %468, %v177
      %v470 = vpop.permute.xlu0 %469
      %472 = vset.pattern.permute.xlu0 3
      %473 = vperm.xlu0 %472, %v178
      %v474 = vpop.permute.xlu0 %473
      %476 = vset.pattern.permute.xlu0 3
      %477 = vperm.xlu0 %476, %v179
      %v478 = vpop.permute.xlu0 %477
      %v480 = vlaneseq
      %v481 = vshrl.u32 %v480, 7
      %v482 = vsub.s32 0, %v481
      %v483 = vrot.slane %v443, %v482
      %v484 = vmul.f32 %v446, %v483
      %v485 = vmul.f32 %v450, %v483
      %v486 = vmul.f32 %v454, %v483
      %v487 = vmul.f32 %v458, %v483
      %v488 = vmul.f32 %v462, %v483
      %v489 = vmul.f32 %v466, %v483
      %v490 = vmul.f32 %v470, %v483
      %v491 = vmul.f32 %v474, %v483
      %v492 = vmul.f32 %v478, %v483
      %v493 = vadd.f32 %v434, %v484
      %v494 = vadd.f32 %v435, %v485
      %v495 = vadd.f32 %v436, %v486
      %v496 = vadd.f32 %v437, %v487
      %v497 = vadd.f32 %v438, %v488
      %v498 = vadd.f32 %v439, %v489
      %v499 = vadd.f32 %v440, %v490
      %v500 = vadd.f32 %v441, %v491
      %v501 = vadd.f32 %v442, %v492
      %v502 = vld [vmem:[%s1 + $0x5] sm:$0x1]
      %503 = vset.pattern.permute.xlu0 2
      %504 = vperm.xlu0 %503, %v307
      %v505 = vpop.permute.xlu0 %504
      %507 = vset.pattern.permute.xlu0 2
      %508 = vperm.xlu0 %507, %v308
      %v509 = vpop.permute.xlu0 %508
      %511 = vset.pattern.permute.xlu0 2
      %512 = vperm.xlu0 %511, %v309
      %v513 = vpop.permute.xlu0 %512
      %515 = vset.pattern.permute.xlu0 2
      %516 = vperm.xlu0 %515, %v310
      %v517 = vpop.permute.xlu0 %516
      %519 = vset.pattern.permute.xlu0 2
      %520 = vperm.xlu0 %519, %v311
      %v521 = vpop.permute.xlu0 %520
      %523 = vset.pattern.permute.xlu0 2
      %524 = vperm.xlu0 %523, %v312
      %v525 = vpop.permute.xlu0 %524
      %527 = vset.pattern.permute.xlu0 2
      %528 = vperm.xlu0 %527, %v313
      %v529 = vpop.permute.xlu0 %528
      %531 = vset.pattern.permute.xlu0 2
      %532 = vperm.xlu0 %531, %v314
      %v533 = vpop.permute.xlu0 %532
      %535 = vset.pattern.permute.xlu0 2
      %536 = vperm.xlu0 %535, %v315
      %v537 = vpop.permute.xlu0 %536
      %v539 = vlaneseq
      %v540 = vshrl.u32 %v539, 7
      %v541 = vsub.s32 0, %v540
      %v542 = vrot.slane %v502, %v541
      %v543 = vmul.f32 %v505, %v542
      %v544 = vmul.f32 %v509, %v542
      %v545 = vmul.f32 %v513, %v542
      %v546 = vmul.f32 %v517, %v542
      %v547 = vmul.f32 %v521, %v542
      %v548 = vmul.f32 %v525, %v542
      %v549 = vmul.f32 %v529, %v542
      %v550 = vmul.f32 %v533, %v542
      %v551 = vmul.f32 %v537, %v542
      %v552 = vadd.f32 %v493, %v543
      %v553 = vadd.f32 %v494, %v544
      %v554 = vadd.f32 %v495, %v545
      %v555 = vadd.f32 %v496, %v546
      %v556 = vadd.f32 %v497, %v547
      %v557 = vadd.f32 %v498, %v548
      %v558 = vadd.f32 %v499, %v549
      %v559 = vadd.f32 %v500, %v550
      %v560 = vadd.f32 %v501, %v551
      %v561 = vld [vmem:[%s165 + $0x9] sm:$0xff]
      %v562 = vld [vmem:[%s165 + $0x11] sm:$0xff]
      %v563 = vld [vmem:[%s165 + $0x19] sm:$0xff]
      %v564 = vld [vmem:[%s165 + $0x21] sm:$0xff]
      %v565 = vld [vmem:[%s165 + $0x29] sm:$0xff]
      %v566 = vld [vmem:[%s165 + $0x31] sm:$0xff]
      %v567 = vld [vmem:[%s165 + $0x39] sm:$0xff]
      %v568 = vld [vmem:[%s165 + $0x41] sm:$0xff]
      %v569 = vld [vmem:[%s165 + $0x49] sm:$0xff]
      %v570 = vld [vmem:[%s1 + $0x6] sm:$0x1]
      %572 = vset.pattern.permute.xlu0 0
      %573 = vperm.xlu0 %572, %v561
      %v574 = vpop.permute.xlu0 %573
      %577 = vset.pattern.permute.xlu0 0
      %578 = vperm.xlu0 %577, %v562
      %v579 = vpop.permute.xlu0 %578
      %582 = vset.pattern.permute.xlu0 0
      %583 = vperm.xlu0 %582, %v563
      %v584 = vpop.permute.xlu0 %583
      %587 = vset.pattern.permute.xlu0 0
      %588 = vperm.xlu0 %587, %v564
      %v589 = vpop.permute.xlu0 %588
      %592 = vset.pattern.permute.xlu0 0
      %593 = vperm.xlu0 %592, %v565
      %v594 = vpop.permute.xlu0 %593
      %597 = vset.pattern.permute.xlu0 0
      %598 = vperm.xlu0 %597, %v566
      %v599 = vpop.permute.xlu0 %598
      %602 = vset.pattern.permute.xlu0 0
      %603 = vperm.xlu0 %602, %v567
      %v604 = vpop.permute.xlu0 %603
      %607 = vset.pattern.permute.xlu0 0
      %608 = vperm.xlu0 %607, %v568
      %v609 = vpop.permute.xlu0 %608
      %612 = vset.pattern.permute.xlu0 0
      %613 = vperm.xlu0 %612, %v569
      %v614 = vpop.permute.xlu0 %613
      %v616 = vlaneseq
      %v617 = vshrl.u32 %v616, 7
      %v618 = vsub.s32 0, %v617
      %v619 = vrot.slane %v570, %v618
      %v620 = vmul.f32 %v574, %v619
      %v621 = vmul.f32 %v579, %v619
      %v622 = vmul.f32 %v584, %v619
      %v623 = vmul.f32 %v589, %v619
      %v624 = vmul.f32 %v594, %v619
      %v625 = vmul.f32 %v599, %v619
      %v626 = vmul.f32 %v604, %v619
      %v627 = vmul.f32 %v609, %v619
      %v628 = vmul.f32 %v614, %v619
      %v629 = vadd.f32 %v552, %v620
      %v630 = vadd.f32 %v553, %v621
      %v631 = vadd.f32 %v554, %v622
      %v632 = vadd.f32 %v555, %v623
      %v633 = vadd.f32 %v556, %v624
      %v634 = vadd.f32 %v557, %v625
      %v635 = vadd.f32 %v558, %v626
      %v636 = vadd.f32 %v559, %v627
      %v637 = vadd.f32 %v560, %v628
      %v638 = vld [vmem:[%s1 + $0x7] sm:$0x1]
      %639 = vset.pattern.permute.xlu0 1
      %640 = vperm.xlu0 %639, %v561
      %v641 = vpop.permute.xlu0 %640
      %643 = vset.pattern.permute.xlu0 1
      %644 = vperm.xlu0 %643, %v562
      %v645 = vpop.permute.xlu0 %644
      %647 = vset.pattern.permute.xlu0 1
      %648 = vperm.xlu0 %647, %v563
      %v649 = vpop.permute.xlu0 %648
      %651 = vset.pattern.permute.xlu0 1
      %652 = vperm.xlu0 %651, %v564
      %v653 = vpop.permute.xlu0 %652
      %655 = vset.pattern.permute.xlu0 1
      %656 = vperm.xlu0 %655, %v565
      %v657 = vpop.permute.xlu0 %656
      %659 = vset.pattern.permute.xlu0 1
      %660 = vperm.xlu0 %659, %v566
      %v661 = vpop.permute.xlu0 %660
      %663 = vset.pattern.permute.xlu0 1
      %664 = vperm.xlu0 %663, %v567
      %v665 = vpop.permute.xlu0 %664
      %667 = vset.pattern.permute.xlu0 1
      %668 = vperm.xlu0 %667, %v568
      %v669 = vpop.permute.xlu0 %668
      %671 = vset.pattern.permute.xlu0 1
      %672 = vperm.xlu0 %671, %v569
      %v673 = vpop.permute.xlu0 %672
      %v675 = vlaneseq
      %v676 = vshrl.u32 %v675, 7
      %v677 = vsub.s32 0, %v676
      %v678 = vrot.slane %v638, %v677
      %v679 = vmul.f32 %v641, %v678
      %v680 = vmul.f32 %v645, %v678
      %v681 = vmul.f32 %v649, %v678
      %v682 = vmul.f32 %v653, %v678
      %v683 = vmul.f32 %v657, %v678
      %v684 = vmul.f32 %v661, %v678
      %v685 = vmul.f32 %v665, %v678
      %v686 = vmul.f32 %v669, %v678
      %v687 = vmul.f32 %v673, %v678
      %v688 = vadd.f32 %v629, %v679
      %v689 = vadd.f32 %v630, %v680
      %v690 = vadd.f32 %v631, %v681
      %v691 = vadd.f32 %v632, %v682
      %v692 = vadd.f32 %v633, %v683
      %v693 = vadd.f32 %v634, %v684
      %v694 = vadd.f32 %v635, %v685
      %v695 = vadd.f32 %v636, %v686
      %v696 = vadd.f32 %v637, %v687
      %v697 = vld [vmem:[%s165 + $0xa] sm:$0xff]
      %v698 = vld [vmem:[%s165 + $0x12] sm:$0xff]
      %v699 = vld [vmem:[%s165 + $0x1a] sm:$0xff]
      %v700 = vld [vmem:[%s165 + $0x22] sm:$0xff]
      %v701 = vld [vmem:[%s165 + $0x2a] sm:$0xff]
      %v702 = vld [vmem:[%s165 + $0x32] sm:$0xff]
      %v703 = vld [vmem:[%s165 + $0x3a] sm:$0xff]
      %v704 = vld [vmem:[%s165 + $0x42] sm:$0xff]
      %v705 = vld [vmem:[%s165 + $0x4a] sm:$0xff]
      %v706 = vld [vmem:[%s1 + $0x8] sm:$0x1]
      %708 = vset.pattern.permute.xlu0 0
      %709 = vperm.xlu0 %708, %v697
      %v710 = vpop.permute.xlu0 %709
      %713 = vset.pattern.permute.xlu0 0
      %714 = vperm.xlu0 %713, %v698
      %v715 = vpop.permute.xlu0 %714
      %718 = vset.pattern.permute.xlu0 0
      %719 = vperm.xlu0 %718, %v699
      %v720 = vpop.permute.xlu0 %719
      %723 = vset.pattern.permute.xlu0 0
      %724 = vperm.xlu0 %723, %v700
      %v725 = vpop.permute.xlu0 %724
      %728 = vset.pattern.permute.xlu0 0
      %729 = vperm.xlu0 %728, %v701
      %v730 = vpop.permute.xlu0 %729
      %733 = vset.pattern.permute.xlu0 0
      %734 = vperm.xlu0 %733, %v702
      %v735 = vpop.permute.xlu0 %734
      %738 = vset.pattern.permute.xlu0 0
      %739 = vperm.xlu0 %738, %v703
      %v740 = vpop.permute.xlu0 %739
      %743 = vset.pattern.permute.xlu0 0
      %744 = vperm.xlu0 %743, %v704
      %v745 = vpop.permute.xlu0 %744
      %748 = vset.pattern.permute.xlu0 0
      %749 = vperm.xlu0 %748, %v705
      %v750 = vpop.permute.xlu0 %749
      %v752 = vlaneseq
      %v753 = vshrl.u32 %v752, 7
      %v754 = vsub.s32 0, %v753
      %v755 = vrot.slane %v706, %v754
      %v756 = vmul.f32 %v710, %v755
      %v757 = vmul.f32 %v715, %v755
      %v758 = vmul.f32 %v720, %v755
      %v759 = vmul.f32 %v725, %v755
      %v760 = vmul.f32 %v730, %v755
      %v761 = vmul.f32 %v735, %v755
      %v762 = vmul.f32 %v740, %v755
      %v763 = vmul.f32 %v745, %v755
      %v764 = vmul.f32 %v750, %v755
      %v765 = vadd.f32 %v688, %v756
      %v766 = vadd.f32 %v689, %v757
      %v767 = vadd.f32 %v690, %v758
      %v768 = vadd.f32 %v691, %v759
      %v769 = vadd.f32 %v692, %v760
      %v770 = vadd.f32 %v693, %v761
      %v771 = vadd.f32 %v694, %v762
      %v772 = vadd.f32 %v695, %v763
      %v773 = vadd.f32 %v696, %v764
      %v774 = vld [vmem:[%s2] sm:$0x1]
      %v776 = vlaneseq
      %v777 = vshrl.u32 %v776, 7
      %v778 = vsub.s32 0, %v777
      %v779 = vrot.slane %v774, %v778
      %v781 = vadd.f32 %v765, %v779
      %v782 = vadd.f32 %v766, %v779
      %v783 = vadd.f32 %v767, %v779
      %v784 = vadd.f32 %v768, %v779
      %v785 = vadd.f32 %v769, %v779
      %v786 = vadd.f32 %v770, %v779
      %v787 = vadd.f32 %v771, %v779
      %v788 = vadd.f32 %v772, %v779
      %v789 = vadd.f32 %v773, %v779
      %vm790 = vcmp.gt.f32.partialorder %v781, 0.0
      %vm791 = vcmp.gt.f32.partialorder %v782, 0.0
      %vm792 = vcmp.gt.f32.partialorder %v783, 0.0
      %vm793 = vcmp.gt.f32.partialorder %v784, 0.0
      %vm794 = vcmp.gt.f32.partialorder %v785, 0.0
      %vm795 = vcmp.gt.f32.partialorder %v786, 0.0
      %vm796 = vcmp.gt.f32.partialorder %v787, 0.0
      %vm797 = vcmp.gt.f32.partialorder %v788, 0.0
      %vm798 = vcmp.gt.f32.partialorder %v789, 0.0
      %v799 = vmul.f32 %v781, 0.01
      %v800 = vmul.f32 %v782, 0.01
      %v801 = vmul.f32 %v783, 0.01
      %v802 = vmul.f32 %v784, 0.01
      %v803 = vmul.f32 %v785, 0.01
      %v804 = vmul.f32 %v786, 0.01
      %v805 = vmul.f32 %v787, 0.01
      %v806 = vmul.f32 %v788, 0.01
      %v807 = vmul.f32 %v789, 0.01
      %v808 = vsel %vm790, %v781, %v799
      %v809 = vsel %vm791, %v782, %v800
      %v810 = vsel %vm792, %v783, %v801
      %v811 = vsel %vm793, %v784, %v802
      %v812 = vsel %vm794, %v785, %v803
      %v813 = vsel %vm795, %v786, %v804
      %v814 = vsel %vm796, %v787, %v805
      %v815 = vsel %vm797, %v788, %v806
      %v816 = vsel %vm798, %v789, %v807
      %v817 = vpack.c.bf16 %v809, %v808
      %v818 = vpack.c.bf16 %v811, %v810
      %v819 = vpack.c.bf16 %v813, %v812
      %v820 = vpack.c.bf16 %v815, %v814
      %v821 = vpack.c.bf16 %v816, %v816
      %v827 = vunpack.c.l.b16 %v817
      %v828 = vunpack.c.h.b16 %v817
      %v829 = vunpack.c.l.b16 %v818
      %v830 = vunpack.c.h.b16 %v818
      %v831 = vunpack.c.l.b16 %v819
      %v832 = vunpack.c.h.b16 %v819
      %v833 = vunpack.c.l.b16 %v820
      %v834 = vunpack.c.h.b16 %v820
      %v835 = vunpack.c.l.b16 %v821
      %v836 = vpack.c.b16 %v827, %v827
      %v837 = vpack.c.b16 %v828, %v828
      %v838 = vpack.c.b16 %v829, %v829
      %v839 = vpack.c.b16 %v830, %v830
      %v840 = vpack.c.b16 %v831, %v831
      %v841 = vpack.c.b16 %v832, %v832
      %v842 = vpack.c.b16 %v833, %v833
      %v843 = vpack.c.b16 %v834, %v834
      %v844 = vpack.c.b16 %v835, %v835
      %vm854 = vcmask 519168
      %855 = vst.msk [vmem:[%s170] sm:$0xf] %vm854, %v836
      %856 = vst.msk [vmem:[%s170 + $0x4] sm:$0xf] %vm854, %v837
      %857 = vst.msk [vmem:[%s170 + $0x8] sm:$0xf] %vm854, %v838
      %858 = vst.msk [vmem:[%s170 + $0xc] sm:$0xf] %vm854, %v839
      %859 = vst.msk [vmem:[%s170 + $0x10] sm:$0xf] %vm854, %v840
      %860 = vst.msk [vmem:[%s170 + $0x14] sm:$0xf] %vm854, %v841
      %861 = vst.msk [vmem:[%s170 + $0x18] sm:$0xf] %vm854, %v842
      %862 = vst.msk [vmem:[%s170 + $0x1c] sm:$0xf] %vm854, %v843
      %863 = vst.msk [vmem:[%s170 + $0x20] sm:$0xf] %vm854, %v844
      %p864 = scmp.lt.s32.totalorder %s14, 1
      %s865 = scalar_select %p864, %s14, 1
      %s866 = smul.addr %s865, 9
      %s867 = smul.addr %s866, 4
      %s868 = scalar_lea.vmem %s3, %s867
      // Predicated region
      $region33: #{cnn_d_forward.4} parent=31 // pred_check
        %p869 = pneg %p100
      $region34: #{cnn_d_forward.4} parent=31 // pred_check_branch
        %871 = sbr.rel (%p869) target = $region36
      $region35: #{cnn_d_forward.4} parent=31 // pred_region
        _
      $region36: #{cnn_d_forward.4} parent=31 // pred_fallthru
        _
    $region32: #{cnn_d_forward.4} parent=5 // pred_fallthru
      _
    %p872 = scmp.le.s32.totalorder 2, %s9
    // Predicated region
    $region37: #{cnn_d_forward.4} parent=5 // pred_check
      %p873 = pneg %p872
    $region38: #{cnn_d_forward.4} parent=5 // pred_check_branch
      %875 = sbr.rel (%p873) target = $region40
    $region39: #{cnn_d_forward.4} parent=5 // pred_region
      %s876 = ssub.s32 %s9, 2
      // Predicated region
      $region41: #{cnn_d_forward.4} parent=39 // pred_check
        %p877 = pneg %p106
      $region42: #{cnn_d_forward.4} parent=39 // pred_check_branch
        %879 = sbr.rel (%p877) target = $region44
      $region43: #{cnn_d_forward.4} parent=39 // pred_region
        %p880 = scmp.lt.s32.totalorder %s15, 1
        %s881 = scalar_select %p880, %s15, 1
        %s882 = smul.addr %s881, 9
        %s883 = smul.addr %s882, 4
        %s884 = scalar_lea.vmem %s3, %s883
      $region44: #{cnn_d_forward.4} parent=39 // pred_fallthru
        _
    $region40: #{cnn_d_forward.4} parent=5 // pred_fallthru
      _
  $region6: #{cnn_d_forward.4} parent=0 // loop_footer
    %s13 = sadd.s32 1, %s9
  $region7: #{cnn_d_forward.4} parent=0 // loop_footer_branch
    %8 = sbr.rel target = $region3
  $region8: #{cnn_d_forward.4} parent=0 // loop_exit
    _

// kernel: cnn_d_forward.5
$region0: #{cnn_d_forward.5}
  #allocation0 [shape = 'u32[]', space=smem, size = 0x4, offset = 0x4, fixed_abs, tag = 'smem constant byte address 0x4 - core index']
  #allocation1 [shape = 'u32[144,128]{1,0:T(1,128)}', space=vmem, size = 0x12000, scoped, tag = 'internal scratch']
  %s0 = inlined_call_operand.vmem [shape: bf16[2,32,256], index: 0, kind: input, shape index: {}]
  %s1 = inlined_call_operand.vmem [shape: bf16[576,128], index: 1, kind: input, shape index: {}]
  %s2 = inlined_call_operand.vmem [shape: f32[1,128], index: 2, kind: input, shape index: {}]
  %s3 = inlined_call_operand.vmem [shape: bf16[2,20,128], index: 3, kind: output, shape index: {}]
  %s4 = sld [smem:[#allocation0]]
  $region45: #{cnn_d_forward.5} parent=0
    _
  %s6 = ssub.s32 1, %s4
  %s7 = scalar_select 0, %s6, %s4
  loop: start=0, step=1, limit=4
  $region2: #{cnn_d_forward.5} parent=0 // loop_pre_header
    _
  $region3: #{cnn_d_forward.5} parent=0 // loop_header
    %s9 = sphi 0, %s13
    %p10 = scmp.ge.s32.totalorder %s9, 4
    %s19 = sphi 0, %s21
    %s22 = sphi 0, %s19
    %s23 = sphi 0, %s22
    %s39 = sphi 0, %s23
    %s43 = sphi 0, %s43
    %s45 = sphi 0, %s43
    %s46 = sphi 0, %s45
    %s60 = sphi 0, %s46
    %s64 = sphi 0, %s64
    %s66 = sphi 0, %s64
    %s67 = sphi 0, %s66
    %s81 = sphi 0, %s67
    %s87 = sphi 0, %s89
    %s90 = sphi 0, %s87
    %s91 = sphi 0, %s90
    %s107 = sphi 0, %s91
  $region4: #{cnn_d_forward.5} parent=0 // loop_header_branch
    %12 = sbr.rel (%p10) target = $region8
  $region5: #{cnn_d_forward.5} parent=0 // loop_body
    %s14 = ssub.s32 %s9, 1
    %s15 = ssub.s32 %s9, 2
    %s16 = sadd.s32 %s9, 1
    %s17 = ssub.s32 %s9, %s16
    %p18 = scmp.eq.s32.totalorder %s17, 0
    %s20 = sadd.s32 %s19, 1
    %s21 = scalar_select %p18, %s19, %s20
    %p24 = pneg %p18
    %p25 = scmp.eq.s32.totalorder %s9, 1
    %p26 = por %p24, %p25
    %p27 = scmp.ne.s32.totalorder %s19, %s22
    %p28 = scmp.eq.s32.totalorder %s9, 0
    %p29 = por %p27, %p28
    %p30 = scmp.ne.s32.totalorder %s19, %s22
    %p31 = scmp.eq.s32.totalorder %s14, 1
    %p32 = por %p30, %p31
    %p33 = scmp.ne.s32.totalorder %s22, %s23
    %p34 = scmp.eq.s32.totalorder %s14, 0
    %p35 = por %p33, %p34
    %p36 = scmp.ne.s32.totalorder %s22, %s23
    %p37 = scmp.eq.s32.totalorder %s15, 1
    %p38 = por %p36, %p37
    %p40 = scmp.ne.s32.totalorder %s23, %s39
    %p41 = scmp.eq.s32.totalorder %s15, 0
    %p42 = por %p40, %p41
    %s44 = sadd.s32 %s43, 1
    %p47 = scmp.eq.s32.totalorder %s9, 1
    %p48 = scmp.ne.s32.totalorder %s43, %s45
    %p49 = scmp.eq.s32.totalorder %s9, 0
    %p50 = por %p48, %p49
    %p51 = scmp.ne.s32.totalorder %s43, %s45
    %p52 = scmp.eq.s32.totalorder %s14, 1
    %p53 = por %p51, %p52
    %p54 = scmp.ne.s32.totalorder %s45, %s46
    %p55 = scmp.eq.s32.totalorder %s14, 0
    %p56 = por %p54, %p55
    %p57 = scmp.ne.s32.totalorder %s45, %s46
    %p58 = scmp.eq.s32.totalorder %s15, 1
    %p59 = por %p57, %p58
    %p61 = scmp.ne.s32.totalorder %s46, %s60
    %p62 = scmp.eq.s32.totalorder %s15, 0
    %p63 = por %p61, %p62
    %s65 = sadd.s32 %s64, 1
    %p68 = scmp.eq.s32.totalorder %s9, 1
    %p69 = scmp.ne.s32.totalorder %s64, %s66
    %p70 = scmp.eq.s32.totalorder %s9, 0
    %p71 = por %p69, %p70
    %p72 = scmp.ne.s32.totalorder %s64, %s66
    %p73 = scmp.eq.s32.totalorder %s14, 1
    %p74 = por %p72, %p73
    %p75 = scmp.ne.s32.totalorder %s66, %s67
    %p76 = scmp.eq.s32.totalorder %s14, 0
    %p77 = por %p75, %p76
    %p78 = scmp.ne.s32.totalorder %s66, %s67
    %p79 = scmp.eq.s32.totalorder %s15, 1
    %p80 = por %p78, %p79
    %p82 = scmp.ne.s32.totalorder %s67, %s81
    %p83 = scmp.eq.s32.totalorder %s15, 0
    %p84 = por %p82, %p83
    %s85 = ssub.s32 %s9, %s16
    %p86 = scmp.eq.s32.totalorder %s85, 0
    %s88 = sadd.s32 %s87, 1
    %s89 = scalar_select %p86, %s87, %s88
    %p92 = pneg %p86
    %p93 = scmp.eq.s32.totalorder %s9, 1
    %p94 = por %p92, %p93
    %p95 = scmp.ne.s32.totalorder %s87, %s90
    %p96 = scmp.eq.s32.totalorder %s9, 0
    %p97 = por %p95, %p96
    %p98 = scmp.ne.s32.totalorder %s87, %s90
    %p99 = scmp.eq.s32.totalorder %s14, 1
    %p100 = por %p98, %p99
    %p101 = scmp.ne.s32.totalorder %s90, %s91
    %p102 = scmp.eq.s32.totalorder %s14, 0
    %p103 = por %p101, %p102
    %p104 = scmp.ne.s32.totalorder %s90, %s91
    %p105 = scmp.eq.s32.totalorder %s15, 1
    %p106 = por %p104, %p105
    %p108 = scmp.ne.s32.totalorder %s91, %s107
    %p109 = scmp.eq.s32.totalorder %s15, 0
    %p110 = por %p108, %p109
    %p111 = scmp.le.s32.totalorder 1, %s9
    %p112 = scmp.lt.s32.totalorder %s9, 3
    %p113 = pnand %p111, %p112
    %p114 = pneg %p113
    // Predicated region
    $region9: #{cnn_d_forward.5} parent=5 // pred_check
      _
    $region10: #{cnn_d_forward.5} parent=5 // pred_check_branch
      %116 = sbr.rel (%p113) target = $region12
    $region11: #{cnn_d_forward.5} parent=5 // pred_region
      %s117 = ssub.s32 %s9, 1
      // Predicated region
      $region13: #{cnn_d_forward.5} parent=11 // pred_check
        %p118 = pneg %p56
      $region14: #{cnn_d_forward.5} parent=11 // pred_check_branch
        %120 = sbr.rel (%p118) target = $region16
      $region15: #{cnn_d_forward.5} parent=11 // pred_region
        _
      $region16: #{cnn_d_forward.5} parent=11 // pred_fallthru
        _
      // Predicated region
      $region17: #{cnn_d_forward.5} parent=11 // pred_check
        %p121 = pneg %p77
      $region18: #{cnn_d_forward.5} parent=11 // pred_check_branch
        %123 = sbr.rel (%p121) target = $region20
      $region19: #{cnn_d_forward.5} parent=11 // pred_region
        _
      $region20: #{cnn_d_forward.5} parent=11 // pred_fallthru
        _
    $region12: #{cnn_d_forward.5} parent=5 // pred_fallthru
      _
    %p124 = scmp.lt.s32.totalorder %s9, 2
    // Predicated region
    $region21: #{cnn_d_forward.5} parent=5 // pred_check
      %p125 = pneg %p124
    $region22: #{cnn_d_forward.5} parent=5 // pred_check_branch
      %127 = sbr.rel (%p125) target = $region24
    $region23: #{cnn_d_forward.5} parent=5 // pred_region
      // Predicated region
      $region25: #{cnn_d_forward.5} parent=23 // pred_check
        %p128 = pneg %p29
      $region26: #{cnn_d_forward.5} parent=23 // pred_check_branch
        %130 = sbr.rel (%p128) target = $region28
      $region27: #{cnn_d_forward.5} parent=23 // pred_region
        %p131 = scmp.lt.s32.totalorder %s9, 1
        %s132 = scalar_select %p131, %s9, 1
        %s133 = smul.addr %s132, 8
        %s134 = smul.addr %s133, 4
        %s135 = scalar_lea.vmem %s0, %s134
      $region28: #{cnn_d_forward.5} parent=23 // pred_fallthru
        _
    $region24: #{cnn_d_forward.5} parent=5 // pred_fallthru
      _
    %p136 = scmp.le.s32.totalorder 1, %s9
    %p137 = scmp.lt.s32.totalorder %s9, 3
    %p138 = pnand %p136, %p137
    %p139 = pneg %p138
    // Predicated region
    $region29: #{cnn_d_forward.5} parent=5 // pred_check
      _
    $region30: #{cnn_d_forward.5} parent=5 // pred_check_branch
      %141 = sbr.rel (%p138) target = $region32
    $region31: #{cnn_d_forward.5} parent=5 // pred_region
      %s142 = ssub.s32 %s9, 1
      %p143 = scmp.lt.s32.totalorder %s14, 1
      %s144 = scalar_select %p143, %s14, 1
      %s145 = smul.addr %s144, 8
      %s146 = smul.addr %s145, 4
      %s147 = scalar_lea.vmem %s0, %s146
      %p148 = pneg %p35
      %p149 = pneg %p32
      %p150 = pneg %p56
      %p151 = pneg %p53
      %p152 = pneg %p77
      %p153 = pneg %p74
      %p154 = pneg %p103
      %p155 = pneg %p100
      %p156 = scmp.lt.s32.totalorder %s14, 1
      %s157 = scalar_select %p156, %s14, 1
      %s158 = smul.addr %s157, 3
      %s159 = smul.addr %s158, 4
      %s160 = scalar_lea.vmem %s3, %s159
      %p161 = scmp.lt.s32.totalorder %s14, 1
      %s162 = scalar_select %p161, %s14, 1
      %s163 = smul.addr %s162, 8
      %s164 = smul.addr %s163, 4
      %s165 = scalar_lea.vmem %s0, %s164
      %p166 = scmp.lt.s32.totalorder %s14, 1
      %s167 = scalar_select %p166, %s14, 1
      %s168 = smul.addr %s167, 3
      %s169 = smul.addr %s168, 4
      %s170 = scalar_lea.vmem %s3, %s169
      %v172 = vld [vmem:[%s165] sm:$0xf]
      %v173 = vld [vmem:[%s165 + $0x8] sm:$0xf]
      %v174 = vld [vmem:[%s165 + $0x10] sm:$0x3]
      %v175 = vld [vmem:[%s1] sm:$0xf]
      %v176 = vld [vmem:[%s1 + $0x4] sm:$0xf]
      %v177 = vld [vmem:[%s1 + $0x8] sm:$0xf]
      %v178 = vld [vmem:[%s1 + $0xc] sm:$0xf]
      %v179 = vld [vmem:[%s1 + $0x10] sm:$0xf]
      %v180 = vld [vmem:[%s1 + $0x14] sm:$0xf]
      %v181 = vld [vmem:[%s1 + $0x18] sm:$0xf]
      %v182 = vld [vmem:[%s1 + $0x1c] sm:$0xf]
      %v183 = vld [vmem:[%s1 + $0x20] sm:$0xf]
      %v184 = vld [vmem:[%s1 + $0x24] sm:$0xf]
      %v185 = vld [vmem:[%s1 + $0x28] sm:$0xf]
      %v186 = vld [vmem:[%s1 + $0x2c] sm:$0xf]
      %v187 = vld [vmem:[%s1 + $0x30] sm:$0xf]
      %v188 = vld [vmem:[%s1 + $0x34] sm:$0xf]
      %v189 = vld [vmem:[%s1 + $0x38] sm:$0xf]
      %v190 = vld [vmem:[%s1 + $0x3c] sm:$0xf]
      %v194 = vunpack.c.l.b16 %v172
      %v195 = vunpack.c.l.b16 %v173
      %v196 = vunpack.c.l.b16 %v174
      %v197 = vpack.c.b16 %v195, %v194
      %v198 = vpack.c.b16 %v196, %v196
      %199 = vrot.lane.b32.xlu0 %v197, 64
      %v200 = vpop.permute.xlu0 %199
      %201 = vrot.lane.b32.xlu0 %v198, 64
      %v202 = vpop.permute.xlu0 %201
      %v211 = vunpack.c.l.b16 %v183
      %v212 = vunpack.c.l.b16 %v184
      %v213 = vunpack.c.l.b16 %v185
      %v214 = vunpack.c.l.b16 %v186
      %v215 = vunpack.c.l.b16 %v187
      %v216 = vunpack.c.l.b16 %v188
      %v217 = vunpack.c.l.b16 %v189
      %v218 = vunpack.c.l.b16 %v190
      %v219 = vpack.c.b16 %v212, %v211
      %v220 = vpack.c.b16 %v214, %v213
      %v221 = vpack.c.b16 %v216, %v215
      %v222 = vpack.c.b16 %v218, %v217
      %vm227 = vcmask 523264
      %v229 = vsel %vm227, %v200, 0
      %v232 = vsel %vm227, %v202, 0
      %234 = vmatprep.subr.bf16.mxu0 0
      %235 = vmatpush1.bf16.msra.mxu0 0
      %236 = vmatprep.subr.bf16.mxu0 0
      %237 = vmatpush1.bf16.msra.mxu0 0
      %238 = vmatprep.subr.bf16.mxu0 0
      %239 = vmatpush1.bf16.msra.mxu0 0
      %240 = vmatprep.subr.bf16.mxu0 0
      %241 = vmatpush1.bf16.msra.mxu0 0
      %242 = vmatprep.subr.bf16.mxu0 0
      %243 = vmatpush1.bf16.msra.mxu0 %v222
      %244 = vmatprep.subr.bf16.mxu0 0
      %245 = vmatpush1.bf16.msra.mxu0 %v221
      %246 = vmatprep.subr.bf16.mxu0 0
      %247 = vmatpush1.bf16.msra.mxu0 %v220
      %248 = vmatprep.subr.bf16.mxu0 0
      %249 = vmatpush1.bf16.msra.mxu0 %v219
      %250 = vmatprep.subr.bf16.mxu0 0
      %251 = vmatpush2.bf16.msra.mxu0 0
      %252 = vmatprep.subr.bf16.mxu0 0
      %253 = vmatpush2.bf16.msra.mxu0 0
      %254 = vmatprep.subr.bf16.mxu0 0
      %255 = vmatpush2.bf16.msra.mxu0 0
      %256 = vmatprep.subr.bf16.mxu0 0
      %257 = vmatpush2.bf16.msra.mxu0 0
      %258 = vmatprep.subr.bf16.mxu0 0
      %259 = vmatpush2.bf16.msra.mxu0 0
      %260 = vmatprep.subr.bf16.mxu0 0
      %261 = vmatpush2.bf16.msra.mxu0 0
      %262 = vmatprep.subr.bf16.mxu0 0
      %263 = vmatpush2.bf16.msra.mxu0 0
      %264 = vmatprep.subr.bf16.mxu0 0
      %265 = vmatpush2.bf16.msra.mxu0 0
      %266 = vmatprep.mubr.bf16.mxu0 0
      %267 = vmatmul.mubr.bf16.gmra.mxu0 %v229
      %v268 = vpop.f32.mrf.mxu0
      %v269 = vadd.f32 0.0, %v268
      %v270 = vpop.f32.mrf.mxu0
      %v271 = vpop.f32.mrf.mxu0
      %v272 = vadd.f32 0.0, %v271
      %v273 = vpop.f32.mrf.mxu0
      %274 = vmatprep.mubr.bf16.mxu0 0
      %275 = vmatmul.mubr.bf16.gmra.mxu0 %v232
      %v276 = vpop.f32.mrf.mxu0
      %v277 = vadd.f32 0.0, %v276
      %v278 = vpop.f32.mrf.mxu0
      %v279 = vpop.f32.mrf.mxu0
      %v280 = vpop.f32.mrf.mxu0
      %281 = vdwg.mxu0
      %v290 = vunpack.c.l.b16 %v175
      %v291 = vunpack.c.l.b16 %v176
      %v292 = vunpack.c.l.b16 %v177
      %v293 = vunpack.c.l.b16 %v178
      %v294 = vunpack.c.l.b16 %v179
      %v295 = vunpack.c.l.b16 %v180
      %v296 = vunpack.c.l.b16 %v181
      %v297 = vunpack.c.l.b16 %v182
      %v298 = vpack.c.b16 %v291, %v290
      %v299 = vpack.c.b16 %v293, %v292
      %v300 = vpack.c.b16 %v295, %v294
      %v301 = vpack.c.b16 %v297, %v296
      %v307 = vsel %vm227, %v197, 0
      %v310 = vsel %vm227, %v198, 0
      %312 = vmatprep.subr.bf16.mxu0 0
      %313 = vmatpush1.bf16.msra.mxu0 0
      %314 = vmatprep.subr.bf16.mxu0 0
      %315 = vmatpush1.bf16.msra.mxu0 0
      %316 = vmatprep.subr.bf16.mxu0 0
      %317 = vmatpush1.bf16.msra.mxu0 0
      %318 = vmatprep.subr.bf16.mxu0 0
      %319 = vmatpush1.bf16.msra.mxu0 0
      %320 = vmatprep.subr.bf16.mxu0 0
      %321 = vmatpush1.bf16.msra.mxu0 %v301
      %322 = vmatprep.subr.bf16.mxu0 0
      %323 = vmatpush1.bf16.msra.mxu0 %v300
      %324 = vmatprep.subr.bf16.mxu0 0
      %325 = vmatpush1.bf16.msra.mxu0 %v299
      %326 = vmatprep.subr.bf16.mxu0 0
      %327 = vmatpush1.bf16.msra.mxu0 %v298
      %328 = vmatprep.subr.bf16.mxu0 0
      %329 = vmatpush2.bf16.msra.mxu0 0
      %330 = vmatprep.subr.bf16.mxu0 0
      %331 = vmatpush2.bf16.msra.mxu0 0
      %332 = vmatprep.subr.bf16.mxu0 0
      %333 = vmatpush2.bf16.msra.mxu0 0
      %334 = vmatprep.subr.bf16.mxu0 0
      %335 = vmatpush2.bf16.msra.mxu0 0
      %336 = vmatprep.subr.bf16.mxu0 0
      %337 = vmatpush2.bf16.msra.mxu0 0
      %338 = vmatprep.subr.bf16.mxu0 0
      %339 = vmatpush2.bf16.msra.mxu0 0
      %340 = vmatprep.subr.bf16.mxu0 0
      %341 = vmatpush2.bf16.msra.mxu0 0
      %342 = vmatprep.subr.bf16.mxu0 0
      %343 = vmatpush2.bf16.msra.mxu0 0
      %344 = vmatprep.mubr.bf16.mxu0 0
      %345 = vmatmul.mubr.bf16.gmra.mxu0 %v307
      %v346 = vpop.f32.mrf.mxu0
      %v347 = vadd.f32 %v269, %v346
      %v348 = vpop.f32.mrf.mxu0
      %v349 = vpop.f32.mrf.mxu0
      %v350 = vadd.f32 %v272, %v349
      %v351 = vpop.f32.mrf.mxu0
      %352 = vmatprep.mubr.bf16.mxu0 0
      %353 = vmatmul.mubr.bf16.gmra.mxu0 %v310
      %v354 = vpop.f32.mrf.mxu0
      %v355 = vadd.f32 %v277, %v354
      %v356 = vpop.f32.mrf.mxu0
      %v357 = vpop.f32.mrf.mxu0
      %v358 = vpop.f32.mrf.mxu0
      %359 = vdwg.mxu0
      %v360 = vld [vmem:[%s165 + $0x10] sm:$0x7]
      %v361 = vld [vmem:[%s1 + $0x40] sm:$0xf]
      %v362 = vld [vmem:[%s1 + $0x44] sm:$0xf]
      %v363 = vld [vmem:[%s1 + $0x48] sm:$0xf]
      %v364 = vld [vmem:[%s1 + $0x4c] sm:$0xf]
      %v365 = vld [vmem:[%s1 + $0x50] sm:$0xf]
      %v366 = vld [vmem:[%s1 + $0x54] sm:$0xf]
      %v367 = vld [vmem:[%s1 + $0x58] sm:$0xf]
      %v368 = vld [vmem:[%s1 + $0x5c] sm:$0xf]
      %v370 = vunpack.c.l.b16 %v360
      %v371 = vpack.c.b16 %v370, %v370
      %vm372 = vsmask.f32 7424
      %v373 = vshrl.u32 %v197, 16
      %v375 = vshll.u32 %v197, 16
      %v377 = vrot.slane %v375, 1
      %v378 = vor.u32 %v373, %v377
      %v380 = vshll.u32 %v371, 16
      %v382 = vrot.slane %v380, 1
      %v383 = vsel %vm372, %v378, %v382
      %v384 = vshrl.u32 %v371, 16
      %v386 = vor.u32 %v384, %v382
      %v395 = vunpack.c.l.b16 %v361
      %v396 = vunpack.c.l.b16 %v362
      %v397 = vunpack.c.l.b16 %v363
      %v398 = vunpack.c.l.b16 %v364
      %v399 = vunpack.c.l.b16 %v365
      %v400 = vunpack.c.l.b16 %v366
      %v401 = vunpack.c.l.b16 %v367
      %v402 = vunpack.c.l.b16 %v368
      %v403 = vpack.c.b16 %v396, %v395
      %v404 = vpack.c.b16 %v398, %v397
      %v405 = vpack.c.b16 %v400, %v399
      %v406 = vpack.c.b16 %v402, %v401
      %v412 = vsel %vm227, %v383, 0
      %v415 = vsel %vm227, %v386, 0
      %417 = vmatprep.subr.bf16.mxu0 0
      %418 = vmatpush1.bf16.msra.mxu0 0
      %419 = vmatprep.subr.bf16.mxu0 0
      %420 = vmatpush1.bf16.msra.mxu0 0
      %421 = vmatprep.subr.bf16.mxu0 0
      %422 = vmatpush1.bf16.msra.mxu0 0
      %423 = vmatprep.subr.bf16.mxu0 0
      %424 = vmatpush1.bf16.msra.mxu0 0
      %425 = vmatprep.subr.bf16.mxu0 0
      %426 = vmatpush1.bf16.msra.mxu0 %v406
      %427 = vmatprep.subr.bf16.mxu0 0
      %428 = vmatpush1.bf16.msra.mxu0 %v405
      %429 = vmatprep.subr.bf16.mxu0 0
      %430 = vmatpush1.bf16.msra.mxu0 %v404
      %431 = vmatprep.subr.bf16.mxu0 0
      %432 = vmatpush1.bf16.msra.mxu0 %v403
      %433 = vmatprep.subr.bf16.mxu0 0
      %434 = vmatpush2.bf16.msra.mxu0 0
      %435 = vmatprep.subr.bf16.mxu0 0
      %436 = vmatpush2.bf16.msra.mxu0 0
      %437 = vmatprep.subr.bf16.mxu0 0
      %438 = vmatpush2.bf16.msra.mxu0 0
      %439 = vmatprep.subr.bf16.mxu0 0
      %440 = vmatpush2.bf16.msra.mxu0 0
      %441 = vmatprep.subr.bf16.mxu0 0
      %442 = vmatpush2.bf16.msra.mxu0 0
      %443 = vmatprep.subr.bf16.mxu0 0
      %444 = vmatpush2.bf16.msra.mxu0 0
      %445 = vmatprep.subr.bf16.mxu0 0
      %446 = vmatpush2.bf16.msra.mxu0 0
      %447 = vmatprep.subr.bf16.mxu0 0
      %448 = vmatpush2.bf16.msra.mxu0 0
      %449 = vmatprep.mubr.bf16.mxu0 0
      %450 = vmatmul.mubr.bf16.gmra.mxu0 %v412
      %v451 = vpop.f32.mrf.mxu0
      %v452 = vadd.f32 0.0, %v451
      %v453 = vpop.f32.mrf.mxu0
      %v454 = vpop.f32.mrf.mxu0
      %v455 = vadd.f32 0.0, %v454
      %v456 = vpop.f32.mrf.mxu0
      %457 = vmatprep.mubr.bf16.mxu0 0
      %458 = vmatmul.mubr.bf16.gmra.mxu0 %v415
      %v459 = vpop.f32.mrf.mxu0
      %v460 = vadd.f32 0.0, %v459
      %v461 = vpop.f32.mrf.mxu0
      %v462 = vpop.f32.mrf.mxu0
      %v463 = vpop.f32.mrf.mxu0
      %464 = vdwg.mxu0
      %v465 = vadd.f32 %v347, %v452
      %v466 = vadd.f32 %v350, %v455
      %v467 = vadd.f32 %v355, %v460
      %v468 = vld [vmem:[%s165 + $0x4] sm:$0xf]
      %v469 = vld [vmem:[%s165 + $0xc] sm:$0xf]
      %v470 = vld [vmem:[%s165 + $0x14] sm:$0x3]
      %v471 = vld [vmem:[%s1 + $0x60] sm:$0xf]
      %v472 = vld [vmem:[%s1 + $0x64] sm:$0xf]
      %v473 = vld [vmem:[%s1 + $0x68] sm:$0xf]
      %v474 = vld [vmem:[%s1 + $0x6c] sm:$0xf]
      %v475 = vld [vmem:[%s1 + $0x70] sm:$0xf]
      %v476 = vld [vmem:[%s1 + $0x74] sm:$0xf]
      %v477 = vld [vmem:[%s1 + $0x78] sm:$0xf]
      %v478 = vld [vmem:[%s1 + $0x7c] sm:$0xf]
      %v482 = vunpack.c.l.b16 %v468
      %v483 = vunpack.c.l.b16 %v469
      %v484 = vunpack.c.l.b16 %v470
      %v485 = vpack.c.b16 %v483, %v482
      %v486 = vpack.c.b16 %v484, %v484
      %v495 = vunpack.c.l.b16 %v471
      %v496 = vunpack.c.l.b16 %v472
      %v497 = vunpack.c.l.b16 %v473
      %v498 = vunpack.c.l.b16 %v474
      %v499 = vunpack.c.l.b16 %v475
      %v500 = vunpack.c.l.b16 %v476
      %v501 = vunpack.c.l.b16 %v477
      %v502 = vunpack.c.l.b16 %v478
      %v503 = vpack.c.b16 %v496, %v495
      %v504 = vpack.c.b16 %v498, %v497
      %v505 = vpack.c.b16 %v500, %v499
      %v506 = vpack.c.b16 %v502, %v501
      %v512 = vsel %vm227, %v485, 0
      %v515 = vsel %vm227, %v486, 0
      %517 = vmatprep.subr.bf16.mxu0 0
      %518 = vmatpush1.bf16.msra.mxu0 0
      %519 = vmatprep.subr.bf16.mxu0 0
      %520 = vmatpush1.bf16.msra.mxu0 0
      %521 = vmatprep.subr.bf16.mxu0 0
      %522 = vmatpush1.bf16.msra.mxu0 0
      %523 = vmatprep.subr.bf16.mxu0 0
      %524 = vmatpush1.bf16.msra.mxu0 0
      %525 = vmatprep.subr.bf16.mxu0 0
      %526 = vmatpush1.bf16.msra.mxu0 %v506
      %527 = vmatprep.subr.bf16.mxu0 0
      %528 = vmatpush1.bf16.msra.mxu0 %v505
      %529 = vmatprep.subr.bf16.mxu0 0
      %530 = vmatpush1.bf16.msra.mxu0 %v504
      %531 = vmatprep.subr.bf16.mxu0 0
      %532 = vmatpush1.bf16.msra.mxu0 %v503
      %533 = vmatprep.subr.bf16.mxu0 0
      %534 = vmatpush2.bf16.msra.mxu0 0
      %535 = vmatprep.subr.bf16.mxu0 0
      %536 = vmatpush2.bf16.msra.mxu0 0
      %537 = vmatprep.subr.bf16.mxu0 0
      %538 = vmatpush2.bf16.msra.mxu0 0
      %539 = vmatprep.subr.bf16.mxu0 0
      %540 = vmatpush2.bf16.msra.mxu0 0
      %541 = vmatprep.subr.bf16.mxu0 0
      %542 = vmatpush2.bf16.msra.mxu0 0
      %543 = vmatprep.subr.bf16.mxu0 0
      %544 = vmatpush2.bf16.msra.mxu0 0
      %545 = vmatprep.subr.bf16.mxu0 0
      %546 = vmatpush2.bf16.msra.mxu0 0
      %547 = vmatprep.subr.bf16.mxu0 0
      %548 = vmatpush2.bf16.msra.mxu0 0
      %549 = vmatprep.mubr.bf16.mxu0 0
      %550 = vmatmul.mubr.bf16.gmra.mxu0 %v512
      %v551 = vpop.f32.mrf.mxu0
      %v552 = vadd.f32 0.0, %v551
      %v553 = vpop.f32.mrf.mxu0
      %v554 = vpop.f32.mrf.mxu0
      %v555 = vadd.f32 0.0, %v554
      %v556 = vpop.f32.mrf.mxu0
      %557 = vmatprep.mubr.bf16.mxu0 0
      %558 = vmatmul.mubr.bf16.gmra.mxu0 %v515
      %v559 = vpop.f32.mrf.mxu0
      %v560 = vadd.f32 0.0, %v559
      %v561 = vpop.f32.mrf.mxu0
      %v562 = vpop.f32.mrf.mxu0
      %v563 = vpop.f32.mrf.mxu0
      %564 = vdwg.mxu0
      %v565 = vadd.f32 %v465, %v552
      %v566 = vadd.f32 %v466, %v555
      %v567 = vadd.f32 %v467, %v560
      %v568 = vld [vmem:[%s1 + $0x80] sm:$0xf]
      %v569 = vld [vmem:[%s1 + $0x84] sm:$0xf]
      %v570 = vld [vmem:[%s1 + $0x88] sm:$0xf]
      %v571 = vld [vmem:[%s1 + $0x8c] sm:$0xf]
      %v572 = vld [vmem:[%s1 + $0x90] sm:$0xf]
      %v573 = vld [vmem:[%s1 + $0x94] sm:$0xf]
      %v574 = vld [vmem:[%s1 + $0x98] sm:$0xf]
      %v575 = vld [vmem:[%s1 + $0x9c] sm:$0xf]
      %576 = vrot.lane.b32.xlu0 %v485, 64
      %v577 = vpop.permute.xlu0 %576
      %578 = vrot.lane.b32.xlu0 %v486, 64
      %v579 = vpop.permute.xlu0 %578
      %v588 = vunpack.c.l.b16 %v568
      %v589 = vunpack.c.l.b16 %v569
      %v590 = vunpack.c.l.b16 %v570
      %v591 = vunpack.c.l.b16 %v571
      %v592 = vunpack.c.l.b16 %v572
      %v593 = vunpack.c.l.b16 %v573
      %v594 = vunpack.c.l.b16 %v574
      %v595 = vunpack.c.l.b16 %v575
      %v596 = vpack.c.b16 %v589, %v588
      %v597 = vpack.c.b16 %v591, %v590
      %v598 = vpack.c.b16 %v593, %v592
      %v599 = vpack.c.b16 %v595, %v594
      %v605 = vsel %vm227, %v577, 0
      %v608 = vsel %vm227, %v579, 0
      %610 = vmatprep.subr.bf16.mxu0 0
      %611 = vmatpush1.bf16.msra.mxu0 0
      %612 = vmatprep.subr.bf16.mxu0 0
      %613 = vmatpush1.bf16.msra.mxu0 0
      %614 = vmatprep.subr.bf16.mxu0 0
      %615 = vmatpush1.bf16.msra.mxu0 0
      %616 = vmatprep.subr.bf16.mxu0 0
      %617 = vmatpush1.bf16.msra.mxu0 0
      %618 = vmatprep.subr.bf16.mxu0 0
      %619 = vmatpush1.bf16.msra.mxu0 %v599
      %620 = vmatprep.subr.bf16.mxu0 0
      %621 = vmatpush1.bf16.msra.mxu0 %v598
      %622 = vmatprep.subr.bf16.mxu0 0
      %623 = vmatpush1.bf16.msra.mxu0 %v597
      %624 = vmatprep.subr.bf16.mxu0 0
      %625 = vmatpush1.bf16.msra.mxu0 %v596
      %626 = vmatprep.subr.bf16.mxu0 0
      %627 = vmatpush2.bf16.msra.mxu0 0
      %628 = vmatprep.subr.bf16.mxu0 0
      %629 = vmatpush2.bf16.msra.mxu0 0
      %630 = vmatprep.subr.bf16.mxu0 0
      %631 = vmatpush2.bf16.msra.mxu0 0
      %632 = vmatprep.subr.bf16.mxu0 0
      %633 = vmatpush2.bf16.msra.mxu0 0
      %634 = vmatprep.subr.bf16.mxu0 0
      %635 = vmatpush2.bf16.msra.mxu0 0
      %636 = vmatprep.subr.bf16.mxu0 0
      %637 = vmatpush2.bf16.msra.mxu0 0
      %638 = vmatprep.subr.bf16.mxu0 0
      %639 = vmatpush2.bf16.msra.mxu0 0
      %640 = vmatprep.subr.bf16.mxu0 0
      %641 = vmatpush2.bf16.msra.mxu0 0
      %642 = vmatprep.mubr.bf16.mxu0 0
      %643 = vmatmul.mubr.bf16.gmra.mxu0 %v605
      %v644 = vpop.f32.mrf.mxu0
      %v645 = vadd.f32 0.0, %v644
      %v646 = vpop.f32.mrf.mxu0
      %v647 = vpop.f32.mrf.mxu0
      %v648 = vadd.f32 0.0, %v647
      %v649 = vpop.f32.mrf.mxu0
      %650 = vmatprep.mubr.bf16.mxu0 0
      %651 = vmatmul.mubr.bf16.gmra.mxu0 %v608
      %v652 = vpop.f32.mrf.mxu0
      %v653 = vadd.f32 0.0, %v652
      %v654 = vpop.f32.mrf.mxu0
      %v655 = vpop.f32.mrf.mxu0
      %v656 = vpop.f32.mrf.mxu0
      %657 = vdwg.mxu0
      %v658 = vadd.f32 %v565, %v645
      %v659 = vadd.f32 %v566, %v648
      %v660 = vadd.f32 %v567, %v653
      %v661 = vld [vmem:[%s165 + $0x14] sm:$0x7]
      %v662 = vld [vmem:[%s1 + $0xa0] sm:$0xf]
      %v663 = vld [vmem:[%s1 + $0xa4] sm:$0xf]
      %v664 = vld [vmem:[%s1 + $0xa8] sm:$0xf]
      %v665 = vld [vmem:[%s1 + $0xac] sm:$0xf]
      %v666 = vld [vmem:[%s1 + $0xb0] sm:$0xf]
      %v667 = vld [vmem:[%s1 + $0xb4] sm:$0xf]
      %v668 = vld [vmem:[%s1 + $0xb8] sm:$0xf]
      %v669 = vld [vmem:[%s1 + $0xbc] sm:$0xf]
      %v671 = vunpack.c.l.b16 %v661
      %v672 = vpack.c.b16 %v671, %v671
      %v673 = vshrl.u32 %v485, 16
      %v675 = vshll.u32 %v485, 16
      %v677 = vrot.slane %v675, 1
      %v678 = vor.u32 %v673, %v677
      %v680 = vshll.u32 %v672, 16
      %v682 = vrot.slane %v680, 1
      %v683 = vsel %vm372, %v678, %v682
      %v684 = vshrl.u32 %v672, 16
      %v686 = vor.u32 %v684, %v682
      %v695 = vunpack.c.l.b16 %v662
      %v696 = vunpack.c.l.b16 %v663
      %v697 = vunpack.c.l.b16 %v664
      %v698 = vunpack.c.l.b16 %v665
      %v699 = vunpack.c.l.b16 %v666
      %v700 = vunpack.c.l.b16 %v667
      %v701 = vunpack.c.l.b16 %v668
      %v702 = vunpack.c.l.b16 %v669
      %v703 = vpack.c.b16 %v696, %v695
      %v704 = vpack.c.b16 %v698, %v697
      %v705 = vpack.c.b16 %v700, %v699
      %v706 = vpack.c.b16 %v702, %v701
      %v712 = vsel %vm227, %v683, 0
      %v715 = vsel %vm227, %v686, 0
      %717 = vmatprep.subr.bf16.mxu0 0
      %718 = vmatpush1.bf16.msra.mxu0 0
      %719 = vmatprep.subr.bf16.mxu0 0
      %720 = vmatpush1.bf16.msra.mxu0 0
      %721 = vmatprep.subr.bf16.mxu0 0
      %722 = vmatpush1.bf16.msra.mxu0 0
      %723 = vmatprep.subr.bf16.mxu0 0
      %724 = vmatpush1.bf16.msra.mxu0 0
      %725 = vmatprep.subr.bf16.mxu0 0
      %726 = vmatpush1.bf16.msra.mxu0 %v706
      %727 = vmatprep.subr.bf16.mxu0 0
      %728 = vmatpush1.bf16.msra.mxu0 %v705
      %729 = vmatprep.subr.bf16.mxu0 0
      %730 = vmatpush1.bf16.msra.mxu0 %v704
      %731 = vmatprep.subr.bf16.mxu0 0
      %732 = vmatpush1.bf16.msra.mxu0 %v703
      %733 = vmatprep.subr.bf16.mxu0 0
      %734 = vmatpush2.bf16.msra.mxu0 0
      %735 = vmatprep.subr.bf16.mxu0 0
      %736 = vmatpush2.bf16.msra.mxu0 0
      %737 = vmatprep.subr.bf16.mxu0 0
      %738 = vmatpush2.bf16.msra.mxu0 0
      %739 = vmatprep.subr.bf16.mxu0 0
      %740 = vmatpush2.bf16.msra.mxu0 0
      %741 = vmatprep.subr.bf16.mxu0 0
      %742 = vmatpush2.bf16.msra.mxu0 0
      %743 = vmatprep.subr.bf16.mxu0 0
      %744 = vmatpush2.bf16.msra.mxu0 0
      %745 = vmatprep.subr.bf16.mxu0 0
      %746 = vmatpush2.bf16.msra.mxu0 0
      %747 = vmatprep.subr.bf16.mxu0 0
      %748 = vmatpush2.bf16.msra.mxu0 0
      %749 = vmatprep.mubr.bf16.mxu0 0
      %750 = vmatmul.mubr.bf16.gmra.mxu0 %v712
      %v751 = vpop.f32.mrf.mxu0
      %v752 = vadd.f32 0.0, %v751
      %v753 = vpop.f32.mrf.mxu0
      %v754 = vpop.f32.mrf.mxu0
      %v755 = vadd.f32 0.0, %v754
      %v756 = vpop.f32.mrf.mxu0
      %757 = vmatprep.mubr.bf16.mxu0 0
      %758 = vmatmul.mubr.bf16.gmra.mxu0 %v715
      %v759 = vpop.f32.mrf.mxu0
      %v760 = vadd.f32 0.0, %v759
      %v761 = vpop.f32.mrf.mxu0
      %v762 = vpop.f32.mrf.mxu0
      %v763 = vpop.f32.mrf.mxu0
      %764 = vdwg.mxu0
      %v765 = vadd.f32 %v658, %v752
      %v766 = vadd.f32 %v659, %v755
      %v767 = vadd.f32 %v660, %v760
      %v768 = vld [vmem:[%s165] sm:$0xc]
      %v769 = vld [vmem:[%s165 + $0x8] sm:$0xf]
      %v770 = vld [vmem:[%s165 + $0x10] sm:$0xf]
      %v771 = vld [vmem:[%s165 + $0x18] sm:$0x1]
      %v772 = vld [vmem:[%s1 + $0xc0] sm:$0xf]
      %v773 = vld [vmem:[%s1 + $0xc4] sm:$0xf]
      %v774 = vld [vmem:[%s1 + $0xc8] sm:$0xf]
      %v775 = vld [vmem:[%s1 + $0xcc] sm:$0xf]
      %v776 = vld [vmem:[%s1 + $0xd0] sm:$0xf]
      %v777 = vld [vmem:[%s1 + $0xd4] sm:$0xf]
      %v778 = vld [vmem:[%s1 + $0xd8] sm:$0xf]
      %v779 = vld [vmem:[%s1 + $0xdc] sm:$0xf]
      %v784 = vunpack.c.l.b16 %v768
      %v785 = vunpack.c.l.b16 %v769
      %v786 = vunpack.c.l.b16 %v770
      %v787 = vunpack.c.l.b16 %v771
      %v788 = vpack.c.b16 %v785, %v784
      %v789 = vpack.c.b16 %v787, %v786
      %vm790 = vsmask.f32 5376
      %v792 = vshrl.u32 %v788, 16
      %v794 = vrot.slane %v792, 2
      %v795 = vshll.u32 %v788, 16
      %v797 = vrot.slane %v795, 3
      %v798 = vor.u32 %v794, %v797
      %v800 = vshrl.u32 %v789, 16
      %v802 = vrot.slane %v800, 2
      %v803 = vshll.u32 %v789, 16
      %v805 = vrot.slane %v803, 3
      %v806 = vor.u32 %v802, %v805
      %v807 = vsel %vm790, %v798, %v806
      %v816 = vunpack.c.l.b16 %v772
      %v817 = vunpack.c.l.b16 %v773
      %v818 = vunpack.c.l.b16 %v774
      %v819 = vunpack.c.l.b16 %v775
      %v820 = vunpack.c.l.b16 %v776
      %v821 = vunpack.c.l.b16 %v777
      %v822 = vunpack.c.l.b16 %v778
      %v823 = vunpack.c.l.b16 %v779
      %v824 = vpack.c.b16 %v817, %v816
      %v825 = vpack.c.b16 %v819, %v818
      %v826 = vpack.c.b16 %v821, %v820
      %v827 = vpack.c.b16 %v823, %v822
      %v833 = vsel %vm227, %v807, 0
      %v836 = vsel %vm227, %v806, 0
      %838 = vmatprep.subr.bf16.mxu0 0
      %839 = vmatpush1.bf16.msra.mxu0 0
      %840 = vmatprep.subr.bf16.mxu0 0
      %841 = vmatpush1.bf16.msra.mxu0 0
      %842 = vmatprep.subr.bf16.mxu0 0
      %843 = vmatpush1.bf16.msra.mxu0 0
      %844 = vmatprep.subr.bf16.mxu0 0
      %845 = vmatpush1.bf16.msra.mxu0 0
      %846 = vmatprep.subr.bf16.mxu0 0
      %847 = vmatpush1.bf16.msra.mxu0 %v827
      %848 = vmatprep.subr.bf16.mxu0 0
      %849 = vmatpush1.bf16.msra.mxu0 %v826
      %850 = vmatprep.subr.bf16.mxu0 0
      %851 = vmatpush1.bf16.msra.mxu0 %v825
      %852 = vmatprep.subr.bf16.mxu0 0
      %853 = vmatpush1.bf16.msra.mxu0 %v824
      %854 = vmatprep.subr.bf16.mxu0 0
      %855 = vmatpush2.bf16.msra.mxu0 0
      %856 = vmatprep.subr.bf16.mxu0 0
      %857 = vmatpush2.bf16.msra.mxu0 0
      %858 = vmatprep.subr.bf16.mxu0 0
      %859 = vmatpush2.bf16.msra.mxu0 0
      %860 = vmatprep.subr.bf16.mxu0 0
      %861 = vmatpush2.bf16.msra.mxu0 0
      %862 = vmatprep.subr.bf16.mxu0 0
      %863 = vmatpush2.bf16.msra.mxu0 0
      %864 = vmatprep.subr.bf16.mxu0 0
      %865 = vmatpush2.bf16.msra.mxu0 0
      %866 = vmatprep.subr.bf16.mxu0 0
      %867 = vmatpush2.bf16.msra.mxu0 0
      %868 = vmatprep.subr.bf16.mxu0 0
      %869 = vmatpush2.bf16.msra.mxu0 0
      %870 = vmatprep.mubr.bf16.mxu0 0
      %871 = vmatmul.mubr.bf16.gmra.mxu0 %v833
      %v872 = vpop.f32.mrf.mxu0
      %v873 = vadd.f32 0.0, %v872
      %v874 = vpop.f32.mrf.mxu0
      %v875 = vpop.f32.mrf.mxu0
      %v876 = vadd.f32 0.0, %v875
      %v877 = vpop.f32.mrf.mxu0
      %878 = vmatprep.mubr.bf16.mxu0 0
      %879 = vmatmul.mubr.bf16.gmra.mxu0 %v836
      %v880 = vpop.f32.mrf.mxu0
      %v881 = vadd.f32 0.0, %v880
      %v882 = vpop.f32.mrf.mxu0
      %v883 = vpop.f32.mrf.mxu0
      %v884 = vpop.f32.mrf.mxu0
      %885 = vdwg.mxu0
      %v886 = vadd.f32 %v765, %v873
      %v887 = vadd.f32 %v766, %v876
      %v888 = vadd.f32 %v767, %v881
      %v889 = vld [vmem:[%s1 + $0xe0] sm:$0xf]
      %v890 = vld [vmem:[%s1 + $0xe4] sm:$0xf]
      %v891 = vld [vmem:[%s1 + $0xe8] sm:$0xf]
      %v892 = vld [vmem:[%s1 + $0xec] sm:$0xf]
      %v893 = vld [vmem:[%s1 + $0xf0] sm:$0xf]
      %v894 = vld [vmem:[%s1 + $0xf4] sm:$0xf]
      %v895 = vld [vmem:[%s1 + $0xf8] sm:$0xf]
      %v896 = vld [vmem:[%s1 + $0xfc] sm:$0xf]
      %897 = vrot.lane.b32.xlu0 %v807, 64
      %v898 = vpop.permute.xlu0 %897
      %899 = vrot.lane.b32.xlu0 %v806, 64
      %v900 = vpop.permute.xlu0 %899
      %v909 = vunpack.c.l.b16 %v889
      %v910 = vunpack.c.l.b16 %v890
      %v911 = vunpack.c.l.b16 %v891
      %v912 = vunpack.c.l.b16 %v892
      %v913 = vunpack.c.l.b16 %v893
      %v914 = vunpack.c.l.b16 %v894
      %v915 = vunpack.c.l.b16 %v895
      %v916 = vunpack.c.l.b16 %v896
      %v917 = vpack.c.b16 %v910, %v909
      %v918 = vpack.c.b16 %v912, %v911
      %v919 = vpack.c.b16 %v914, %v913
      %v920 = vpack.c.b16 %v916, %v915
      %v926 = vsel %vm227, %v898, 0
      %v929 = vsel %vm227, %v900, 0
      %931 = vmatprep.subr.bf16.mxu0 0
      %932 = vmatpush1.bf16.msra.mxu0 0
      %933 = vmatprep.subr.bf16.mxu0 0
      %934 = vmatpush1.bf16.msra.mxu0 0
      %935 = vmatprep.subr.bf16.mxu0 0
      %936 = vmatpush1.bf16.msra.mxu0 0
      %937 = vmatprep.subr.bf16.mxu0 0
      %938 = vmatpush1.bf16.msra.mxu0 0
      %939 = vmatprep.subr.bf16.mxu0 0
      %940 = vmatpush1.bf16.msra.mxu0 %v920
      %941 = vmatprep.subr.bf16.mxu0 0
      %942 = vmatpush1.bf16.msra.mxu0 %v919
      %943 = vmatprep.subr.bf16.mxu0 0
      %944 = vmatpush1.bf16.msra.mxu0 %v918
      %945 = vmatprep.subr.bf16.mxu0 0
      %946 = vmatpush1.bf16.msra.mxu0 %v917
      %947 = vmatprep.subr.bf16.mxu0 0
      %948 = vmatpush2.bf16.msra.mxu0 0
      %949 = vmatprep.subr.bf16.mxu0 0
      %950 = vmatpush2.bf16.msra.mxu0 0
      %951 = vmatprep.subr.bf16.mxu0 0
      %952 = vmatpush2.bf16.msra.mxu0 0
      %953 = vmatprep.subr.bf16.mxu0 0
      %954 = vmatpush2.bf16.msra.mxu0 0
      %955 = vmatprep.subr.bf16.mxu0 0
      %956 = vmatpush2.bf16.msra.mxu0 0
      %957 = vmatprep.subr.bf16.mxu0 0
      %958 = vmatpush2.bf16.msra.mxu0 0
      %959 = vmatprep.subr.bf16.mxu0 0
      %960 = vmatpush2.bf16.msra.mxu0 0
      %961 = vmatprep.subr.bf16.mxu0 0
      %962 = vmatpush2.bf16.msra.mxu0 0
      %963 = vmatprep.mubr.bf16.mxu0 0
      %964 = vmatmul.mubr.bf16.gmra.mxu0 %v926
      %v965 = vpop.f32.mrf.mxu0
      %v966 = vadd.f32 0.0, %v965
      %v967 = vpop.f32.mrf.mxu0
      %v968 = vpop.f32.mrf.mxu0
      %v969 = vadd.f32 0.0, %v968
      %v970 = vpop.f32.mrf.mxu0
      %971 = vmatprep.mubr.bf16.mxu0 0
      %972 = vmatmul.mubr.bf16.gmra.mxu0 %v929
      %v973 = vpop.f32.mrf.mxu0
      %v974 = vadd.f32 0.0, %v973
      %v975 = vpop.f32.mrf.mxu0
      %v976 = vpop.f32.mrf.mxu0
      %v977 = vpop.f32.mrf.mxu0
      %978 = vdwg.mxu0
      %v979 = vadd.f32 %v886, %v966
      %v980 = vadd.f32 %v887, %v969
      %v981 = vadd.f32 %v888, %v974
      %v982 = vld [vmem:[%s165] sm:$0x8]
      %v983 = vld [vmem:[%s1 + $0x100] sm:$0xf]
      %v984 = vld [vmem:[%s1 + $0x104] sm:$0xf]
      %v985 = vld [vmem:[%s1 + $0x108] sm:$0xf]
      %v986 = vld [vmem:[%s1 + $0x10c] sm:$0xf]
      %v987 = vld [vmem:[%s1 + $0x110] sm:$0xf]
      %v988 = vld [vmem:[%s1 + $0x114] sm:$0xf]
      %v989 = vld [vmem:[%s1 + $0x118] sm:$0xf]
      %v990 = vld [vmem:[%s1 + $0x11c] sm:$0xf]
      %v992 = vunpack.c.l.b16 %v982
      %v993 = vpack.c.b16 %v785, %v992
      %vm994 = vcmask 1044480
      %v995 = vrot.slane %v993, 3
      %v996 = vrot.slane %v789, 3
      %v997 = vsel %vm994, %v995, %v996
      %v1006 = vunpack.c.l.b16 %v983
      %v1007 = vunpack.c.l.b16 %v984
      %v1008 = vunpack.c.l.b16 %v985
      %v1009 = vunpack.c.l.b16 %v986
      %v1010 = vunpack.c.l.b16 %v987
      %v1011 = vunpack.c.l.b16 %v988
      %v1012 = vunpack.c.l.b16 %v989
      %v1013 = vunpack.c.l.b16 %v990
      %v1014 = vpack.c.b16 %v1007, %v1006
      %v1015 = vpack.c.b16 %v1009, %v1008
      %v1016 = vpack.c.b16 %v1011, %v1010
      %v1017 = vpack.c.b16 %v1013, %v1012
      %v1023 = vsel %vm227, %v997, 0
      %v1026 = vsel %vm227, %v996, 0
      %1028 = vmatprep.subr.bf16.mxu0 0
      %1029 = vmatpush1.bf16.msra.mxu0 0
      %1030 = vmatprep.subr.bf16.mxu0 0
      %1031 = vmatpush1.bf16.msra.mxu0 0
      %1032 = vmatprep.subr.bf16.mxu0 0
      %1033 = vmatpush1.bf16.msra.mxu0 0
      %1034 = vmatprep.subr.bf16.mxu0 0
      %1035 = vmatpush1.bf16.msra.mxu0 0
      %1036 = vmatprep.subr.bf16.mxu0 0
      %1037 = vmatpush1.bf16.msra.mxu0 %v1017
      %1038 = vmatprep.subr.bf16.mxu0 0
      %1039 = vmatpush1.bf16.msra.mxu0 %v1016
      %1040 = vmatprep.subr.bf16.mxu0 0
      %1041 = vmatpush1.bf16.msra.mxu0 %v1015
      %1042 = vmatprep.subr.bf16.mxu0 0
      %1043 = vmatpush1.bf16.msra.mxu0 %v1014
      %1044 = vmatprep.subr.bf16.mxu0 0
      %1045 = vmatpush2.bf16.msra.mxu0 0
      %1046 = vmatprep.subr.bf16.mxu0 0
      %1047 = vmatpush2.bf16.msra.mxu0 0
      %1048 = vmatprep.subr.bf16.mxu0 0
      %1049 = vmatpush2.bf16.msra.mxu0 0
      %1050 = vmatprep.subr.bf16.mxu0 0
      %1051 = vmatpush2.bf16.msra.mxu0 0
      %1052 = vmatprep.subr.bf16.mxu0 0
      %1053 = vmatpush2.bf16.msra.mxu0 0
      %1054 = vmatprep.subr.bf16.mxu0 0
      %1055 = vmatpush2.bf16.msra.mxu0 0
      %1056 = vmatprep.subr.bf16.mxu0 0
      %1057 = vmatpush2.bf16.msra.mxu0 0
      %1058 = vmatprep.subr.bf16.mxu0 0
      %1059 = vmatpush2.bf16.msra.mxu0 0
      %1060 = vmatprep.mubr.bf16.mxu0 0
      %1061 = vmatmul.mubr.bf16.gmra.mxu0 %v1023
      %v1062 = vpop.f32.mrf.mxu0
      %v1063 = vadd.f32 0.0, %v1062
      %v1064 = vpop.f32.mrf.mxu0
      %v1065 = vpop.f32.mrf.mxu0
      %v1066 = vadd.f32 0.0, %v1065
      %v1067 = vpop.f32.mrf.mxu0
      %1068 = vmatprep.mubr.bf16.mxu0 0
      %1069 = vmatmul.mubr.bf16.gmra.mxu0 %v1026
      %v1070 = vpop.f32.mrf.mxu0
      %v1071 = vadd.f32 0.0, %v1070
      %v1072 = vpop.f32.mrf.mxu0
      %v1073 = vpop.f32.mrf.mxu0
      %v1074 = vpop.f32.mrf.mxu0
      %1075 = vdwg.mxu0
      %v1076 = vadd.f32 %v979, %v1063
      %v1077 = vadd.f32 %v980, %v1066
      %v1078 = vadd.f32 %v981, %v1071
      %v1079 = vld [vmem:[%s2] sm:$0x1]
      %v1081 = vlaneseq
      %v1082 = vshrl.u32 %v1081, 7
      %v1083 = vsub.s32 0, %v1082
      %v1084 = vrot.slane %v1079, %v1083
      %v1086 = vadd.f32 %v1076, %v1084
      %v1087 = vadd.f32 %v1077, %v1084
      %v1088 = vadd.f32 %v1078, %v1084
      %vm1089 = vcmp.gt.f32.partialorder %v1086, 0.0
      %vm1090 = vcmp.gt.f32.partialorder %v1087, 0.0
      %vm1091 = vcmp.gt.f32.partialorder %v1088, 0.0
      %v1092 = vmul.f32 %v1086, 0.01
      %v1093 = vmul.f32 %v1087, 0.01
      %v1094 = vmul.f32 %v1088, 0.01
      %v1095 = vsel %vm1089, %v1086, %v1092
      %v1096 = vsel %vm1090, %v1087, %v1093
      %v1097 = vsel %vm1091, %v1088, %v1094
      %v1098 = vpack.c.bf16 %v1096, %v1095
      %v1099 = vpack.c.bf16 %v1097, %v1097
      %v1102 = vunpack.c.l.b16 %v1098
      %v1103 = vunpack.c.h.b16 %v1098
      %v1104 = vunpack.c.l.b16 %v1099
      %v1105 = vpack.c.b16 %v1102, %v1102
      %v1106 = vpack.c.b16 %v1103, %v1103
      %v1107 = vpack.c.b16 %v1104, %v1104
      %1111 = vst [vmem:[%s170] sm:$0xf] %v1105
      %1112 = vst [vmem:[%s170 + $0x4] sm:$0xf] %v1106
      %1113 = vst [vmem:[%s170 + $0x8] sm:$0x3] %v1107
      %p1114 = scmp.lt.s32.totalorder %s14, 1
      %s1115 = scalar_select %p1114, %s14, 1
      %s1116 = smul.addr %s1115, 3
      %s1117 = smul.addr %s1116, 4
      %s1118 = scalar_lea.vmem %s3, %s1117
      // Predicated region
      $region33: #{cnn_d_forward.5} parent=31 // pred_check
        %p1119 = pneg %p100
      $region34: #{cnn_d_forward.5} parent=31 // pred_check_branch
        %1121 = sbr.rel (%p1119) target = $region36
      $region35: #{cnn_d_forward.5} parent=31 // pred_region
        _
      $region36: #{cnn_d_forward.5} parent=31 // pred_fallthru
        _
    $region32: #{cnn_d_forward.5} parent=5 // pred_fallthru
      _
    %p1122 = scmp.le.s32.totalorder 2, %s9
    // Predicated region
    $region37: #{cnn_d_forward.5} parent=5 // pred_check
      %p1123 = pneg %p1122
    $region38: #{cnn_d_forward.5} parent=5 // pred_check_branch
      %1125 = sbr.rel (%p1123) target = $region40
    $region39: #{cnn_d_forward.5} parent=5 // pred_region
      %s1126 = ssub.s32 %s9, 2
      // Predicated region
      $region41: #{cnn_d_forward.5} parent=39 // pred_check
        %p1127 = pneg %p106
      $region42: #{cnn_d_forward.5} parent=39 // pred_check_branch
        %1129 = sbr.rel (%p1127) target = $region44
      $region43: #{cnn_d_forward.5} parent=39 // pred_region
        %p1130 = scmp.lt.s32.totalorder %s15, 1
        %s1131 = scalar_select %p1130, %s15, 1
        %s1132 = smul.addr %s1131, 3
        %s1133 = smul.addr %s1132, 4
        %s1134 = scalar_lea.vmem %s3, %s1133
      $region44: #{cnn_d_forward.5} parent=39 // pred_fallthru
        _
    $region40: #{cnn_d_forward.5} parent=5 // pred_fallthru
      _
  $region6: #{cnn_d_forward.5} parent=0 // loop_footer
    %s13 = sadd.s32 1, %s9
  $region7: #{cnn_d_forward.5} parent=0 // loop_footer_branch
    %8 = sbr.rel target = $region3
  $region8: #{cnn_d_forward.5} parent=0 // loop_exit
    _

// kernel: squeeze.3
$region0: #{squeeze.3}
  %s0 = inlined_call_operand.vmem [shape: f32[2,1,16,16], index: 0, kind: input, shape index: {}]
  %s1 = inlined_call_operand.vmem [shape: f32[2,2,8,2,8], index: 1, kind: output, shape index: {}]
  $region1: #{squeeze.3} parent=0
    #allocation0 [shape = 'u8[131072]{0}', space=vmem, size = 0x20000, scoped, tag = 'scoped mem for output reshape']
    %v2 = vld [vmem:[%s0] sm:$0xff]
    %vm3 = vcmask 64512
    %4 = vst.msk [vmem:[#allocation0] ss:$8 sm:$0xf] %vm3, %v2
    %5 = vst.msk [vmem:[#allocation0] ss:$8 sm:$0xf0] %vm3, %v2
    %s6 = scalar_lea.vmem %s0, 8
    %v7 = vld [vmem:[%s6] sm:$0xff]
    %vm8 = vcmask 64512
    %s9 = scalar_lea.vmem [#allocation0], 64
    %10 = vst.msk [vmem:[%s9] ss:$8 sm:$0xf] %vm8, %v7
    %s11 = scalar_lea.vmem [#allocation0], 64
    %12 = vst.msk [vmem:[%s11] ss:$8 sm:$0xf0] %vm8, %v7
    %s13 = scalar_lea.vmem %s0, 16
    %v14 = vld [vmem:[%s13] sm:$0xff]
    %vm15 = vcmask 64512
    %s16 = scalar_lea.vmem [#allocation0], 128
    %17 = vst.msk [vmem:[%s16] ss:$8 sm:$0xf] %vm15, %v14
    %s18 = scalar_lea.vmem [#allocation0], 128
    %19 = vst.msk [vmem:[%s18] ss:$8 sm:$0xf0] %vm15, %v14
    %s20 = scalar_lea.vmem %s0, 24
    %v21 = vld [vmem:[%s20] sm:$0xff]
    %vm22 = vcmask 64512
    %s23 = scalar_lea.vmem [#allocation0], 192
    %24 = vst.msk [vmem:[%s23] ss:$8 sm:$0xf] %vm22, %v21
    %s25 = scalar_lea.vmem [#allocation0], 192
    %26 = vst.msk [vmem:[%s25] ss:$8 sm:$0xf0] %vm22, %v21
    %v27 = vld [vmem:[%s0] sm:$0xff]
    %28 = vrot.lane.b32.xlu0 %v27, 120
    %v29 = vpop.permute.xlu0 %28
    %vm30 = vcmask 64512
    %s31 = scalar_lea.vmem [#allocation0], 1
    %32 = vst.msk [vmem:[%s31] ss:$8 sm:$0xf] %vm30, %v29
    %s33 = scalar_lea.vmem [#allocation0], 1
    %34 = vst.msk [vmem:[%s33] ss:$8 sm:$0xf0] %vm30, %v29
    %s35 = scalar_lea.vmem %s0, 8
    %v36 = vld [vmem:[%s35] sm:$0xff]
    %37 = vrot.lane.b32.xlu0 %v36, 120
    %v38 = vpop.permute.xlu0 %37
    %vm39 = vcmask 64512
    %s40 = scalar_lea.vmem [#allocation0], 65
    %41 = vst.msk [vmem:[%s40] ss:$8 sm:$0xf] %vm39, %v38
    %s42 = scalar_lea.vmem [#allocation0], 65
    %43 = vst.msk [vmem:[%s42] ss:$8 sm:$0xf0] %vm39, %v38
    %s44 = scalar_lea.vmem %s0, 16
    %v45 = vld [vmem:[%s44] sm:$0xff]
    %46 = vrot.lane.b32.xlu0 %v45, 120
    %v47 = vpop.permute.xlu0 %46
    %vm48 = vcmask 64512
    %s49 = scalar_lea.vmem [#allocation0], 129
    %50 = vst.msk [vmem:[%s49] ss:$8 sm:$0xf] %vm48, %v47
    %s51 = scalar_lea.vmem [#allocation0], 129
    %52 = vst.msk [vmem:[%s51] ss:$8 sm:$0xf0] %vm48, %v47
    %s53 = scalar_lea.vmem %s0, 24
    %v54 = vld [vmem:[%s53] sm:$0xff]
    %55 = vrot.lane.b32.xlu0 %v54, 120
    %v56 = vpop.permute.xlu0 %55
    %vm57 = vcmask 64512
    %s58 = scalar_lea.vmem [#allocation0], 193
    %59 = vst.msk [vmem:[%s58] ss:$8 sm:$0xf] %vm57, %v56
    %s60 = scalar_lea.vmem [#allocation0], 193
    %61 = vst.msk [vmem:[%s60] ss:$8 sm:$0xf0] %vm57, %v56
    %s63 = sshll.u32 1, 2
    %s64 = ssub.s32 %s63, 1
    %v66 = vld [vmem:[#allocation0] sm:%s64]
    %s67 = sshll.u32 1, 2
    %s68 = ssub.s32 %s67, 1
    %69 = vst [vmem:[%s1] sm:%s68] %v66
    %s70 = scalar_lea.vmem [#allocation0], 8
    %v71 = vld [vmem:[%s70] sm:%s64]
    %s72 = sshll.u32 1, 2
    %s73 = ssub.s32 %s72, 1
    %s74 = scalar_lea.vmem %s1, 2
    %75 = vst [vmem:[%s74] sm:%s73] %v71
    %s76 = scalar_lea.vmem [#allocation0], 16
    %v77 = vld [vmem:[%s76] sm:%s64]
    %s78 = sshll.u32 1, 2
    %s79 = ssub.s32 %s78, 1
    %s80 = smul.addr 2, 2
    %s81 = scalar_lea.vmem %s1, %s80
    %82 = vst [vmem:[%s81] sm:%s79] %v77
    %s83 = scalar_lea.vmem [#allocation0], 24
    %v84 = vld [vmem:[%s83] sm:%s64]
    %s85 = sshll.u32 1, 2
    %s86 = ssub.s32 %s85, 1
    %s87 = smul.addr 2, 3
    %s88 = scalar_lea.vmem %s1, %s87
    %89 = vst [vmem:[%s88] sm:%s86] %v84
    %s90 = scalar_lea.vmem [#allocation0], 32
    %v91 = vld [vmem:[%s90] sm:%s64]
    %s92 = sshll.u32 1, 2
    %s93 = ssub.s32 %s92, 1
    %s94 = smul.addr 2, 4
    %s95 = scalar_lea.vmem %s1, %s94
    %96 = vst [vmem:[%s95] sm:%s93] %v91
    %s97 = scalar_lea.vmem [#allocation0], 40
    %v98 = vld [vmem:[%s97] sm:%s64]
    %s99 = sshll.u32 1, 2
    %s100 = ssub.s32 %s99, 1
    %s101 = smul.addr 2, 5
    %s102 = scalar_lea.vmem %s1, %s101
    %103 = vst [vmem:[%s102] sm:%s100] %v98
    %s104 = scalar_lea.vmem [#allocation0], 48
    %v105 = vld [vmem:[%s104] sm:%s64]
    %s106 = sshll.u32 1, 2
    %s107 = ssub.s32 %s106, 1
    %s108 = smul.addr 2, 6
    %s109 = scalar_lea.vmem %s1, %s108
    %110 = vst [vmem:[%s109] sm:%s107] %v105
    %s111 = scalar_lea.vmem [#allocation0], 56
    %v112 = vld [vmem:[%s111] sm:%s64]
    %s113 = sshll.u32 1, 2
    %s114 = ssub.s32 %s113, 1
    %s115 = smul.addr 2, 7
    %s116 = scalar_lea.vmem %s1, %s115
    %117 = vst [vmem:[%s116] sm:%s114] %v112
    %s118 = scalar_lea.vmem [#allocation0], 64
    %v119 = vld [vmem:[%s118] sm:%s64]
    %s120 = sshll.u32 1, 2
    %s121 = ssub.s32 %s120, 1
    %s122 = smul.addr 2, 8
    %s123 = scalar_lea.vmem %s1, %s122
    %124 = vst [vmem:[%s123] sm:%s121] %v119
    %s125 = scalar_lea.vmem [#allocation0], 72
    %v126 = vld [vmem:[%s125] sm:%s64]
    %s127 = sshll.u32 1, 2
    %s128 = ssub.s32 %s127, 1
    %s129 = smul.addr 2, 9
    %s130 = scalar_lea.vmem %s1, %s129
    %131 = vst [vmem:[%s130] sm:%s128] %v126
    %s132 = scalar_lea.vmem [#allocation0], 80
    %v133 = vld [vmem:[%s132] sm:%s64]
    %s134 = sshll.u32 1, 2
    %s135 = ssub.s32 %s134, 1
    %s136 = smul.addr 2, 10
    %s137 = scalar_lea.vmem %s1, %s136
    %138 = vst [vmem:[%s137] sm:%s135] %v133
    %s139 = scalar_lea.vmem [#allocation0], 88
    %v140 = vld [vmem:[%s139] sm:%s64]
    %s141 = sshll.u32 1, 2
    %s142 = ssub.s32 %s141, 1
    %s143 = smul.addr 2, 11
    %s144 = scalar_lea.vmem %s1, %s143
    %145 = vst [vmem:[%s144] sm:%s142] %v140
    %s146 = scalar_lea.vmem [#allocation0], 96
    %v147 = vld [vmem:[%s146] sm:%s64]
    %s148 = sshll.u32 1, 2
    %s149 = ssub.s32 %s148, 1
    %s150 = smul.addr 2, 12
    %s151 = scalar_lea.vmem %s1, %s150
    %152 = vst [vmem:[%s151] sm:%s149] %v147
    %s153 = scalar_lea.vmem [#allocation0], 104
    %v154 = vld [vmem:[%s153] sm:%s64]
    %s155 = sshll.u32 1, 2
    %s156 = ssub.s32 %s155, 1
    %s157 = smul.addr 2, 13
    %s158 = scalar_lea.vmem %s1, %s157
    %159 = vst [vmem:[%s158] sm:%s156] %v154
    %s160 = scalar_lea.vmem [#allocation0], 112
    %v161 = vld [vmem:[%s160] sm:%s64]
    %s162 = sshll.u32 1, 2
    %s163 = ssub.s32 %s162, 1
    %s164 = smul.addr 2, 14
    %s165 = scalar_lea.vmem %s1, %s164
    %166 = vst [vmem:[%s165] sm:%s163] %v161
    %s167 = scalar_lea.vmem [#allocation0], 120
    %v168 = vld [vmem:[%s167] sm:%s64]
    %s169 = sshll.u32 1, 2
    %s170 = ssub.s32 %s169, 1
    %s171 = smul.addr 2, 15
    %s172 = scalar_lea.vmem %s1, %s171
    %173 = vst [vmem:[%s172] sm:%s170] %v168
    %s174 = scalar_lea.vmem [#allocation0], 128
    %v175 = vld [vmem:[%s174] sm:%s64]
    %s176 = sshll.u32 1, 2
    %s177 = ssub.s32 %s176, 1
    %s178 = smul.addr 2, 16
    %s179 = scalar_lea.vmem %s1, %s178
    %180 = vst [vmem:[%s179] sm:%s177] %v175
    %s181 = scalar_lea.vmem [#allocation0], 136
    %v182 = vld [vmem:[%s181] sm:%s64]
    %s183 = sshll.u32 1, 2
    %s184 = ssub.s32 %s183, 1
    %s185 = smul.addr 2, 17
    %s186 = scalar_lea.vmem %s1, %s185
    %187 = vst [vmem:[%s186] sm:%s184] %v182
    %s188 = scalar_lea.vmem [#allocation0], 144
    %v189 = vld [vmem:[%s188] sm:%s64]
    %s190 = sshll.u32 1, 2
    %s191 = ssub.s32 %s190, 1
    %s192 = smul.addr 2, 18
    %s193 = scalar_lea.vmem %s1, %s192
    %194 = vst [vmem:[%s193] sm:%s191] %v189
    %s195 = scalar_lea.vmem [#allocation0], 152
    %v196 = vld [vmem:[%s195] sm:%s64]
    %s197 = sshll.u32 1, 2
    %s198 = ssub.s32 %s197, 1
    %s199 = smul.addr 2, 19
    %s200 = scalar_lea.vmem %s1, %s199
    %201 = vst [vmem:[%s200] sm:%s198] %v196
    %s202 = scalar_lea.vmem [#allocation0], 160
    %v203 = vld [vmem:[%s202] sm:%s64]
    %s204 = sshll.u32 1, 2
    %s205 = ssub.s32 %s204, 1
    %s206 = smul.addr 2, 20
    %s207 = scalar_lea.vmem %s1, %s206
    %208 = vst [vmem:[%s207] sm:%s205] %v203
    %s209 = scalar_lea.vmem [#allocation0], 168
    %v210 = vld [vmem:[%s209] sm:%s64]
    %s211 = sshll.u32 1, 2
    %s212 = ssub.s32 %s211, 1
    %s213 = smul.addr 2, 21
    %s214 = scalar_lea.vmem %s1, %s213
    %215 = vst [vmem:[%s214] sm:%s212] %v210
    %s216 = scalar_lea.vmem [#allocation0], 176
    %v217 = vld [vmem:[%s216] sm:%s64]
    %s218 = sshll.u32 1, 2
    %s219 = ssub.s32 %s218, 1
    %s220 = smul.addr 2, 22
    %s221 = scalar_lea.vmem %s1, %s220
    %222 = vst [vmem:[%s221] sm:%s219] %v217
    %s223 = scalar_lea.vmem [#allocation0], 184
    %v224 = vld [vmem:[%s223] sm:%s64]
    %s225 = sshll.u32 1, 2
    %s226 = ssub.s32 %s225, 1
    %s227 = smul.addr 2, 23
    %s228 = scalar_lea.vmem %s1, %s227
    %229 = vst [vmem:[%s228] sm:%s226] %v224
    %s230 = scalar_lea.vmem [#allocation0], 192
    %v231 = vld [vmem:[%s230] sm:%s64]
    %s232 = sshll.u32 1, 2
    %s233 = ssub.s32 %s232, 1
    %s234 = smul.addr 2, 24
    %s235 = scalar_lea.vmem %s1, %s234
    %236 = vst [vmem:[%s235] sm:%s233] %v231
    %s237 = scalar_lea.vmem [#allocation0], 200
    %v238 = vld [vmem:[%s237] sm:%s64]
    %s239 = sshll.u32 1, 2
    %s240 = ssub.s32 %s239, 1
    %s241 = smul.addr 2, 25
    %s242 = scalar_lea.vmem %s1, %s241
    %243 = vst [vmem:[%s242] sm:%s240] %v238
    %s244 = scalar_lea.vmem [#allocation0], 208
    %v245 = vld [vmem:[%s244] sm:%s64]
    %s246 = sshll.u32 1, 2
    %s247 = ssub.s32 %s246, 1
    %s248 = smul.addr 2, 26
    %s249 = scalar_lea.vmem %s1, %s248
    %250 = vst [vmem:[%s249] sm:%s247] %v245
    %s251 = scalar_lea.vmem [#allocation0], 216
    %v252 = vld [vmem:[%s251] sm:%s64]
    %s253 = sshll.u32 1, 2
    %s254 = ssub.s32 %s253, 1
    %s255 = smul.addr 2, 27
    %s256 = scalar_lea.vmem %s1, %s255
    %257 = vst [vmem:[%s256] sm:%s254] %v252
    %s258 = scalar_lea.vmem [#allocation0], 224
    %v259 = vld [vmem:[%s258] sm:%s64]
    %s260 = sshll.u32 1, 2
    %s261 = ssub.s32 %s260, 1
    %s262 = smul.addr 2, 28
    %s263 = scalar_lea.vmem %s1, %s262
    %264 = vst [vmem:[%s263] sm:%s261] %v259
    %s265 = scalar_lea.vmem [#allocation0], 232
    %v266 = vld [vmem:[%s265] sm:%s64]
    %s267 = sshll.u32 1, 2
    %s268 = ssub.s32 %s267, 1
    %s269 = smul.addr 2, 29
    %s270 = scalar_lea.vmem %s1, %s269
    %271 = vst [vmem:[%s270] sm:%s268] %v266
    %s272 = scalar_lea.vmem [#allocation0], 240
    %v273 = vld [vmem:[%s272] sm:%s64]
    %s274 = sshll.u32 1, 2
    %s275 = ssub.s32 %s274, 1
    %s276 = smul.addr 2, 30
    %s277 = scalar_lea.vmem %s1, %s276
    %278 = vst [vmem:[%s277] sm:%s275] %v273
    %s279 = scalar_lea.vmem [#allocation0], 248
    %v280 = vld [vmem:[%s279] sm:%s64]
    %s281 = sshll.u32 1, 2
    %s282 = ssub.s32 %s281, 1
    %s283 = smul.addr 2, 31
    %s284 = scalar_lea.vmem %s1, %s283
    %285 = vst [vmem:[%s284] sm:%s282] %v280

// kernel: cnn_d_forward.6
$region0: #{cnn_d_forward.6}
  #allocation0 [shape = 'u32[]', space=smem, size = 0x4, offset = 0x4, fixed_abs, tag = 'smem constant byte address 0x4 - core index']
  #allocation1 [shape = 'u32[144,128]{1,0:T(1,128)}', space=vmem, size = 0x12000, scoped, tag = 'internal scratch']
  %s0 = inlined_call_operand.vmem [shape: bf16[2,16,512], index: 0, kind: input, shape index: {}]
  %s1 = inlined_call_operand.vmem [shape: bf16[1152,256], index: 1, kind: input, shape index: {}]
  %s2 = inlined_call_operand.vmem [shape: f32[1,256], index: 2, kind: input, shape index: {}]
  %s3 = inlined_call_operand.vmem [shape: bf16[2,6,256], index: 3, kind: output, shape index: {}]
  %s4 = sld [smem:[#allocation0]]
  $region45: #{cnn_d_forward.6} parent=0
    _
  %s6 = ssub.s32 1, %s4
  %s7 = scalar_select 0, %s6, %s4
  loop: start=0, step=1, limit=4
  $region2: #{cnn_d_forward.6} parent=0 // loop_pre_header
    _
  $region3: #{cnn_d_forward.6} parent=0 // loop_header
    %s9 = sphi 0, %s13
    %p10 = scmp.ge.s32.totalorder %s9, 4
    %s19 = sphi 0, %s21
    %s22 = sphi 0, %s19
    %s23 = sphi 0, %s22
    %s39 = sphi 0, %s23
    %s43 = sphi 0, %s43
    %s45 = sphi 0, %s43
    %s46 = sphi 0, %s45
    %s60 = sphi 0, %s46
    %s64 = sphi 0, %s64
    %s66 = sphi 0, %s64
    %s67 = sphi 0, %s66
    %s81 = sphi 0, %s67
    %s87 = sphi 0, %s89
    %s90 = sphi 0, %s87
    %s91 = sphi 0, %s90
    %s107 = sphi 0, %s91
  $region4: #{cnn_d_forward.6} parent=0 // loop_header_branch
    %12 = sbr.rel (%p10) target = $region8
  $region5: #{cnn_d_forward.6} parent=0 // loop_body
    %s14 = ssub.s32 %s9, 1
    %s15 = ssub.s32 %s9, 2
    %s16 = sadd.s32 %s9, 1
    %s17 = ssub.s32 %s9, %s16
    %p18 = scmp.eq.s32.totalorder %s17, 0
    %s20 = sadd.s32 %s19, 1
    %s21 = scalar_select %p18, %s19, %s20
    %p24 = pneg %p18
    %p25 = scmp.eq.s32.totalorder %s9, 1
    %p26 = por %p24, %p25
    %p27 = scmp.ne.s32.totalorder %s19, %s22
    %p28 = scmp.eq.s32.totalorder %s9, 0
    %p29 = por %p27, %p28
    %p30 = scmp.ne.s32.totalorder %s19, %s22
    %p31 = scmp.eq.s32.totalorder %s14, 1
    %p32 = por %p30, %p31
    %p33 = scmp.ne.s32.totalorder %s22, %s23
    %p34 = scmp.eq.s32.totalorder %s14, 0
    %p35 = por %p33, %p34
    %p36 = scmp.ne.s32.totalorder %s22, %s23
    %p37 = scmp.eq.s32.totalorder %s15, 1
    %p38 = por %p36, %p37
    %p40 = scmp.ne.s32.totalorder %s23, %s39
    %p41 = scmp.eq.s32.totalorder %s15, 0
    %p42 = por %p40, %p41
    %s44 = sadd.s32 %s43, 1
    %p47 = scmp.eq.s32.totalorder %s9, 1
    %p48 = scmp.ne.s32.totalorder %s43, %s45
    %p49 = scmp.eq.s32.totalorder %s9, 0
    %p50 = por %p48, %p49
    %p51 = scmp.ne.s32.totalorder %s43, %s45
    %p52 = scmp.eq.s32.totalorder %s14, 1
    %p53 = por %p51, %p52
    %p54 = scmp.ne.s32.totalorder %s45, %s46
    %p55 = scmp.eq.s32.totalorder %s14, 0
    %p56 = por %p54, %p55
    %p57 = scmp.ne.s32.totalorder %s45, %s46
    %p58 = scmp.eq.s32.totalorder %s15, 1
    %p59 = por %p57, %p58
    %p61 = scmp.ne.s32.totalorder %s46, %s60
    %p62 = scmp.eq.s32.totalorder %s15, 0
    %p63 = por %p61, %p62
    %s65 = sadd.s32 %s64, 1
    %p68 = scmp.eq.s32.totalorder %s9, 1
    %p69 = scmp.ne.s32.totalorder %s64, %s66
    %p70 = scmp.eq.s32.totalorder %s9, 0
    %p71 = por %p69, %p70
    %p72 = scmp.ne.s32.totalorder %s64, %s66
    %p73 = scmp.eq.s32.totalorder %s14, 1
    %p74 = por %p72, %p73
    %p75 = scmp.ne.s32.totalorder %s66, %s67
    %p76 = scmp.eq.s32.totalorder %s14, 0
    %p77 = por %p75, %p76
    %p78 = scmp.ne.s32.totalorder %s66, %s67
    %p79 = scmp.eq.s32.totalorder %s15, 1
    %p80 = por %p78, %p79
    %p82 = scmp.ne.s32.totalorder %s67, %s81
    %p83 = scmp.eq.s32.totalorder %s15, 0
    %p84 = por %p82, %p83
    %s85 = ssub.s32 %s9, %s16
    %p86 = scmp.eq.s32.totalorder %s85, 0
    %s88 = sadd.s32 %s87, 1
    %s89 = scalar_select %p86, %s87, %s88
    %p92 = pneg %p86
    %p93 = scmp.eq.s32.totalorder %s9, 1
    %p94 = por %p92, %p93
    %p95 = scmp.ne.s32.totalorder %s87, %s90
    %p96 = scmp.eq.s32.totalorder %s9, 0
    %p97 = por %p95, %p96
    %p98 = scmp.ne.s32.totalorder %s87, %s90
    %p99 = scmp.eq.s32.totalorder %s14, 1
    %p100 = por %p98, %p99
    %p101 = scmp.ne.s32.totalorder %s90, %s91
    %p102 = scmp.eq.s32.totalorder %s14, 0
    %p103 = por %p101, %p102
    %p104 = scmp.ne.s32.totalorder %s90, %s91
    %p105 = scmp.eq.s32.totalorder %s15, 1
    %p106 = por %p104, %p105
    %p108 = scmp.ne.s32.totalorder %s91, %s107
    %p109 = scmp.eq.s32.totalorder %s15, 0
    %p110 = por %p108, %p109
    %p111 = scmp.le.s32.totalorder 1, %s9
    %p112 = scmp.lt.s32.totalorder %s9, 3
    %p113 = pnand %p111, %p112
    %p114 = pneg %p113
    // Predicated region
    $region9: #{cnn_d_forward.6} parent=5 // pred_check
      _
    $region10: #{cnn_d_forward.6} parent=5 // pred_check_branch
      %116 = sbr.rel (%p113) target = $region12
    $region11: #{cnn_d_forward.6} parent=5 // pred_region
      %s117 = ssub.s32 %s9, 1
      // Predicated region
      $region13: #{cnn_d_forward.6} parent=11 // pred_check
        %p118 = pneg %p56
      $region14: #{cnn_d_forward.6} parent=11 // pred_check_branch
        %120 = sbr.rel (%p118) target = $region16
      $region15: #{cnn_d_forward.6} parent=11 // pred_region
        _
      $region16: #{cnn_d_forward.6} parent=11 // pred_fallthru
        _
      // Predicated region
      $region17: #{cnn_d_forward.6} parent=11 // pred_check
        %p121 = pneg %p77
      $region18: #{cnn_d_forward.6} parent=11 // pred_check_branch
        %123 = sbr.rel (%p121) target = $region20
      $region19: #{cnn_d_forward.6} parent=11 // pred_region
        _
      $region20: #{cnn_d_forward.6} parent=11 // pred_fallthru
        _
    $region12: #{cnn_d_forward.6} parent=5 // pred_fallthru
      _
    %p124 = scmp.lt.s32.totalorder %s9, 2
    // Predicated region
    $region21: #{cnn_d_forward.6} parent=5 // pred_check
      %p125 = pneg %p124
    $region22: #{cnn_d_forward.6} parent=5 // pred_check_branch
      %127 = sbr.rel (%p125) target = $region24
    $region23: #{cnn_d_forward.6} parent=5 // pred_region
      // Predicated region
      $region25: #{cnn_d_forward.6} parent=23 // pred_check
        %p128 = pneg %p29
      $region26: #{cnn_d_forward.6} parent=23 // pred_check_branch
        %130 = sbr.rel (%p128) target = $region28
      $region27: #{cnn_d_forward.6} parent=23 // pred_region
        %p131 = scmp.lt.s32.totalorder %s9, 1
        %s132 = scalar_select %p131, %s9, 1
        %s133 = smul.addr %s132, 8
        %s134 = smul.addr %s133, 4
        %s135 = scalar_lea.vmem %s0, %s134
      $region28: #{cnn_d_forward.6} parent=23 // pred_fallthru
        _
    $region24: #{cnn_d_forward.6} parent=5 // pred_fallthru
      _
    %p136 = scmp.le.s32.totalorder 1, %s9
    %p137 = scmp.lt.s32.totalorder %s9, 3
    %p138 = pnand %p136, %p137
    %p139 = pneg %p138
    // Predicated region
    $region29: #{cnn_d_forward.6} parent=5 // pred_check
      _
    $region30: #{cnn_d_forward.6} parent=5 // pred_check_branch
      %141 = sbr.rel (%p138) target = $region32
    $region31: #{cnn_d_forward.6} parent=5 // pred_region
      %s142 = ssub.s32 %s9, 1
      %p143 = scmp.lt.s32.totalorder %s14, 1
      %s144 = scalar_select %p143, %s14, 1
      %s145 = smul.addr %s144, 8
      %s146 = smul.addr %s145, 4
      %s147 = scalar_lea.vmem %s0, %s146
      %p148 = pneg %p35
      %p149 = pneg %p32
      %p150 = pneg %p56
      %p151 = pneg %p53
      %p152 = pneg %p77
      %p153 = pneg %p74
      %p154 = pneg %p103
      %p155 = pneg %p100
      %p156 = scmp.lt.s32.totalorder %s14, 1
      %s157 = scalar_select %p156, %s14, 1
      %s158 = smul.addr %s157, 2
      %s159 = smul.addr %s158, 4
      %s160 = scalar_lea.vmem %s3, %s159
      %p161 = scmp.lt.s32.totalorder %s14, 1
      %s162 = scalar_select %p161, %s14, 1
      %s163 = smul.addr %s162, 8
      %s164 = smul.addr %s163, 4
      %s165 = scalar_lea.vmem %s0, %s164
      %p166 = scmp.lt.s32.totalorder %s14, 1
      %s167 = scalar_select %p166, %s14, 1
      %s168 = smul.addr %s167, 2
      %s169 = smul.addr %s168, 4
      %s170 = scalar_lea.vmem %s3, %s169
      %v172 = vld [vmem:[%s165] sm:$0x7]
      %v173 = vld [vmem:[%s1] sm:$0xff]
      %v174 = vld [vmem:[%s1 + $0x8] sm:$0xff]
      %v175 = vld [vmem:[%s1 + $0x10] sm:$0xff]
      %v176 = vld [vmem:[%s1 + $0x18] sm:$0xff]
      %v177 = vld [vmem:[%s1 + $0x20] sm:$0xff]
      %v178 = vld [vmem:[%s1 + $0x28] sm:$0xff]
      %v179 = vld [vmem:[%s1 + $0x30] sm:$0xff]
      %v180 = vld [vmem:[%s1 + $0x38] sm:$0xff]
      %v181 = vld [vmem:[%s1 + $0x40] sm:$0xff]
      %v182 = vld [vmem:[%s1 + $0x48] sm:$0xff]
      %v183 = vld [vmem:[%s1 + $0x50] sm:$0xff]
      %v184 = vld [vmem:[%s1 + $0x58] sm:$0xff]
      %v185 = vld [vmem:[%s1 + $0x60] sm:$0xff]
      %v186 = vld [vmem:[%s1 + $0x68] sm:$0xff]
      %v187 = vld [vmem:[%s1 + $0x70] sm:$0xff]
      %v188 = vld [vmem:[%s1 + $0x78] sm:$0xff]
      %v189 = vld [vmem:[%s165 + $0x4] sm:$0x7]
      %v190 = vld [vmem:[%s1 + $0x80] sm:$0xff]
      %v191 = vld [vmem:[%s1 + $0x88] sm:$0xff]
      %v192 = vld [vmem:[%s1 + $0x90] sm:$0xff]
      %v193 = vld [vmem:[%s1 + $0x98] sm:$0xff]
      %v194 = vld [vmem:[%s1 + $0xa0] sm:$0xff]
      %v195 = vld [vmem:[%s1 + $0xa8] sm:$0xff]
      %v196 = vld [vmem:[%s1 + $0xb0] sm:$0xff]
      %v197 = vld [vmem:[%s1 + $0xb8] sm:$0xff]
      %v198 = vld [vmem:[%s1 + $0xc0] sm:$0xff]
      %v199 = vld [vmem:[%s1 + $0xc8] sm:$0xff]
      %v200 = vld [vmem:[%s1 + $0xd0] sm:$0xff]
      %v201 = vld [vmem:[%s1 + $0xd8] sm:$0xff]
      %v202 = vld [vmem:[%s1 + $0xe0] sm:$0xff]
      %v203 = vld [vmem:[%s1 + $0xe8] sm:$0xff]
      %v204 = vld [vmem:[%s1 + $0xf0] sm:$0xff]
      %v205 = vld [vmem:[%s1 + $0xf8] sm:$0xff]
      %v222 = vunpack.c.l.b16 %v190
      %v223 = vunpack.c.h.b16 %v190
      %v224 = vunpack.c.l.b16 %v191
      %v225 = vunpack.c.h.b16 %v191
      %v226 = vunpack.c.l.b16 %v192
      %v227 = vunpack.c.h.b16 %v192
      %v228 = vunpack.c.l.b16 %v193
      %v229 = vunpack.c.h.b16 %v193
      %v230 = vunpack.c.l.b16 %v194
      %v231 = vunpack.c.h.b16 %v194
      %v232 = vunpack.c.l.b16 %v195
      %v233 = vunpack.c.h.b16 %v195
      %v234 = vunpack.c.l.b16 %v196
      %v235 = vunpack.c.h.b16 %v196
      %v236 = vunpack.c.l.b16 %v197
      %v237 = vunpack.c.h.b16 %v197
      %v238 = vunpack.c.l.b16 %v198
      %v239 = vunpack.c.h.b16 %v198
      %v240 = vunpack.c.l.b16 %v199
      %v241 = vunpack.c.h.b16 %v199
      %v242 = vunpack.c.l.b16 %v200
      %v243 = vunpack.c.h.b16 %v200
      %v244 = vunpack.c.l.b16 %v201
      %v245 = vunpack.c.h.b16 %v201
      %v246 = vunpack.c.l.b16 %v202
      %v247 = vunpack.c.h.b16 %v202
      %v248 = vunpack.c.l.b16 %v203
      %v249 = vunpack.c.h.b16 %v203
      %v250 = vunpack.c.l.b16 %v204
      %v251 = vunpack.c.h.b16 %v204
      %v252 = vunpack.c.l.b16 %v205
      %v253 = vunpack.c.h.b16 %v205
      %v254 = vpack.c.b16 %v224, %v222
      %v255 = vpack.c.b16 %v225, %v223
      %v256 = vpack.c.b16 %v228, %v226
      %v257 = vpack.c.b16 %v229, %v227
      %v258 = vpack.c.b16 %v232, %v230
      %v259 = vpack.c.b16 %v233, %v231
      %v260 = vpack.c.b16 %v236, %v234
      %v261 = vpack.c.b16 %v237, %v235
      %v262 = vpack.c.b16 %v240, %v238
      %v263 = vpack.c.b16 %v241, %v239
      %v264 = vpack.c.b16 %v244, %v242
      %v265 = vpack.c.b16 %v245, %v243
      %v266 = vpack.c.b16 %v248, %v246
      %v267 = vpack.c.b16 %v249, %v247
      %v268 = vpack.c.b16 %v252, %v250
      %v269 = vpack.c.b16 %v253, %v251
      %286 = vmatprep.subr.bf16.mxu0 %v269
      %287 = vmatpush1.bf16.msra.mxu0 %v268
      %288 = vmatprep.subr.bf16.mxu0 %v267
      %289 = vmatpush1.bf16.msra.mxu0 %v266
      %290 = vmatprep.subr.bf16.mxu0 %v265
      %291 = vmatpush1.bf16.msra.mxu0 %v264
      %292 = vmatprep.subr.bf16.mxu0 %v263
      %293 = vmatpush1.bf16.msra.mxu0 %v262
      %294 = vmatprep.subr.bf16.mxu0 %v261
      %295 = vmatpush1.bf16.msra.mxu0 %v260
      %296 = vmatprep.subr.bf16.mxu0 %v259
      %297 = vmatpush1.bf16.msra.mxu0 %v258
      %298 = vmatprep.subr.bf16.mxu0 %v257
      %299 = vmatpush1.bf16.msra.mxu0 %v256
      %300 = vmatprep.subr.bf16.mxu0 %v255
      %301 = vmatpush1.bf16.msra.mxu0 %v254
      %302 = vmatprep.subr.bf16.mxu0 0
      %303 = vmatpush2.bf16.msra.mxu0 0
      %304 = vmatprep.subr.bf16.mxu0 0
      %305 = vmatpush2.bf16.msra.mxu0 0
      %306 = vmatprep.subr.bf16.mxu0 0
      %307 = vmatpush2.bf16.msra.mxu0 0
      %308 = vmatprep.subr.bf16.mxu0 0
      %309 = vmatpush2.bf16.msra.mxu0 0
      %310 = vmatprep.subr.bf16.mxu0 0
      %311 = vmatpush2.bf16.msra.mxu0 0
      %312 = vmatprep.subr.bf16.mxu0 0
      %313 = vmatpush2.bf16.msra.mxu0 0
      %314 = vmatprep.subr.bf16.mxu0 0
      %315 = vmatpush2.bf16.msra.mxu0 0
      %316 = vmatprep.subr.bf16.mxu0 0
      %317 = vmatpush2.bf16.msra.mxu0 0
      %318 = vmatprep.mubr.bf16.mxu0 0
      %319 = vmatmul.mubr.bf16.gmra.mxu0 %v189
      %v320 = vpop.f32.mrf.mxu0
      %v321 = vadd.f32 0.0, %v320
      %v322 = vpop.f32.mrf.mxu0
      %v323 = vadd.f32 0.0, %v322
      %v324 = vpop.f32.mrf.mxu0
      %v325 = vpop.f32.mrf.mxu0
      %326 = vdwg.mxu0
      %v343 = vunpack.c.l.b16 %v173
      %v344 = vunpack.c.h.b16 %v173
      %v345 = vunpack.c.l.b16 %v174
      %v346 = vunpack.c.h.b16 %v174
      %v347 = vunpack.c.l.b16 %v175
      %v348 = vunpack.c.h.b16 %v175
      %v349 = vunpack.c.l.b16 %v176
      %v350 = vunpack.c.h.b16 %v176
      %v351 = vunpack.c.l.b16 %v177
      %v352 = vunpack.c.h.b16 %v177
      %v353 = vunpack.c.l.b16 %v178
      %v354 = vunpack.c.h.b16 %v178
      %v355 = vunpack.c.l.b16 %v179
      %v356 = vunpack.c.h.b16 %v179
      %v357 = vunpack.c.l.b16 %v180
      %v358 = vunpack.c.h.b16 %v180
      %v359 = vunpack.c.l.b16 %v181
      %v360 = vunpack.c.h.b16 %v181
      %v361 = vunpack.c.l.b16 %v182
      %v362 = vunpack.c.h.b16 %v182
      %v363 = vunpack.c.l.b16 %v183
      %v364 = vunpack.c.h.b16 %v183
      %v365 = vunpack.c.l.b16 %v184
      %v366 = vunpack.c.h.b16 %v184
      %v367 = vunpack.c.l.b16 %v185
      %v368 = vunpack.c.h.b16 %v185
      %v369 = vunpack.c.l.b16 %v186
      %v370 = vunpack.c.h.b16 %v186
      %v371 = vunpack.c.l.b16 %v187
      %v372 = vunpack.c.h.b16 %v187
      %v373 = vunpack.c.l.b16 %v188
      %v374 = vunpack.c.h.b16 %v188
      %v375 = vpack.c.b16 %v345, %v343
      %v376 = vpack.c.b16 %v346, %v344
      %v377 = vpack.c.b16 %v349, %v347
      %v378 = vpack.c.b16 %v350, %v348
      %v379 = vpack.c.b16 %v353, %v351
      %v380 = vpack.c.b16 %v354, %v352
      %v381 = vpack.c.b16 %v357, %v355
      %v382 = vpack.c.b16 %v358, %v356
      %v383 = vpack.c.b16 %v361, %v359
      %v384 = vpack.c.b16 %v362, %v360
      %v385 = vpack.c.b16 %v365, %v363
      %v386 = vpack.c.b16 %v366, %v364
      %v387 = vpack.c.b16 %v369, %v367
      %v388 = vpack.c.b16 %v370, %v368
      %v389 = vpack.c.b16 %v373, %v371
      %v390 = vpack.c.b16 %v374, %v372
      %407 = vmatprep.subr.bf16.mxu0 %v390
      %408 = vmatpush1.bf16.msra.mxu0 %v389
      %409 = vmatprep.subr.bf16.mxu0 %v388
      %410 = vmatpush1.bf16.msra.mxu0 %v387
      %411 = vmatprep.subr.bf16.mxu0 %v386
      %412 = vmatpush1.bf16.msra.mxu0 %v385
      %413 = vmatprep.subr.bf16.mxu0 %v384
      %414 = vmatpush1.bf16.msra.mxu0 %v383
      %415 = vmatprep.subr.bf16.mxu0 %v382
      %416 = vmatpush1.bf16.msra.mxu0 %v381
      %417 = vmatprep.subr.bf16.mxu0 %v380
      %418 = vmatpush1.bf16.msra.mxu0 %v379
      %419 = vmatprep.subr.bf16.mxu0 %v378
      %420 = vmatpush1.bf16.msra.mxu0 %v377
      %421 = vmatprep.subr.bf16.mxu0 %v376
      %422 = vmatpush1.bf16.msra.mxu0 %v375
      %423 = vmatprep.subr.bf16.mxu0 0
      %424 = vmatpush2.bf16.msra.mxu0 0
      %425 = vmatprep.subr.bf16.mxu0 0
      %426 = vmatpush2.bf16.msra.mxu0 0
      %427 = vmatprep.subr.bf16.mxu0 0
      %428 = vmatpush2.bf16.msra.mxu0 0
      %429 = vmatprep.subr.bf16.mxu0 0
      %430 = vmatpush2.bf16.msra.mxu0 0
      %431 = vmatprep.subr.bf16.mxu0 0
      %432 = vmatpush2.bf16.msra.mxu0 0
      %433 = vmatprep.subr.bf16.mxu0 0
      %434 = vmatpush2.bf16.msra.mxu0 0
      %435 = vmatprep.subr.bf16.mxu0 0
      %436 = vmatpush2.bf16.msra.mxu0 0
      %437 = vmatprep.subr.bf16.mxu0 0
      %438 = vmatpush2.bf16.msra.mxu0 0
      %439 = vmatprep.mubr.bf16.mxu0 0
      %440 = vmatmul.mubr.bf16.gmra.mxu0 %v172
      %v441 = vpop.f32.mrf.mxu0
      %v442 = vadd.f32 %v321, %v441
      %v443 = vpop.f32.mrf.mxu0
      %v444 = vadd.f32 %v323, %v443
      %v445 = vpop.f32.mrf.mxu0
      %v446 = vpop.f32.mrf.mxu0
      %447 = vdwg.mxu0
      %v448 = vld [vmem:[%s165] sm:$0xf]
      %v449 = vld [vmem:[%s1 + $0x100] sm:$0xff]
      %v450 = vld [vmem:[%s1 + $0x108] sm:$0xff]
      %v451 = vld [vmem:[%s1 + $0x110] sm:$0xff]
      %v452 = vld [vmem:[%s1 + $0x118] sm:$0xff]
      %v453 = vld [vmem:[%s1 + $0x120] sm:$0xff]
      %v454 = vld [vmem:[%s1 + $0x128] sm:$0xff]
      %v455 = vld [vmem:[%s1 + $0x130] sm:$0xff]
      %v456 = vld [vmem:[%s1 + $0x138] sm:$0xff]
      %v457 = vld [vmem:[%s1 + $0x140] sm:$0xff]
      %v458 = vld [vmem:[%s1 + $0x148] sm:$0xff]
      %v459 = vld [vmem:[%s1 + $0x150] sm:$0xff]
      %v460 = vld [vmem:[%s1 + $0x158] sm:$0xff]
      %v461 = vld [vmem:[%s1 + $0x160] sm:$0xff]
      %v462 = vld [vmem:[%s1 + $0x168] sm:$0xff]
      %v463 = vld [vmem:[%s1 + $0x170] sm:$0xff]
      %v464 = vld [vmem:[%s1 + $0x178] sm:$0xff]
      %v466 = vunpack.c.l.b16 %v448
      %v467 = vpack.c.b16 %v466, %v466
      %v469 = vshrl.u32 %v467, 16
      %v471 = vshll.u32 %v467, 16
      %v473 = vrot.slane %v471, 1
      %v474 = vor.u32 %v469, %v473
      %v492 = vunpack.c.l.b16 %v449
      %v493 = vunpack.c.h.b16 %v449
      %v494 = vunpack.c.l.b16 %v450
      %v495 = vunpack.c.h.b16 %v450
      %v496 = vunpack.c.l.b16 %v451
      %v497 = vunpack.c.h.b16 %v451
      %v498 = vunpack.c.l.b16 %v452
      %v499 = vunpack.c.h.b16 %v452
      %v500 = vunpack.c.l.b16 %v453
      %v501 = vunpack.c.h.b16 %v453
      %v502 = vunpack.c.l.b16 %v454
      %v503 = vunpack.c.h.b16 %v454
      %v504 = vunpack.c.l.b16 %v455
      %v505 = vunpack.c.h.b16 %v455
      %v506 = vunpack.c.l.b16 %v456
      %v507 = vunpack.c.h.b16 %v456
      %v508 = vunpack.c.l.b16 %v457
      %v509 = vunpack.c.h.b16 %v457
      %v510 = vunpack.c.l.b16 %v458
      %v511 = vunpack.c.h.b16 %v458
      %v512 = vunpack.c.l.b16 %v459
      %v513 = vunpack.c.h.b16 %v459
      %v514 = vunpack.c.l.b16 %v460
      %v515 = vunpack.c.h.b16 %v460
      %v516 = vunpack.c.l.b16 %v461
      %v517 = vunpack.c.h.b16 %v461
      %v518 = vunpack.c.l.b16 %v462
      %v519 = vunpack.c.h.b16 %v462
      %v520 = vunpack.c.l.b16 %v463
      %v521 = vunpack.c.h.b16 %v463
      %v522 = vunpack.c.l.b16 %v464
      %v523 = vunpack.c.h.b16 %v464
      %v524 = vpack.c.b16 %v494, %v492
      %v525 = vpack.c.b16 %v495, %v493
      %v526 = vpack.c.b16 %v498, %v496
      %v527 = vpack.c.b16 %v499, %v497
      %v528 = vpack.c.b16 %v502, %v500
      %v529 = vpack.c.b16 %v503, %v501
      %v530 = vpack.c.b16 %v506, %v504
      %v531 = vpack.c.b16 %v507, %v505
      %v532 = vpack.c.b16 %v510, %v508
      %v533 = vpack.c.b16 %v511, %v509
      %v534 = vpack.c.b16 %v514, %v512
      %v535 = vpack.c.b16 %v515, %v513
      %v536 = vpack.c.b16 %v518, %v516
      %v537 = vpack.c.b16 %v519, %v517
      %v538 = vpack.c.b16 %v522, %v520
      %v539 = vpack.c.b16 %v523, %v521
      %556 = vmatprep.subr.bf16.mxu0 %v539
      %557 = vmatpush1.bf16.msra.mxu0 %v538
      %558 = vmatprep.subr.bf16.mxu0 %v537
      %559 = vmatpush1.bf16.msra.mxu0 %v536
      %560 = vmatprep.subr.bf16.mxu0 %v535
      %561 = vmatpush1.bf16.msra.mxu0 %v534
      %562 = vmatprep.subr.bf16.mxu0 %v533
      %563 = vmatpush1.bf16.msra.mxu0 %v532
      %564 = vmatprep.subr.bf16.mxu0 %v531
      %565 = vmatpush1.bf16.msra.mxu0 %v530
      %566 = vmatprep.subr.bf16.mxu0 %v529
      %567 = vmatpush1.bf16.msra.mxu0 %v528
      %568 = vmatprep.subr.bf16.mxu0 %v527
      %569 = vmatpush1.bf16.msra.mxu0 %v526
      %570 = vmatprep.subr.bf16.mxu0 %v525
      %571 = vmatpush1.bf16.msra.mxu0 %v524
      %572 = vmatprep.subr.bf16.mxu0 0
      %573 = vmatpush2.bf16.msra.mxu0 0
      %574 = vmatprep.subr.bf16.mxu0 0
      %575 = vmatpush2.bf16.msra.mxu0 0
      %576 = vmatprep.subr.bf16.mxu0 0
      %577 = vmatpush2.bf16.msra.mxu0 0
      %578 = vmatprep.subr.bf16.mxu0 0
      %579 = vmatpush2.bf16.msra.mxu0 0
      %580 = vmatprep.subr.bf16.mxu0 0
      %581 = vmatpush2.bf16.msra.mxu0 0
      %582 = vmatprep.subr.bf16.mxu0 0
      %583 = vmatpush2.bf16.msra.mxu0 0
      %584 = vmatprep.subr.bf16.mxu0 0
      %585 = vmatpush2.bf16.msra.mxu0 0
      %586 = vmatprep.subr.bf16.mxu0 0
      %587 = vmatpush2.bf16.msra.mxu0 0
      %588 = vmatprep.mubr.bf16.mxu0 0
      %589 = vmatmul.mubr.bf16.gmra.mxu0 %v474
      %v590 = vpop.f32.mrf.mxu0
      %v591 = vadd.f32 0.0, %v590
      %v592 = vpop.f32.mrf.mxu0
      %v593 = vadd.f32 0.0, %v592
      %v594 = vpop.f32.mrf.mxu0
      %v595 = vpop.f32.mrf.mxu0
      %596 = vdwg.mxu0
      %v597 = vadd.f32 %v442, %v591
      %v598 = vadd.f32 %v444, %v593
      %v599 = vld [vmem:[%s165 + $0x8] sm:$0x7]
      %v600 = vld [vmem:[%s1 + $0x180] sm:$0xff]
      %v601 = vld [vmem:[%s1 + $0x188] sm:$0xff]
      %v602 = vld [vmem:[%s1 + $0x190] sm:$0xff]
      %v603 = vld [vmem:[%s1 + $0x198] sm:$0xff]
      %v604 = vld [vmem:[%s1 + $0x1a0] sm:$0xff]
      %v605 = vld [vmem:[%s1 + $0x1a8] sm:$0xff]
      %v606 = vld [vmem:[%s1 + $0x1b0] sm:$0xff]
      %v607 = vld [vmem:[%s1 + $0x1b8] sm:$0xff]
      %v608 = vld [vmem:[%s1 + $0x1c0] sm:$0xff]
      %v609 = vld [vmem:[%s1 + $0x1c8] sm:$0xff]
      %v610 = vld [vmem:[%s1 + $0x1d0] sm:$0xff]
      %v611 = vld [vmem:[%s1 + $0x1d8] sm:$0xff]
      %v612 = vld [vmem:[%s1 + $0x1e0] sm:$0xff]
      %v613 = vld [vmem:[%s1 + $0x1e8] sm:$0xff]
      %v614 = vld [vmem:[%s1 + $0x1f0] sm:$0xff]
      %v615 = vld [vmem:[%s1 + $0x1f8] sm:$0xff]
      %v632 = vunpack.c.l.b16 %v600
      %v633 = vunpack.c.h.b16 %v600
      %v634 = vunpack.c.l.b16 %v601
      %v635 = vunpack.c.h.b16 %v601
      %v636 = vunpack.c.l.b16 %v602
      %v637 = vunpack.c.h.b16 %v602
      %v638 = vunpack.c.l.b16 %v603
      %v639 = vunpack.c.h.b16 %v603
      %v640 = vunpack.c.l.b16 %v604
      %v641 = vunpack.c.h.b16 %v604
      %v642 = vunpack.c.l.b16 %v605
      %v643 = vunpack.c.h.b16 %v605
      %v644 = vunpack.c.l.b16 %v606
      %v645 = vunpack.c.h.b16 %v606
      %v646 = vunpack.c.l.b16 %v607
      %v647 = vunpack.c.h.b16 %v607
      %v648 = vunpack.c.l.b16 %v608
      %v649 = vunpack.c.h.b16 %v608
      %v650 = vunpack.c.l.b16 %v609
      %v651 = vunpack.c.h.b16 %v609
      %v652 = vunpack.c.l.b16 %v610
      %v653 = vunpack.c.h.b16 %v610
      %v654 = vunpack.c.l.b16 %v611
      %v655 = vunpack.c.h.b16 %v611
      %v656 = vunpack.c.l.b16 %v612
      %v657 = vunpack.c.h.b16 %v612
      %v658 = vunpack.c.l.b16 %v613
      %v659 = vunpack.c.h.b16 %v613
      %v660 = vunpack.c.l.b16 %v614
      %v661 = vunpack.c.h.b16 %v614
      %v662 = vunpack.c.l.b16 %v615
      %v663 = vunpack.c.h.b16 %v615
      %v664 = vpack.c.b16 %v634, %v632
      %v665 = vpack.c.b16 %v635, %v633
      %v666 = vpack.c.b16 %v638, %v636
      %v667 = vpack.c.b16 %v639, %v637
      %v668 = vpack.c.b16 %v642, %v640
      %v669 = vpack.c.b16 %v643, %v641
      %v670 = vpack.c.b16 %v646, %v644
      %v671 = vpack.c.b16 %v647, %v645
      %v672 = vpack.c.b16 %v650, %v648
      %v673 = vpack.c.b16 %v651, %v649
      %v674 = vpack.c.b16 %v654, %v652
      %v675 = vpack.c.b16 %v655, %v653
      %v676 = vpack.c.b16 %v658, %v656
      %v677 = vpack.c.b16 %v659, %v657
      %v678 = vpack.c.b16 %v662, %v660
      %v679 = vpack.c.b16 %v663, %v661
      %696 = vmatprep.subr.bf16.mxu0 %v679
      %697 = vmatpush1.bf16.msra.mxu0 %v678
      %698 = vmatprep.subr.bf16.mxu0 %v677
      %699 = vmatpush1.bf16.msra.mxu0 %v676
      %700 = vmatprep.subr.bf16.mxu0 %v675
      %701 = vmatpush1.bf16.msra.mxu0 %v674
      %702 = vmatprep.subr.bf16.mxu0 %v673
      %703 = vmatpush1.bf16.msra.mxu0 %v672
      %704 = vmatprep.subr.bf16.mxu0 %v671
      %705 = vmatpush1.bf16.msra.mxu0 %v670
      %706 = vmatprep.subr.bf16.mxu0 %v669
      %707 = vmatpush1.bf16.msra.mxu0 %v668
      %708 = vmatprep.subr.bf16.mxu0 %v667
      %709 = vmatpush1.bf16.msra.mxu0 %v666
      %710 = vmatprep.subr.bf16.mxu0 %v665
      %711 = vmatpush1.bf16.msra.mxu0 %v664
      %712 = vmatprep.subr.bf16.mxu0 0
      %713 = vmatpush2.bf16.msra.mxu0 0
      %714 = vmatprep.subr.bf16.mxu0 0
      %715 = vmatpush2.bf16.msra.mxu0 0
      %716 = vmatprep.subr.bf16.mxu0 0
      %717 = vmatpush2.bf16.msra.mxu0 0
      %718 = vmatprep.subr.bf16.mxu0 0
      %719 = vmatpush2.bf16.msra.mxu0 0
      %720 = vmatprep.subr.bf16.mxu0 0
      %721 = vmatpush2.bf16.msra.mxu0 0
      %722 = vmatprep.subr.bf16.mxu0 0
      %723 = vmatpush2.bf16.msra.mxu0 0
      %724 = vmatprep.subr.bf16.mxu0 0
      %725 = vmatpush2.bf16.msra.mxu0 0
      %726 = vmatprep.subr.bf16.mxu0 0
      %727 = vmatpush2.bf16.msra.mxu0 0
      %728 = vmatprep.mubr.bf16.mxu0 0
      %729 = vmatmul.mubr.bf16.gmra.mxu0 %v599
      %v730 = vpop.f32.mrf.mxu0
      %v731 = vadd.f32 0.0, %v730
      %v732 = vpop.f32.mrf.mxu0
      %v733 = vadd.f32 0.0, %v732
      %v734 = vpop.f32.mrf.mxu0
      %v735 = vpop.f32.mrf.mxu0
      %736 = vdwg.mxu0
      %v737 = vadd.f32 %v597, %v731
      %v738 = vadd.f32 %v598, %v733
      %v739 = vld [vmem:[%s165 + $0xc] sm:$0x7]
      %v740 = vld [vmem:[%s1 + $0x200] sm:$0xff]
      %v741 = vld [vmem:[%s1 + $0x208] sm:$0xff]
      %v742 = vld [vmem:[%s1 + $0x210] sm:$0xff]
      %v743 = vld [vmem:[%s1 + $0x218] sm:$0xff]
      %v744 = vld [vmem:[%s1 + $0x220] sm:$0xff]
      %v745 = vld [vmem:[%s1 + $0x228] sm:$0xff]
      %v746 = vld [vmem:[%s1 + $0x230] sm:$0xff]
      %v747 = vld [vmem:[%s1 + $0x238] sm:$0xff]
      %v748 = vld [vmem:[%s1 + $0x240] sm:$0xff]
      %v749 = vld [vmem:[%s1 + $0x248] sm:$0xff]
      %v750 = vld [vmem:[%s1 + $0x250] sm:$0xff]
      %v751 = vld [vmem:[%s1 + $0x258] sm:$0xff]
      %v752 = vld [vmem:[%s1 + $0x260] sm:$0xff]
      %v753 = vld [vmem:[%s1 + $0x268] sm:$0xff]
      %v754 = vld [vmem:[%s1 + $0x270] sm:$0xff]
      %v755 = vld [vmem:[%s1 + $0x278] sm:$0xff]
      %v772 = vunpack.c.l.b16 %v740
      %v773 = vunpack.c.h.b16 %v740
      %v774 = vunpack.c.l.b16 %v741
      %v775 = vunpack.c.h.b16 %v741
      %v776 = vunpack.c.l.b16 %v742
      %v777 = vunpack.c.h.b16 %v742
      %v778 = vunpack.c.l.b16 %v743
      %v779 = vunpack.c.h.b16 %v743
      %v780 = vunpack.c.l.b16 %v744
      %v781 = vunpack.c.h.b16 %v744
      %v782 = vunpack.c.l.b16 %v745
      %v783 = vunpack.c.h.b16 %v745
      %v784 = vunpack.c.l.b16 %v746
      %v785 = vunpack.c.h.b16 %v746
      %v786 = vunpack.c.l.b16 %v747
      %v787 = vunpack.c.h.b16 %v747
      %v788 = vunpack.c.l.b16 %v748
      %v789 = vunpack.c.h.b16 %v748
      %v790 = vunpack.c.l.b16 %v749
      %v791 = vunpack.c.h.b16 %v749
      %v792 = vunpack.c.l.b16 %v750
      %v793 = vunpack.c.h.b16 %v750
      %v794 = vunpack.c.l.b16 %v751
      %v795 = vunpack.c.h.b16 %v751
      %v796 = vunpack.c.l.b16 %v752
      %v797 = vunpack.c.h.b16 %v752
      %v798 = vunpack.c.l.b16 %v753
      %v799 = vunpack.c.h.b16 %v753
      %v800 = vunpack.c.l.b16 %v754
      %v801 = vunpack.c.h.b16 %v754
      %v802 = vunpack.c.l.b16 %v755
      %v803 = vunpack.c.h.b16 %v755
      %v804 = vpack.c.b16 %v774, %v772
      %v805 = vpack.c.b16 %v775, %v773
      %v806 = vpack.c.b16 %v778, %v776
      %v807 = vpack.c.b16 %v779, %v777
      %v808 = vpack.c.b16 %v782, %v780
      %v809 = vpack.c.b16 %v783, %v781
      %v810 = vpack.c.b16 %v786, %v784
      %v811 = vpack.c.b16 %v787, %v785
      %v812 = vpack.c.b16 %v790, %v788
      %v813 = vpack.c.b16 %v791, %v789
      %v814 = vpack.c.b16 %v794, %v792
      %v815 = vpack.c.b16 %v795, %v793
      %v816 = vpack.c.b16 %v798, %v796
      %v817 = vpack.c.b16 %v799, %v797
      %v818 = vpack.c.b16 %v802, %v800
      %v819 = vpack.c.b16 %v803, %v801
      %836 = vmatprep.subr.bf16.mxu0 %v819
      %837 = vmatpush1.bf16.msra.mxu0 %v818
      %838 = vmatprep.subr.bf16.mxu0 %v817
      %839 = vmatpush1.bf16.msra.mxu0 %v816
      %840 = vmatprep.subr.bf16.mxu0 %v815
      %841 = vmatpush1.bf16.msra.mxu0 %v814
      %842 = vmatprep.subr.bf16.mxu0 %v813
      %843 = vmatpush1.bf16.msra.mxu0 %v812
      %844 = vmatprep.subr.bf16.mxu0 %v811
      %845 = vmatpush1.bf16.msra.mxu0 %v810
      %846 = vmatprep.subr.bf16.mxu0 %v809
      %847 = vmatpush1.bf16.msra.mxu0 %v808
      %848 = vmatprep.subr.bf16.mxu0 %v807
      %849 = vmatpush1.bf16.msra.mxu0 %v806
      %850 = vmatprep.subr.bf16.mxu0 %v805
      %851 = vmatpush1.bf16.msra.mxu0 %v804
      %852 = vmatprep.subr.bf16.mxu0 0
      %853 = vmatpush2.bf16.msra.mxu0 0
      %854 = vmatprep.subr.bf16.mxu0 0
      %855 = vmatpush2.bf16.msra.mxu0 0
      %856 = vmatprep.subr.bf16.mxu0 0
      %857 = vmatpush2.bf16.msra.mxu0 0
      %858 = vmatprep.subr.bf16.mxu0 0
      %859 = vmatpush2.bf16.msra.mxu0 0
      %860 = vmatprep.subr.bf16.mxu0 0
      %861 = vmatpush2.bf16.msra.mxu0 0
      %862 = vmatprep.subr.bf16.mxu0 0
      %863 = vmatpush2.bf16.msra.mxu0 0
      %864 = vmatprep.subr.bf16.mxu0 0
      %865 = vmatpush2.bf16.msra.mxu0 0
      %866 = vmatprep.subr.bf16.mxu0 0
      %867 = vmatpush2.bf16.msra.mxu0 0
      %868 = vmatprep.mubr.bf16.mxu0 0
      %869 = vmatmul.mubr.bf16.gmra.mxu0 %v739
      %v870 = vpop.f32.mrf.mxu0
      %v871 = vadd.f32 0.0, %v870
      %v872 = vpop.f32.mrf.mxu0
      %v873 = vadd.f32 0.0, %v872
      %v874 = vpop.f32.mrf.mxu0
      %v875 = vpop.f32.mrf.mxu0
      %876 = vdwg.mxu0
      %v877 = vadd.f32 %v737, %v871
      %v878 = vadd.f32 %v738, %v873
      %v879 = vld [vmem:[%s165 + $0x8] sm:$0xf]
      %v880 = vld [vmem:[%s1 + $0x280] sm:$0xff]
      %v881 = vld [vmem:[%s1 + $0x288] sm:$0xff]
      %v882 = vld [vmem:[%s1 + $0x290] sm:$0xff]
      %v883 = vld [vmem:[%s1 + $0x298] sm:$0xff]
      %v884 = vld [vmem:[%s1 + $0x2a0] sm:$0xff]
      %v885 = vld [vmem:[%s1 + $0x2a8] sm:$0xff]
      %v886 = vld [vmem:[%s1 + $0x2b0] sm:$0xff]
      %v887 = vld [vmem:[%s1 + $0x2b8] sm:$0xff]
      %v888 = vld [vmem:[%s1 + $0x2c0] sm:$0xff]
      %v889 = vld [vmem:[%s1 + $0x2c8] sm:$0xff]
      %v890 = vld [vmem:[%s1 + $0x2d0] sm:$0xff]
      %v891 = vld [vmem:[%s1 + $0x2d8] sm:$0xff]
      %v892 = vld [vmem:[%s1 + $0x2e0] sm:$0xff]
      %v893 = vld [vmem:[%s1 + $0x2e8] sm:$0xff]
      %v894 = vld [vmem:[%s1 + $0x2f0] sm:$0xff]
      %v895 = vld [vmem:[%s1 + $0x2f8] sm:$0xff]
      %v897 = vunpack.c.l.b16 %v879
      %v898 = vpack.c.b16 %v897, %v897
      %v900 = vshrl.u32 %v898, 16
      %v902 = vshll.u32 %v898, 16
      %v904 = vrot.slane %v902, 1
      %v905 = vor.u32 %v900, %v904
      %v923 = vunpack.c.l.b16 %v880
      %v924 = vunpack.c.h.b16 %v880
      %v925 = vunpack.c.l.b16 %v881
      %v926 = vunpack.c.h.b16 %v881
      %v927 = vunpack.c.l.b16 %v882
      %v928 = vunpack.c.h.b16 %v882
      %v929 = vunpack.c.l.b16 %v883
      %v930 = vunpack.c.h.b16 %v883
      %v931 = vunpack.c.l.b16 %v884
      %v932 = vunpack.c.h.b16 %v884
      %v933 = vunpack.c.l.b16 %v885
      %v934 = vunpack.c.h.b16 %v885
      %v935 = vunpack.c.l.b16 %v886
      %v936 = vunpack.c.h.b16 %v886
      %v937 = vunpack.c.l.b16 %v887
      %v938 = vunpack.c.h.b16 %v887
      %v939 = vunpack.c.l.b16 %v888
      %v940 = vunpack.c.h.b16 %v888
      %v941 = vunpack.c.l.b16 %v889
      %v942 = vunpack.c.h.b16 %v889
      %v943 = vunpack.c.l.b16 %v890
      %v944 = vunpack.c.h.b16 %v890
      %v945 = vunpack.c.l.b16 %v891
      %v946 = vunpack.c.h.b16 %v891
      %v947 = vunpack.c.l.b16 %v892
      %v948 = vunpack.c.h.b16 %v892
      %v949 = vunpack.c.l.b16 %v893
      %v950 = vunpack.c.h.b16 %v893
      %v951 = vunpack.c.l.b16 %v894
      %v952 = vunpack.c.h.b16 %v894
      %v953 = vunpack.c.l.b16 %v895
      %v954 = vunpack.c.h.b16 %v895
      %v955 = vpack.c.b16 %v925, %v923
      %v956 = vpack.c.b16 %v926, %v924
      %v957 = vpack.c.b16 %v929, %v927
      %v958 = vpack.c.b16 %v930, %v928
      %v959 = vpack.c.b16 %v933, %v931
      %v960 = vpack.c.b16 %v934, %v932
      %v961 = vpack.c.b16 %v937, %v935
      %v962 = vpack.c.b16 %v938, %v936
      %v963 = vpack.c.b16 %v941, %v939
      %v964 = vpack.c.b16 %v942, %v940
      %v965 = vpack.c.b16 %v945, %v943
      %v966 = vpack.c.b16 %v946, %v944
      %v967 = vpack.c.b16 %v949, %v947
      %v968 = vpack.c.b16 %v950, %v948
      %v969 = vpack.c.b16 %v953, %v951
      %v970 = vpack.c.b16 %v954, %v952
      %987 = vmatprep.subr.bf16.mxu0 %v970
      %988 = vmatpush1.bf16.msra.mxu0 %v969
      %989 = vmatprep.subr.bf16.mxu0 %v968
      %990 = vmatpush1.bf16.msra.mxu0 %v967
      %991 = vmatprep.subr.bf16.mxu0 %v966
      %992 = vmatpush1.bf16.msra.mxu0 %v965
      %993 = vmatprep.subr.bf16.mxu0 %v964
      %994 = vmatpush1.bf16.msra.mxu0 %v963
      %995 = vmatprep.subr.bf16.mxu0 %v962
      %996 = vmatpush1.bf16.msra.mxu0 %v961
      %997 = vmatprep.subr.bf16.mxu0 %v960
      %998 = vmatpush1.bf16.msra.mxu0 %v959
      %999 = vmatprep.subr.bf16.mxu0 %v958
      %1000 = vmatpush1.bf16.msra.mxu0 %v957
      %1001 = vmatprep.subr.bf16.mxu0 %v956
      %1002 = vmatpush1.bf16.msra.mxu0 %v955
      %1003 = vmatprep.subr.bf16.mxu0 0
      %1004 = vmatpush2.bf16.msra.mxu0 0
      %1005 = vmatprep.subr.bf16.mxu0 0
      %1006 = vmatpush2.bf16.msra.mxu0 0
      %1007 = vmatprep.subr.bf16.mxu0 0
      %1008 = vmatpush2.bf16.msra.mxu0 0
      %1009 = vmatprep.subr.bf16.mxu0 0
      %1010 = vmatpush2.bf16.msra.mxu0 0
      %1011 = vmatprep.subr.bf16.mxu0 0
      %1012 = vmatpush2.bf16.msra.mxu0 0
      %1013 = vmatprep.subr.bf16.mxu0 0
      %1014 = vmatpush2.bf16.msra.mxu0 0
      %1015 = vmatprep.subr.bf16.mxu0 0
      %1016 = vmatpush2.bf16.msra.mxu0 0
      %1017 = vmatprep.subr.bf16.mxu0 0
      %1018 = vmatpush2.bf16.msra.mxu0 0
      %1019 = vmatprep.mubr.bf16.mxu0 0
      %1020 = vmatmul.mubr.bf16.gmra.mxu0 %v905
      %v1021 = vpop.f32.mrf.mxu0
      %v1022 = vadd.f32 0.0, %v1021
      %v1023 = vpop.f32.mrf.mxu0
      %v1024 = vadd.f32 0.0, %v1023
      %v1025 = vpop.f32.mrf.mxu0
      %v1026 = vpop.f32.mrf.mxu0
      %1027 = vdwg.mxu0
      %v1028 = vadd.f32 %v877, %v1022
      %v1029 = vadd.f32 %v878, %v1024
      %v1030 = vld [vmem:[%s165] sm:$0xe]
      %v1031 = vld [vmem:[%s165 + $0x10] sm:$0x1]
      %v1032 = vld [vmem:[%s1 + $0x300] sm:$0xff]
      %v1033 = vld [vmem:[%s1 + $0x308] sm:$0xff]
      %v1034 = vld [vmem:[%s1 + $0x310] sm:$0xff]
      %v1035 = vld [vmem:[%s1 + $0x318] sm:$0xff]
      %v1036 = vld [vmem:[%s1 + $0x320] sm:$0xff]
      %v1037 = vld [vmem:[%s1 + $0x328] sm:$0xff]
      %v1038 = vld [vmem:[%s1 + $0x330] sm:$0xff]
      %v1039 = vld [vmem:[%s1 + $0x338] sm:$0xff]
      %v1040 = vld [vmem:[%s1 + $0x340] sm:$0xff]
      %v1041 = vld [vmem:[%s1 + $0x348] sm:$0xff]
      %v1042 = vld [vmem:[%s1 + $0x350] sm:$0xff]
      %v1043 = vld [vmem:[%s1 + $0x358] sm:$0xff]
      %v1044 = vld [vmem:[%s1 + $0x360] sm:$0xff]
      %v1045 = vld [vmem:[%s1 + $0x368] sm:$0xff]
      %v1046 = vld [vmem:[%s1 + $0x370] sm:$0xff]
      %v1047 = vld [vmem:[%s1 + $0x378] sm:$0xff]
      %v1050 = vunpack.c.l.b16 %v1030
      %v1051 = vunpack.c.l.b16 %v1031
      %v1052 = vpack.c.b16 %v1051, %v1050
      %v1054 = vshrl.u32 %v1052, 16
      %v1056 = vrot.slane %v1054, 1
      %v1057 = vshll.u32 %v1052, 16
      %v1059 = vrot.slane %v1057, 2
      %v1060 = vor.u32 %v1056, %v1059
      %v1078 = vunpack.c.l.b16 %v1032
      %v1079 = vunpack.c.h.b16 %v1032
      %v1080 = vunpack.c.l.b16 %v1033
      %v1081 = vunpack.c.h.b16 %v1033
      %v1082 = vunpack.c.l.b16 %v1034
      %v1083 = vunpack.c.h.b16 %v1034
      %v1084 = vunpack.c.l.b16 %v1035
      %v1085 = vunpack.c.h.b16 %v1035
      %v1086 = vunpack.c.l.b16 %v1036
      %v1087 = vunpack.c.h.b16 %v1036
      %v1088 = vunpack.c.l.b16 %v1037
      %v1089 = vunpack.c.h.b16 %v1037
      %v1090 = vunpack.c.l.b16 %v1038
      %v1091 = vunpack.c.h.b16 %v1038
      %v1092 = vunpack.c.l.b16 %v1039
      %v1093 = vunpack.c.h.b16 %v1039
      %v1094 = vunpack.c.l.b16 %v1040
      %v1095 = vunpack.c.h.b16 %v1040
      %v1096 = vunpack.c.l.b16 %v1041
      %v1097 = vunpack.c.h.b16 %v1041
      %v1098 = vunpack.c.l.b16 %v1042
      %v1099 = vunpack.c.h.b16 %v1042
      %v1100 = vunpack.c.l.b16 %v1043
      %v1101 = vunpack.c.h.b16 %v1043
      %v1102 = vunpack.c.l.b16 %v1044
      %v1103 = vunpack.c.h.b16 %v1044
      %v1104 = vunpack.c.l.b16 %v1045
      %v1105 = vunpack.c.h.b16 %v1045
      %v1106 = vunpack.c.l.b16 %v1046
      %v1107 = vunpack.c.h.b16 %v1046
      %v1108 = vunpack.c.l.b16 %v1047
      %v1109 = vunpack.c.h.b16 %v1047
      %v1110 = vpack.c.b16 %v1080, %v1078
      %v1111 = vpack.c.b16 %v1081, %v1079
      %v1112 = vpack.c.b16 %v1084, %v1082
      %v1113 = vpack.c.b16 %v1085, %v1083
      %v1114 = vpack.c.b16 %v1088, %v1086
      %v1115 = vpack.c.b16 %v1089, %v1087
      %v1116 = vpack.c.b16 %v1092, %v1090
      %v1117 = vpack.c.b16 %v1093, %v1091
      %v1118 = vpack.c.b16 %v1096, %v1094
      %v1119 = vpack.c.b16 %v1097, %v1095
      %v1120 = vpack.c.b16 %v1100, %v1098
      %v1121 = vpack.c.b16 %v1101, %v1099
      %v1122 = vpack.c.b16 %v1104, %v1102
      %v1123 = vpack.c.b16 %v1105, %v1103
      %v1124 = vpack.c.b16 %v1108, %v1106
      %v1125 = vpack.c.b16 %v1109, %v1107
      %1142 = vmatprep.subr.bf16.mxu0 %v1125
      %1143 = vmatpush1.bf16.msra.mxu0 %v1124
      %1144 = vmatprep.subr.bf16.mxu0 %v1123
      %1145 = vmatpush1.bf16.msra.mxu0 %v1122
      %1146 = vmatprep.subr.bf16.mxu0 %v1121
      %1147 = vmatpush1.bf16.msra.mxu0 %v1120
      %1148 = vmatprep.subr.bf16.mxu0 %v1119
      %1149 = vmatpush1.bf16.msra.mxu0 %v1118
      %1150 = vmatprep.subr.bf16.mxu0 %v1117
      %1151 = vmatpush1.bf16.msra.mxu0 %v1116
      %1152 = vmatprep.subr.bf16.mxu0 %v1115
      %1153 = vmatpush1.bf16.msra.mxu0 %v1114
      %1154 = vmatprep.subr.bf16.mxu0 %v1113
      %1155 = vmatpush1.bf16.msra.mxu0 %v1112
      %1156 = vmatprep.subr.bf16.mxu0 %v1111
      %1157 = vmatpush1.bf16.msra.mxu0 %v1110
      %1158 = vmatprep.subr.bf16.mxu0 0
      %1159 = vmatpush2.bf16.msra.mxu0 0
      %1160 = vmatprep.subr.bf16.mxu0 0
      %1161 = vmatpush2.bf16.msra.mxu0 0
      %1162 = vmatprep.subr.bf16.mxu0 0
      %1163 = vmatpush2.bf16.msra.mxu0 0
      %1164 = vmatprep.subr.bf16.mxu0 0
      %1165 = vmatpush2.bf16.msra.mxu0 0
      %1166 = vmatprep.subr.bf16.mxu0 0
      %1167 = vmatpush2.bf16.msra.mxu0 0
      %1168 = vmatprep.subr.bf16.mxu0 0
      %1169 = vmatpush2.bf16.msra.mxu0 0
      %1170 = vmatprep.subr.bf16.mxu0 0
      %1171 = vmatpush2.bf16.msra.mxu0 0
      %1172 = vmatprep.subr.bf16.mxu0 0
      %1173 = vmatpush2.bf16.msra.mxu0 0
      %1174 = vmatprep.mubr.bf16.mxu0 0
      %1175 = vmatmul.mubr.bf16.gmra.mxu0 %v1060
      %v1176 = vpop.f32.mrf.mxu0
      %v1177 = vadd.f32 0.0, %v1176
      %v1178 = vpop.f32.mrf.mxu0
      %v1179 = vadd.f32 0.0, %v1178
      %v1180 = vpop.f32.mrf.mxu0
      %v1181 = vpop.f32.mrf.mxu0
      %1182 = vdwg.mxu0
      %v1183 = vadd.f32 %v1028, %v1177
      %v1184 = vadd.f32 %v1029, %v1179
      %v1185 = vld [vmem:[%s165 + $0x4] sm:$0xe]
      %v1186 = vld [vmem:[%s165 + $0x14] sm:$0x1]
      %v1187 = vld [vmem:[%s1 + $0x380] sm:$0xff]
      %v1188 = vld [vmem:[%s1 + $0x388] sm:$0xff]
      %v1189 = vld [vmem:[%s1 + $0x390] sm:$0xff]
      %v1190 = vld [vmem:[%s1 + $0x398] sm:$0xff]
      %v1191 = vld [vmem:[%s1 + $0x3a0] sm:$0xff]
      %v1192 = vld [vmem:[%s1 + $0x3a8] sm:$0xff]
      %v1193 = vld [vmem:[%s1 + $0x3b0] sm:$0xff]
      %v1194 = vld [vmem:[%s1 + $0x3b8] sm:$0xff]
      %v1195 = vld [vmem:[%s1 + $0x3c0] sm:$0xff]
      %v1196 = vld [vmem:[%s1 + $0x3c8] sm:$0xff]
      %v1197 = vld [vmem:[%s1 + $0x3d0] sm:$0xff]
      %v1198 = vld [vmem:[%s1 + $0x3d8] sm:$0xff]
      %v1199 = vld [vmem:[%s1 + $0x3e0] sm:$0xff]
      %v1200 = vld [vmem:[%s1 + $0x3e8] sm:$0xff]
      %v1201 = vld [vmem:[%s1 + $0x3f0] sm:$0xff]
      %v1202 = vld [vmem:[%s1 + $0x3f8] sm:$0xff]
      %v1205 = vunpack.c.l.b16 %v1185
      %v1206 = vunpack.c.l.b16 %v1186
      %v1207 = vpack.c.b16 %v1206, %v1205
      %v1209 = vshrl.u32 %v1207, 16
      %v1211 = vrot.slane %v1209, 1
      %v1212 = vshll.u32 %v1207, 16
      %v1214 = vrot.slane %v1212, 2
      %v1215 = vor.u32 %v1211, %v1214
      %v1233 = vunpack.c.l.b16 %v1187
      %v1234 = vunpack.c.h.b16 %v1187
      %v1235 = vunpack.c.l.b16 %v1188
      %v1236 = vunpack.c.h.b16 %v1188
      %v1237 = vunpack.c.l.b16 %v1189
      %v1238 = vunpack.c.h.b16 %v1189
      %v1239 = vunpack.c.l.b16 %v1190
      %v1240 = vunpack.c.h.b16 %v1190
      %v1241 = vunpack.c.l.b16 %v1191
      %v1242 = vunpack.c.h.b16 %v1191
      %v1243 = vunpack.c.l.b16 %v1192
      %v1244 = vunpack.c.h.b16 %v1192
      %v1245 = vunpack.c.l.b16 %v1193
      %v1246 = vunpack.c.h.b16 %v1193
      %v1247 = vunpack.c.l.b16 %v1194
      %v1248 = vunpack.c.h.b16 %v1194
      %v1249 = vunpack.c.l.b16 %v1195
      %v1250 = vunpack.c.h.b16 %v1195
      %v1251 = vunpack.c.l.b16 %v1196
      %v1252 = vunpack.c.h.b16 %v1196
      %v1253 = vunpack.c.l.b16 %v1197
      %v1254 = vunpack.c.h.b16 %v1197
      %v1255 = vunpack.c.l.b16 %v1198
      %v1256 = vunpack.c.h.b16 %v1198
      %v1257 = vunpack.c.l.b16 %v1199
      %v1258 = vunpack.c.h.b16 %v1199
      %v1259 = vunpack.c.l.b16 %v1200
      %v1260 = vunpack.c.h.b16 %v1200
      %v1261 = vunpack.c.l.b16 %v1201
      %v1262 = vunpack.c.h.b16 %v1201
      %v1263 = vunpack.c.l.b16 %v1202
      %v1264 = vunpack.c.h.b16 %v1202
      %v1265 = vpack.c.b16 %v1235, %v1233
      %v1266 = vpack.c.b16 %v1236, %v1234
      %v1267 = vpack.c.b16 %v1239, %v1237
      %v1268 = vpack.c.b16 %v1240, %v1238
      %v1269 = vpack.c.b16 %v1243, %v1241
      %v1270 = vpack.c.b16 %v1244, %v1242
      %v1271 = vpack.c.b16 %v1247, %v1245
      %v1272 = vpack.c.b16 %v1248, %v1246
      %v1273 = vpack.c.b16 %v1251, %v1249
      %v1274 = vpack.c.b16 %v1252, %v1250
      %v1275 = vpack.c.b16 %v1255, %v1253
      %v1276 = vpack.c.b16 %v1256, %v1254
      %v1277 = vpack.c.b16 %v1259, %v1257
      %v1278 = vpack.c.b16 %v1260, %v1258
      %v1279 = vpack.c.b16 %v1263, %v1261
      %v1280 = vpack.c.b16 %v1264, %v1262
      %1297 = vmatprep.subr.bf16.mxu0 %v1280
      %1298 = vmatpush1.bf16.msra.mxu0 %v1279
      %1299 = vmatprep.subr.bf16.mxu0 %v1278
      %1300 = vmatpush1.bf16.msra.mxu0 %v1277
      %1301 = vmatprep.subr.bf16.mxu0 %v1276
      %1302 = vmatpush1.bf16.msra.mxu0 %v1275
      %1303 = vmatprep.subr.bf16.mxu0 %v1274
      %1304 = vmatpush1.bf16.msra.mxu0 %v1273
      %1305 = vmatprep.subr.bf16.mxu0 %v1272
      %1306 = vmatpush1.bf16.msra.mxu0 %v1271
      %1307 = vmatprep.subr.bf16.mxu0 %v1270
      %1308 = vmatpush1.bf16.msra.mxu0 %v1269
      %1309 = vmatprep.subr.bf16.mxu0 %v1268
      %1310 = vmatpush1.bf16.msra.mxu0 %v1267
      %1311 = vmatprep.subr.bf16.mxu0 %v1266
      %1312 = vmatpush1.bf16.msra.mxu0 %v1265
      %1313 = vmatprep.subr.bf16.mxu0 0
      %1314 = vmatpush2.bf16.msra.mxu0 0
      %1315 = vmatprep.subr.bf16.mxu0 0
      %1316 = vmatpush2.bf16.msra.mxu0 0
      %1317 = vmatprep.subr.bf16.mxu0 0
      %1318 = vmatpush2.bf16.msra.mxu0 0
      %1319 = vmatprep.subr.bf16.mxu0 0
      %1320 = vmatpush2.bf16.msra.mxu0 0
      %1321 = vmatprep.subr.bf16.mxu0 0
      %1322 = vmatpush2.bf16.msra.mxu0 0
      %1323 = vmatprep.subr.bf16.mxu0 0
      %1324 = vmatpush2.bf16.msra.mxu0 0
      %1325 = vmatprep.subr.bf16.mxu0 0
      %1326 = vmatpush2.bf16.msra.mxu0 0
      %1327 = vmatprep.subr.bf16.mxu0 0
      %1328 = vmatpush2.bf16.msra.mxu0 0
      %1329 = vmatprep.mubr.bf16.mxu0 0
      %1330 = vmatmul.mubr.bf16.gmra.mxu0 %v1215
      %v1331 = vpop.f32.mrf.mxu0
      %v1332 = vadd.f32 0.0, %v1331
      %v1333 = vpop.f32.mrf.mxu0
      %v1334 = vadd.f32 0.0, %v1333
      %v1335 = vpop.f32.mrf.mxu0
      %v1336 = vpop.f32.mrf.mxu0
      %1337 = vdwg.mxu0
      %v1338 = vadd.f32 %v1183, %v1332
      %v1339 = vadd.f32 %v1184, %v1334
      %v1340 = vld [vmem:[%s165] sm:$0xc]
      %v1341 = vld [vmem:[%s1 + $0x400] sm:$0xff]
      %v1342 = vld [vmem:[%s1 + $0x408] sm:$0xff]
      %v1343 = vld [vmem:[%s1 + $0x410] sm:$0xff]
      %v1344 = vld [vmem:[%s1 + $0x418] sm:$0xff]
      %v1345 = vld [vmem:[%s1 + $0x420] sm:$0xff]
      %v1346 = vld [vmem:[%s1 + $0x428] sm:$0xff]
      %v1347 = vld [vmem:[%s1 + $0x430] sm:$0xff]
      %v1348 = vld [vmem:[%s1 + $0x438] sm:$0xff]
      %v1349 = vld [vmem:[%s1 + $0x440] sm:$0xff]
      %v1350 = vld [vmem:[%s1 + $0x448] sm:$0xff]
      %v1351 = vld [vmem:[%s1 + $0x450] sm:$0xff]
      %v1352 = vld [vmem:[%s1 + $0x458] sm:$0xff]
      %v1353 = vld [vmem:[%s1 + $0x460] sm:$0xff]
      %v1354 = vld [vmem:[%s1 + $0x468] sm:$0xff]
      %v1355 = vld [vmem:[%s1 + $0x470] sm:$0xff]
      %v1356 = vld [vmem:[%s1 + $0x478] sm:$0xff]
      %v1358 = vunpack.c.l.b16 %v1340
      %v1359 = vpack.c.b16 %v1051, %v1358
      %v1360 = vrot.slane %v1359, 2
      %v1378 = vunpack.c.l.b16 %v1341
      %v1379 = vunpack.c.h.b16 %v1341
      %v1380 = vunpack.c.l.b16 %v1342
      %v1381 = vunpack.c.h.b16 %v1342
      %v1382 = vunpack.c.l.b16 %v1343
      %v1383 = vunpack.c.h.b16 %v1343
      %v1384 = vunpack.c.l.b16 %v1344
      %v1385 = vunpack.c.h.b16 %v1344
      %v1386 = vunpack.c.l.b16 %v1345
      %v1387 = vunpack.c.h.b16 %v1345
      %v1388 = vunpack.c.l.b16 %v1346
      %v1389 = vunpack.c.h.b16 %v1346
      %v1390 = vunpack.c.l.b16 %v1347
      %v1391 = vunpack.c.h.b16 %v1347
      %v1392 = vunpack.c.l.b16 %v1348
      %v1393 = vunpack.c.h.b16 %v1348
      %v1394 = vunpack.c.l.b16 %v1349
      %v1395 = vunpack.c.h.b16 %v1349
      %v1396 = vunpack.c.l.b16 %v1350
      %v1397 = vunpack.c.h.b16 %v1350
      %v1398 = vunpack.c.l.b16 %v1351
      %v1399 = vunpack.c.h.b16 %v1351
      %v1400 = vunpack.c.l.b16 %v1352
      %v1401 = vunpack.c.h.b16 %v1352
      %v1402 = vunpack.c.l.b16 %v1353
      %v1403 = vunpack.c.h.b16 %v1353
      %v1404 = vunpack.c.l.b16 %v1354
      %v1405 = vunpack.c.h.b16 %v1354
      %v1406 = vunpack.c.l.b16 %v1355
      %v1407 = vunpack.c.h.b16 %v1355
      %v1408 = vunpack.c.l.b16 %v1356
      %v1409 = vunpack.c.h.b16 %v1356
      %v1410 = vpack.c.b16 %v1380, %v1378
      %v1411 = vpack.c.b16 %v1381, %v1379
      %v1412 = vpack.c.b16 %v1384, %v1382
      %v1413 = vpack.c.b16 %v1385, %v1383
      %v1414 = vpack.c.b16 %v1388, %v1386
      %v1415 = vpack.c.b16 %v1389, %v1387
      %v1416 = vpack.c.b16 %v1392, %v1390
      %v1417 = vpack.c.b16 %v1393, %v1391
      %v1418 = vpack.c.b16 %v1396, %v1394
      %v1419 = vpack.c.b16 %v1397, %v1395
      %v1420 = vpack.c.b16 %v1400, %v1398
      %v1421 = vpack.c.b16 %v1401, %v1399
      %v1422 = vpack.c.b16 %v1404, %v1402
      %v1423 = vpack.c.b16 %v1405, %v1403
      %v1424 = vpack.c.b16 %v1408, %v1406
      %v1425 = vpack.c.b16 %v1409, %v1407
      %1442 = vmatprep.subr.bf16.mxu0 %v1425
      %1443 = vmatpush1.bf16.msra.mxu0 %v1424
      %1444 = vmatprep.subr.bf16.mxu0 %v1423
      %1445 = vmatpush1.bf16.msra.mxu0 %v1422
      %1446 = vmatprep.subr.bf16.mxu0 %v1421
      %1447 = vmatpush1.bf16.msra.mxu0 %v1420
      %1448 = vmatprep.subr.bf16.mxu0 %v1419
      %1449 = vmatpush1.bf16.msra.mxu0 %v1418
      %1450 = vmatprep.subr.bf16.mxu0 %v1417
      %1451 = vmatpush1.bf16.msra.mxu0 %v1416
      %1452 = vmatprep.subr.bf16.mxu0 %v1415
      %1453 = vmatpush1.bf16.msra.mxu0 %v1414
      %1454 = vmatprep.subr.bf16.mxu0 %v1413
      %1455 = vmatpush1.bf16.msra.mxu0 %v1412
      %1456 = vmatprep.subr.bf16.mxu0 %v1411
      %1457 = vmatpush1.bf16.msra.mxu0 %v1410
      %1458 = vmatprep.subr.bf16.mxu0 0
      %1459 = vmatpush2.bf16.msra.mxu0 0
      %1460 = vmatprep.subr.bf16.mxu0 0
      %1461 = vmatpush2.bf16.msra.mxu0 0
      %1462 = vmatprep.subr.bf16.mxu0 0
      %1463 = vmatpush2.bf16.msra.mxu0 0
      %1464 = vmatprep.subr.bf16.mxu0 0
      %1465 = vmatpush2.bf16.msra.mxu0 0
      %1466 = vmatprep.subr.bf16.mxu0 0
      %1467 = vmatpush2.bf16.msra.mxu0 0
      %1468 = vmatprep.subr.bf16.mxu0 0
      %1469 = vmatpush2.bf16.msra.mxu0 0
      %1470 = vmatprep.subr.bf16.mxu0 0
      %1471 = vmatpush2.bf16.msra.mxu0 0
      %1472 = vmatprep.subr.bf16.mxu0 0
      %1473 = vmatpush2.bf16.msra.mxu0 0
      %1474 = vmatprep.mubr.bf16.mxu0 0
      %1475 = vmatmul.mubr.bf16.gmra.mxu0 %v1360
      %v1476 = vpop.f32.mrf.mxu0
      %v1477 = vadd.f32 0.0, %v1476
      %v1478 = vpop.f32.mrf.mxu0
      %v1479 = vadd.f32 0.0, %v1478
      %v1480 = vpop.f32.mrf.mxu0
      %v1481 = vpop.f32.mrf.mxu0
      %1482 = vdwg.mxu0
      %v1483 = vadd.f32 %v1338, %v1477
      %v1484 = vadd.f32 %v1339, %v1479
      %v1485 = vld [vmem:[%s2] sm:$0x3]
      %v1487 = vlaneseq
      %v1488 = vshrl.u32 %v1487, 7
      %v1489 = vsub.s32 0, %v1488
      %v1490 = vrot.slane %v1485, %v1489
      %v1491 = vlaneseq
      %v1492 = vshrl.u32 %v1491, 7
      %v1493 = vsub.s32 1, %v1492
      %v1494 = vrot.slane %v1485, %v1493
      %v1497 = vadd.f32 %v1483, %v1490
      %v1498 = vadd.f32 %v1484, %v1494
      %vm1499 = vcmp.gt.f32.partialorder %v1497, 0.0
      %vm1500 = vcmp.gt.f32.partialorder %v1498, 0.0
      %v1501 = vmul.f32 %v1497, 0.01
      %v1502 = vmul.f32 %v1498, 0.01
      %v1503 = vsel %vm1499, %v1497, %v1501
      %v1504 = vsel %vm1500, %v1498, %v1502
      %v1505 = vpack.c.bf16 %v1503, %v1503
      %v1506 = vpack.c.bf16 %v1504, %v1504
      %v1509 = vunpack.c.l.b16 %v1505
      %v1510 = vunpack.c.l.b16 %v1506
      %v1511 = vpack.c.b16 %v1510, %v1509
      %1513 = vst [vmem:[%s170] sm:$0x77] %v1511
      %p1514 = scmp.lt.s32.totalorder %s14, 1
      %s1515 = scalar_select %p1514, %s14, 1
      %s1516 = smul.addr %s1515, 2
      %s1517 = smul.addr %s1516, 4
      %s1518 = scalar_lea.vmem %s3, %s1517
      // Predicated region
      $region33: #{cnn_d_forward.6} parent=31 // pred_check
        %p1519 = pneg %p100
      $region34: #{cnn_d_forward.6} parent=31 // pred_check_branch
        %1521 = sbr.rel (%p1519) target = $region36
      $region35: #{cnn_d_forward.6} parent=31 // pred_region
        _
      $region36: #{cnn_d_forward.6} parent=31 // pred_fallthru
        _
    $region32: #{cnn_d_forward.6} parent=5 // pred_fallthru
      _
    %p1522 = scmp.le.s32.totalorder 2, %s9
    // Predicated region
    $region37: #{cnn_d_forward.6} parent=5 // pred_check
      %p1523 = pneg %p1522
    $region38: #{cnn_d_forward.6} parent=5 // pred_check_branch
      %1525 = sbr.rel (%p1523) target = $region40
    $region39: #{cnn_d_forward.6} parent=5 // pred_region
      %s1526 = ssub.s32 %s9, 2
      // Predicated region
      $region41: #{cnn_d_forward.6} parent=39 // pred_check
        %p1527 = pneg %p106
      $region42: #{cnn_d_forward.6} parent=39 // pred_check_branch
        %1529 = sbr.rel (%p1527) target = $region44
      $region43: #{cnn_d_forward.6} parent=39 // pred_region
        %p1530 = scmp.lt.s32.totalorder %s15, 1
        %s1531 = scalar_select %p1530, %s15, 1
        %s1532 = smul.addr %s1531, 2
        %s1533 = smul.addr %s1532, 4
        %s1534 = scalar_lea.vmem %s3, %s1533
      $region44: #{cnn_d_forward.6} parent=39 // pred_fallthru
        _
    $region40: #{cnn_d_forward.6} parent=5 // pred_fallthru
      _
  $region6: #{cnn_d_forward.6} parent=0 // loop_footer
    %s13 = sadd.s32 1, %s9
  $region7: #{cnn_d_forward.6} parent=0 // loop_footer_branch
    %8 = sbr.rel target = $region3
  $region8: #{cnn_d_forward.6} parent=0 // loop_exit
    _

// kernel: cnn_d_forward.7
$region0: #{cnn_d_forward.7}
  #allocation0 [shape = 'u32[]', space=smem, size = 0x4, offset = 0x4, fixed_abs, tag = 'smem constant byte address 0x4 - core index']
  #allocation1 [shape = 'u32[144,128]{1,0:T(1,128)}', space=vmem, size = 0x12000, scoped, tag = 'internal scratch']
  #allocation2 [shape = 'f32[1,1]{1,0:T(1,128)S(1)}', space=vmem, size = 0x200, scoped, tag = 'scoped memory for cnn_d_forward.7']
  %s0 = inlined_call_operand.vmem [shape: bf16[2,24,256], index: 0, kind: input, shape index: {}]
  %s1 = inlined_call_operand.vmem [shape: f32[9,256], index: 1, kind: input, shape index: {}]
  %s2 = inlined_call_operand.<no memory space> [shape: f32[1,1], index: 2, kind: input, shape index: {}]
  %s3 = inlined_call_operand.vmem [shape: f32[2,8,64], index: 3, kind: input, shape index: {}]
  %s4 = inlined_call_operand.vmem [shape: f32[2,8,1], index: 4, kind: output, shape index: {}]
  %s5 = sld [smem:[#allocation0]]
  $region49: #{cnn_d_forward.7} parent=0
    _
  %s7 = ssub.s32 1, %s5
  %s8 = scalar_select 0, %s7, %s5
  %v9 = vstv %s2
  %10 = vst [vmem:[#allocation2] sm:$0x1] %v9
  loop: start=0, step=1, limit=4
  $region2: #{cnn_d_forward.7} parent=0 // loop_pre_header
    _
  $region3: #{cnn_d_forward.7} parent=0 // loop_header
    %s12 = sphi 0, %s16
    %p13 = scmp.ge.s32.totalorder %s12, 4
    %s22 = sphi 0, %s24
    %s25 = sphi 0, %s22
    %s26 = sphi 0, %s25
    %s42 = sphi 0, %s26
    %s46 = sphi 0, %s46
    %s48 = sphi 0, %s46
    %s49 = sphi 0, %s48
    %s63 = sphi 0, %s49
    %s67 = sphi 0, %s67
    %s69 = sphi 0, %s67
    %s70 = sphi 0, %s69
    %s84 = sphi 0, %s70
    %s90 = sphi 0, %s92
    %s93 = sphi 0, %s90
    %s94 = sphi 0, %s93
    %s110 = sphi 0, %s94
    %s116 = sphi 0, %s118
    %s119 = sphi 0, %s116
    %s120 = sphi 0, %s119
    %s136 = sphi 0, %s120
  $region4: #{cnn_d_forward.7} parent=0 // loop_header_branch
    %15 = sbr.rel (%p13) target = $region8
  $region5: #{cnn_d_forward.7} parent=0 // loop_body
    %s17 = ssub.s32 %s12, 1
    %s18 = ssub.s32 %s12, 2
    %s19 = sadd.s32 %s12, 1
    %s20 = ssub.s32 %s12, %s19
    %p21 = scmp.eq.s32.totalorder %s20, 0
    %s23 = sadd.s32 %s22, 1
    %s24 = scalar_select %p21, %s22, %s23
    %p27 = pneg %p21
    %p28 = scmp.eq.s32.totalorder %s12, 1
    %p29 = por %p27, %p28
    %p30 = scmp.ne.s32.totalorder %s22, %s25
    %p31 = scmp.eq.s32.totalorder %s12, 0
    %p32 = por %p30, %p31
    %p33 = scmp.ne.s32.totalorder %s22, %s25
    %p34 = scmp.eq.s32.totalorder %s17, 1
    %p35 = por %p33, %p34
    %p36 = scmp.ne.s32.totalorder %s25, %s26
    %p37 = scmp.eq.s32.totalorder %s17, 0
    %p38 = por %p36, %p37
    %p39 = scmp.ne.s32.totalorder %s25, %s26
    %p40 = scmp.eq.s32.totalorder %s18, 1
    %p41 = por %p39, %p40
    %p43 = scmp.ne.s32.totalorder %s26, %s42
    %p44 = scmp.eq.s32.totalorder %s18, 0
    %p45 = por %p43, %p44
    %s47 = sadd.s32 %s46, 1
    %p50 = scmp.eq.s32.totalorder %s12, 1
    %p51 = scmp.ne.s32.totalorder %s46, %s48
    %p52 = scmp.eq.s32.totalorder %s12, 0
    %p53 = por %p51, %p52
    %p54 = scmp.ne.s32.totalorder %s46, %s48
    %p55 = scmp.eq.s32.totalorder %s17, 1
    %p56 = por %p54, %p55
    %p57 = scmp.ne.s32.totalorder %s48, %s49
    %p58 = scmp.eq.s32.totalorder %s17, 0
    %p59 = por %p57, %p58
    %p60 = scmp.ne.s32.totalorder %s48, %s49
    %p61 = scmp.eq.s32.totalorder %s18, 1
    %p62 = por %p60, %p61
    %p64 = scmp.ne.s32.totalorder %s49, %s63
    %p65 = scmp.eq.s32.totalorder %s18, 0
    %p66 = por %p64, %p65
    %s68 = sadd.s32 %s67, 1
    %p71 = scmp.eq.s32.totalorder %s12, 1
    %p72 = scmp.ne.s32.totalorder %s67, %s69
    %p73 = scmp.eq.s32.totalorder %s12, 0
    %p74 = por %p72, %p73
    %p75 = scmp.ne.s32.totalorder %s67, %s69
    %p76 = scmp.eq.s32.totalorder %s17, 1
    %p77 = por %p75, %p76
    %p78 = scmp.ne.s32.totalorder %s69, %s70
    %p79 = scmp.eq.s32.totalorder %s17, 0
    %p80 = por %p78, %p79
    %p81 = scmp.ne.s32.totalorder %s69, %s70
    %p82 = scmp.eq.s32.totalorder %s18, 1
    %p83 = por %p81, %p82
    %p85 = scmp.ne.s32.totalorder %s70, %s84
    %p86 = scmp.eq.s32.totalorder %s18, 0
    %p87 = por %p85, %p86
    %s88 = ssub.s32 %s12, %s19
    %p89 = scmp.eq.s32.totalorder %s88, 0
    %s91 = sadd.s32 %s90, 1
    %s92 = scalar_select %p89, %s90, %s91
    %p95 = pneg %p89
    %p96 = scmp.eq.s32.totalorder %s12, 1
    %p97 = por %p95, %p96
    %p98 = scmp.ne.s32.totalorder %s90, %s93
    %p99 = scmp.eq.s32.totalorder %s12, 0
    %p100 = por %p98, %p99
    %p101 = scmp.ne.s32.totalorder %s90, %s93
    %p102 = scmp.eq.s32.totalorder %s17, 1
    %p103 = por %p101, %p102
    %p104 = scmp.ne.s32.totalorder %s93, %s94
    %p105 = scmp.eq.s32.totalorder %s17, 0
    %p106 = por %p104, %p105
    %p107 = scmp.ne.s32.totalorder %s93, %s94
    %p108 = scmp.eq.s32.totalorder %s18, 1
    %p109 = por %p107, %p108
    %p111 = scmp.ne.s32.totalorder %s94, %s110
    %p112 = scmp.eq.s32.totalorder %s18, 0
    %p113 = por %p111, %p112
    %s114 = ssub.s32 %s12, %s19
    %p115 = scmp.eq.s32.totalorder %s114, 0
    %s117 = sadd.s32 %s116, 1
    %s118 = scalar_select %p115, %s116, %s117
    %p121 = pneg %p115
    %p122 = scmp.eq.s32.totalorder %s12, 1
    %p123 = por %p121, %p122
    %p124 = scmp.ne.s32.totalorder %s116, %s119
    %p125 = scmp.eq.s32.totalorder %s12, 0
    %p126 = por %p124, %p125
    %p127 = scmp.ne.s32.totalorder %s116, %s119
    %p128 = scmp.eq.s32.totalorder %s17, 1
    %p129 = por %p127, %p128
    %p130 = scmp.ne.s32.totalorder %s119, %s120
    %p131 = scmp.eq.s32.totalorder %s17, 0
    %p132 = por %p130, %p131
    %p133 = scmp.ne.s32.totalorder %s119, %s120
    %p134 = scmp.eq.s32.totalorder %s18, 1
    %p135 = por %p133, %p134
    %p137 = scmp.ne.s32.totalorder %s120, %s136
    %p138 = scmp.eq.s32.totalorder %s18, 0
    %p139 = por %p137, %p138
    %p140 = scmp.le.s32.totalorder 1, %s12
    %p141 = scmp.lt.s32.totalorder %s12, 3
    %p142 = pnand %p140, %p141
    %p143 = pneg %p142
    // Predicated region
    $region9: #{cnn_d_forward.7} parent=5 // pred_check
      _
    $region10: #{cnn_d_forward.7} parent=5 // pred_check_branch
      %145 = sbr.rel (%p142) target = $region12
    $region11: #{cnn_d_forward.7} parent=5 // pred_region
      %s146 = ssub.s32 %s12, 1
      // Predicated region
      $region13: #{cnn_d_forward.7} parent=11 // pred_check
        %p147 = pneg %p59
      $region14: #{cnn_d_forward.7} parent=11 // pred_check_branch
        %149 = sbr.rel (%p147) target = $region16
      $region15: #{cnn_d_forward.7} parent=11 // pred_region
        _
      $region16: #{cnn_d_forward.7} parent=11 // pred_fallthru
        _
      // Predicated region
      $region17: #{cnn_d_forward.7} parent=11 // pred_check
        %p150 = pneg %p80
      $region18: #{cnn_d_forward.7} parent=11 // pred_check_branch
        %152 = sbr.rel (%p150) target = $region20
      $region19: #{cnn_d_forward.7} parent=11 // pred_region
        _
      $region20: #{cnn_d_forward.7} parent=11 // pred_fallthru
        _
    $region12: #{cnn_d_forward.7} parent=5 // pred_fallthru
      _
    %p153 = scmp.lt.s32.totalorder %s12, 2
    // Predicated region
    $region21: #{cnn_d_forward.7} parent=5 // pred_check
      %p154 = pneg %p153
    $region22: #{cnn_d_forward.7} parent=5 // pred_check_branch
      %156 = sbr.rel (%p154) target = $region24
    $region23: #{cnn_d_forward.7} parent=5 // pred_region
      // Predicated region
      $region25: #{cnn_d_forward.7} parent=23 // pred_check
        %p157 = pneg %p32
      $region26: #{cnn_d_forward.7} parent=23 // pred_check_branch
        %159 = sbr.rel (%p157) target = $region28
      $region27: #{cnn_d_forward.7} parent=23 // pred_region
        %p160 = scmp.lt.s32.totalorder %s12, 1
        %s161 = scalar_select %p160, %s12, 1
        %s162 = smul.addr %s161, 6
        %s163 = smul.addr %s162, 4
        %s164 = scalar_lea.vmem %s0, %s163
      $region28: #{cnn_d_forward.7} parent=23 // pred_fallthru
        _
      // Predicated region
      $region29: #{cnn_d_forward.7} parent=23 // pred_check
        %p165 = pneg %p100
      $region30: #{cnn_d_forward.7} parent=23 // pred_check_branch
        %167 = sbr.rel (%p165) target = $region32
      $region31: #{cnn_d_forward.7} parent=23 // pred_region
        %p168 = scmp.lt.s32.totalorder %s12, 1
        %s169 = scalar_select %p168, %s12, 1
        %s170 = smul.addr %s169, 8
        %s171 = scalar_lea.vmem %s3, %s170
      $region32: #{cnn_d_forward.7} parent=23 // pred_fallthru
        _
    $region24: #{cnn_d_forward.7} parent=5 // pred_fallthru
      _
    %p172 = scmp.le.s32.totalorder 1, %s12
    %p173 = scmp.lt.s32.totalorder %s12, 3
    %p174 = pnand %p172, %p173
    %p175 = pneg %p174
    // Predicated region
    $region33: #{cnn_d_forward.7} parent=5 // pred_check
      _
    $region34: #{cnn_d_forward.7} parent=5 // pred_check_branch
      %177 = sbr.rel (%p174) target = $region36
    $region35: #{cnn_d_forward.7} parent=5 // pred_region
      %s178 = ssub.s32 %s12, 1
      %p179 = scmp.lt.s32.totalorder %s17, 1
      %s180 = scalar_select %p179, %s17, 1
      %s181 = smul.addr %s180, 6
      %s182 = smul.addr %s181, 4
      %s183 = scalar_lea.vmem %s0, %s182
      %p184 = pneg %p38
      %p185 = pneg %p35
      %p186 = pneg %p59
      %p187 = pneg %p56
      %p188 = pneg %p80
      %p189 = pneg %p77
      %p190 = scmp.lt.s32.totalorder %s17, 1
      %s191 = scalar_select %p190, %s17, 1
      %s192 = smul.addr %s191, 8
      %s193 = scalar_lea.vmem %s3, %s192
      %p194 = pneg %p106
      %p195 = pneg %p103
      %p196 = pneg %p132
      %p197 = pneg %p129
      %p198 = scmp.lt.s32.totalorder %s17, 1
      %s199 = scalar_select %p198, %s17, 1
      %s200 = smul.addr %s199, 8
      %s201 = scalar_lea.vmem %s4, %s200
      %p202 = scmp.lt.s32.totalorder %s17, 1
      %s203 = scalar_select %p202, %s17, 1
      %s204 = smul.addr %s203, 6
      %s205 = smul.addr %s204, 4
      %s206 = scalar_lea.vmem %s0, %s205
      %p207 = scmp.lt.s32.totalorder %s17, 1
      %s208 = scalar_select %p207, %s17, 1
      %s209 = smul.addr %s208, 8
      %s210 = scalar_lea.vmem %s3, %s209
      %p211 = scmp.lt.s32.totalorder %s17, 1
      %s212 = scalar_select %p211, %s17, 1
      %s213 = smul.addr %s212, 8
      %s214 = scalar_lea.vmem %s4, %s213
      %v215 = vld [vmem:[%s206] sm:$0xff]
      %v216 = vunpack.c.l.bf16 %v215
      %v217 = vunpack.c.h.bf16 %v215
      %v218 = vld [vmem:[%s1] ss:$8 sm:$0x3]
      %v220 = vlaneseq
      %v221 = vshrl.u32 %v220, 7
      %v222 = vsub.s32 0, %v221
      %v223 = vrot.slane %v218, %v222
      %v224 = vlaneseq
      %v225 = vshrl.u32 %v224, 7
      %v226 = vsub.s32 1, %v225
      %v227 = vrot.slane %v218, %v226
      %v230 = vmul.f32 %v216, %v223
      %v231 = vmul.f32 %v217, %v227
      %v232 = vadd.f32 %v230, %v231
      %233 = vadd.xlane.f32.xlu0 %v232
      %v234 = vpop.xlane.xlu0 %233
      %v235 = vadd.f32 %v234, 0.0
      %v236 = vld [vmem:[%s206 + $0x8] sm:$0x11]
      %v237 = vunpack.c.l.bf16 %v236
      %v238 = vunpack.c.h.bf16 %v236
      %s239 = scalar_lea.vmem %s1, 1
      %v240 = vld [vmem:[%s239] ss:$8 sm:$0x3]
      %v242 = vlaneseq
      %v243 = vshrl.u32 %v242, 7
      %v244 = vsub.s32 0, %v243
      %v245 = vrot.slane %v240, %v244
      %v246 = vlaneseq
      %v247 = vshrl.u32 %v246, 7
      %v248 = vsub.s32 1, %v247
      %v249 = vrot.slane %v240, %v248
      %v252 = vmul.f32 %v216, %v245
      %v253 = vmul.f32 %v217, %v249
      %v254 = vmul.f32 %v237, %v245
      %v255 = vmul.f32 %v238, %v249
      %vm256 = vcmask 1047553
      %v257 = vsel %vm256, %v252, 0.0
      %v258 = vsel %vm256, %v253, 0.0
      %v259 = vadd.f32 %v257, %v258
      %260 = vadd.xlane.f32.xlu0 %v259
      %v261 = vpop.xlane.xlu0 %260
      %vm262 = vcmask 1040384
      %v263 = vsel %vm262, %v254, 0.0
      %v264 = vsel %vm262, %v255, 0.0
      %v265 = vadd.f32 %v263, %v264
      %266 = vadd.xlane.f32.xlu0 %v265
      %v267 = vpop.xlane.xlu0 %266
      %vm270 = vcmask 1046528
      %v271 = vrot.slane %v261, 1
      %v272 = vrot.slane %v267, 1
      %v273 = vsel %vm270, %v271, %v272
      %v275 = vadd.f32 %v235, %v273
      %v276 = vld [vmem:[%s206] sm:$0xee]
      %v277 = vunpack.c.l.bf16 %v276
      %v278 = vunpack.c.h.bf16 %v276
      %s279 = scalar_lea.vmem %s1, 2
      %v280 = vld [vmem:[%s279] ss:$8 sm:$0x3]
      %v282 = vlaneseq
      %v283 = vshrl.u32 %v282, 7
      %v284 = vsub.s32 0, %v283
      %v285 = vrot.slane %v280, %v284
      %v286 = vlaneseq
      %v287 = vshrl.u32 %v286, 7
      %v288 = vsub.s32 1, %v287
      %v289 = vrot.slane %v280, %v288
      %v292 = vmul.f32 %v277, %v285
      %v293 = vmul.f32 %v278, %v289
      %v294 = vmul.f32 %v237, %v285
      %v295 = vmul.f32 %v238, %v289
      %vm296 = vcmask 1047554
      %v297 = vsel %vm296, %v292, 0.0
      %v298 = vsel %vm296, %v293, 0.0
      %v299 = vadd.f32 %v297, %v298
      %300 = vadd.xlane.f32.xlu0 %v299
      %v301 = vpop.xlane.xlu0 %300
      %vm302 = vcmask 1041408
      %v303 = vsel %vm302, %v294, 0.0
      %v304 = vsel %vm302, %v295, 0.0
      %v305 = vadd.f32 %v303, %v304
      %306 = vadd.xlane.f32.xlu0 %v305
      %v307 = vpop.xlane.xlu0 %306
      %vm310 = vcmask 1045504
      %v311 = vrot.slane %v301, 2
      %v312 = vrot.slane %v307, 2
      %v313 = vsel %vm310, %v311, %v312
      %v315 = vadd.f32 %v275, %v313
      %v316 = vld [vmem:[%s206] sm:$0xcc]
      %v317 = vld [vmem:[%s206 + $0x8] sm:$0x33]
      %v318 = vunpack.c.l.bf16 %v316
      %v319 = vunpack.c.h.bf16 %v316
      %v320 = vunpack.c.l.bf16 %v317
      %v321 = vunpack.c.h.bf16 %v317
      %s322 = scalar_lea.vmem %s1, 3
      %v323 = vld [vmem:[%s322] ss:$8 sm:$0x3]
      %v325 = vlaneseq
      %v326 = vshrl.u32 %v325, 7
      %v327 = vsub.s32 0, %v326
      %v328 = vrot.slane %v323, %v327
      %v329 = vlaneseq
      %v330 = vshrl.u32 %v329, 7
      %v331 = vsub.s32 1, %v330
      %v332 = vrot.slane %v323, %v331
      %v335 = vmul.f32 %v318, %v328
      %v336 = vmul.f32 %v319, %v332
      %v337 = vmul.f32 %v320, %v328
      %v338 = vmul.f32 %v321, %v332
      %vm339 = vcmask 1047556
      %v340 = vsel %vm339, %v335, 0.0
      %v341 = vsel %vm339, %v336, 0.0
      %v342 = vadd.f32 %v340, %v341
      %343 = vadd.xlane.f32.xlu0 %v342
      %v344 = vpop.xlane.xlu0 %343
      %vm345 = vcmask 1043456
      %v346 = vsel %vm345, %v337, 0.0
      %v347 = vsel %vm345, %v338, 0.0
      %v348 = vadd.f32 %v346, %v347
      %349 = vadd.xlane.f32.xlu0 %v348
      %v350 = vpop.xlane.xlu0 %349
      %v353 = vrot.slane %v344, 4
      %v354 = vrot.slane %v350, 4
      %v355 = vsel %vm345, %v353, %v354
      %v357 = vadd.f32 %v315, %v355
      %v358 = vld [vmem:[%s206 + $0x8] sm:$0x77]
      %v359 = vunpack.c.l.bf16 %v358
      %v360 = vunpack.c.h.bf16 %v358
      %s361 = scalar_lea.vmem %s1, 4
      %v362 = vld [vmem:[%s361] ss:$8 sm:$0x3]
      %v364 = vlaneseq
      %v365 = vshrl.u32 %v364, 7
      %v366 = vsub.s32 0, %v365
      %v367 = vrot.slane %v362, %v366
      %v368 = vlaneseq
      %v369 = vshrl.u32 %v368, 7
      %v370 = vsub.s32 1, %v369
      %v371 = vrot.slane %v362, %v370
      %v374 = vmul.f32 %v318, %v367
      %v375 = vmul.f32 %v319, %v371
      %v376 = vmul.f32 %v359, %v367
      %v377 = vmul.f32 %v360, %v371
      %vm378 = vcmask 1047557
      %v379 = vsel %vm378, %v374, 0.0
      %v380 = vsel %vm378, %v375, 0.0
      %v381 = vadd.f32 %v379, %v380
      %382 = vadd.xlane.f32.xlu0 %v381
      %v383 = vpop.xlane.xlu0 %382
      %vm384 = vcmask 1044480
      %v385 = vsel %vm384, %v376, 0.0
      %v386 = vsel %vm384, %v377, 0.0
      %v387 = vadd.f32 %v385, %v386
      %388 = vadd.xlane.f32.xlu0 %v387
      %v389 = vpop.xlane.xlu0 %388
      %vm392 = vcmask 1042432
      %v393 = vrot.slane %v383, 5
      %v394 = vrot.slane %v389, 5
      %v395 = vsel %vm392, %v393, %v394
      %v397 = vadd.f32 %v357, %v395
      %v398 = vld [vmem:[%s206] sm:$0x88]
      %v399 = vunpack.c.l.bf16 %v398
      %v400 = vunpack.c.h.bf16 %v398
      %s401 = scalar_lea.vmem %s1, 5
      %v402 = vld [vmem:[%s401] ss:$8 sm:$0x3]
      %v404 = vlaneseq
      %v405 = vshrl.u32 %v404, 7
      %v406 = vsub.s32 0, %v405
      %v407 = vrot.slane %v402, %v406
      %v408 = vlaneseq
      %v409 = vshrl.u32 %v408, 7
      %v410 = vsub.s32 1, %v409
      %v411 = vrot.slane %v402, %v410
      %v414 = vmul.f32 %v399, %v407
      %v415 = vmul.f32 %v400, %v411
      %v416 = vmul.f32 %v359, %v407
      %v417 = vmul.f32 %v360, %v411
      %vm418 = vcmask 1047558
      %v419 = vsel %vm418, %v414, 0.0
      %v420 = vsel %vm418, %v415, 0.0
      %v421 = vadd.f32 %v419, %v420
      %422 = vadd.xlane.f32.xlu0 %v421
      %v423 = vpop.xlane.xlu0 %422
      %v424 = vsel %vm310, %v416, 0.0
      %v425 = vsel %vm310, %v417, 0.0
      %v426 = vadd.f32 %v424, %v425
      %427 = vadd.xlane.f32.xlu0 %v426
      %v428 = vpop.xlane.xlu0 %427
      %v431 = vrot.slane %v423, 6
      %v432 = vrot.slane %v428, 6
      %v433 = vsel %vm302, %v431, %v432
      %v435 = vadd.f32 %v397, %v433
      %v436 = vld [vmem:[%s206 + $0x8] sm:$0xff]
      %v437 = vunpack.c.l.bf16 %v436
      %v438 = vunpack.c.h.bf16 %v436
      %s439 = scalar_lea.vmem %s1, 6
      %v440 = vld [vmem:[%s439] ss:$8 sm:$0x3]
      %v442 = vlaneseq
      %v443 = vshrl.u32 %v442, 7
      %v444 = vsub.s32 0, %v443
      %v445 = vrot.slane %v440, %v444
      %v446 = vlaneseq
      %v447 = vshrl.u32 %v446, 7
      %v448 = vsub.s32 1, %v447
      %v449 = vrot.slane %v440, %v448
      %v452 = vmul.f32 %v437, %v445
      %v453 = vmul.f32 %v438, %v449
      %v454 = vadd.f32 %v452, %v453
      %455 = vadd.xlane.f32.xlu0 %v454
      %v456 = vpop.xlane.xlu0 %455
      %v457 = vadd.f32 %v435, %v456
      %v458 = vld [vmem:[%s206 + $0x8] sm:$0xff]
      %v459 = vld [vmem:[%s206 + $0x10] sm:$0x11]
      %v460 = vunpack.c.l.bf16 %v458
      %v461 = vunpack.c.h.bf16 %v458
      %v462 = vunpack.c.l.bf16 %v459
      %v463 = vunpack.c.h.bf16 %v459
      %s464 = scalar_lea.vmem %s1, 7
      %v465 = vld [vmem:[%s464] ss:$8 sm:$0x3]
      %v467 = vlaneseq
      %v468 = vshrl.u32 %v467, 7
      %v469 = vsub.s32 0, %v468
      %v470 = vrot.slane %v465, %v469
      %v471 = vlaneseq
      %v472 = vshrl.u32 %v471, 7
      %v473 = vsub.s32 1, %v472
      %v474 = vrot.slane %v465, %v473
      %v477 = vmul.f32 %v460, %v470
      %v478 = vmul.f32 %v461, %v474
      %v479 = vmul.f32 %v462, %v470
      %v480 = vmul.f32 %v463, %v474
      %v481 = vsel %vm256, %v477, 0.0
      %v482 = vsel %vm256, %v478, 0.0
      %v483 = vadd.f32 %v481, %v482
      %484 = vadd.xlane.f32.xlu0 %v483
      %v485 = vpop.xlane.xlu0 %484
      %v486 = vsel %vm262, %v479, 0.0
      %v487 = vsel %vm262, %v480, 0.0
      %v488 = vadd.f32 %v486, %v487
      %489 = vadd.xlane.f32.xlu0 %v488
      %v490 = vpop.xlane.xlu0 %489
      %v493 = vrot.slane %v485, 1
      %v494 = vrot.slane %v490, 1
      %v495 = vsel %vm270, %v493, %v494
      %v497 = vadd.f32 %v457, %v495
      %v498 = vld [vmem:[%s206 + $0x8] sm:$0xee]
      %v499 = vunpack.c.l.bf16 %v498
      %v500 = vunpack.c.h.bf16 %v498
      %s501 = scalar_lea.vmem %s1, 16
      %v502 = vld [vmem:[%s501] ss:$8 sm:$0x3]
      %v504 = vlaneseq
      %v505 = vshrl.u32 %v504, 7
      %v506 = vsub.s32 0, %v505
      %v507 = vrot.slane %v502, %v506
      %v508 = vlaneseq
      %v509 = vshrl.u32 %v508, 7
      %v510 = vsub.s32 1, %v509
      %v511 = vrot.slane %v502, %v510
      %v514 = vmul.f32 %v499, %v507
      %v515 = vmul.f32 %v500, %v511
      %v516 = vmul.f32 %v462, %v507
      %v517 = vmul.f32 %v463, %v511
      %v518 = vsel %vm296, %v514, 0.0
      %v519 = vsel %vm296, %v515, 0.0
      %v520 = vadd.f32 %v518, %v519
      %521 = vadd.xlane.f32.xlu0 %v520
      %v522 = vpop.xlane.xlu0 %521
      %v523 = vsel %vm302, %v516, 0.0
      %v524 = vsel %vm302, %v517, 0.0
      %v525 = vadd.f32 %v523, %v524
      %526 = vadd.xlane.f32.xlu0 %v525
      %v527 = vpop.xlane.xlu0 %526
      %v530 = vrot.slane %v522, 2
      %v531 = vrot.slane %v527, 2
      %v532 = vsel %vm310, %v530, %v531
      %v534 = vadd.f32 %v497, %v532
      %v535 = vld [vmem:[#allocation2] sm:$0x1]
      %v537 = vlaneseq
      %v538 = vshrl.u32 %v537, 7
      %v539 = vsub.s32 0, %v538
      %v540 = vrot.slane %v535, %v539
      %v542 = vadd.f32 %v534, %v540
      %vm543 = vcmp.gt.f32.partialorder %v542, 0.0
      %v544 = vmul.f32 %v542, 0.01
      %v545 = vsel %vm543, %v542, %v544
      %v546 = vld [vmem:[%s210] sm:$0xff]
      %vm547 = vcmask 523264
      %v548 = vsel %vm547, %v546, 0.0
      %549 = vadd.xlane.f32.xlu0 %v548
      %v550 = vpop.xlane.xlu0 %549
      %v551 = vrcp.pop 64.0
      %v552 = vmul.f32 %v550, %v551
      %v553 = vmul.f32 %v552, %v545
      %v554 = vxor.u32 %v553, 2147483648
      %v555 = vmul.f32 %v554, 1.442695
      %v556 = vpow.pop %v555
      %v557 = vadd.f32 %v556, 1.0
      %v558 = vrcp.pop %v557
      %v559 = vmul.f32 1.0, %v558
      %vm560 = vcmask 7168
      %561 = vst.msk [vmem:[%s214] sm:$0xff] %vm560, %v559
      %p562 = scmp.lt.s32.totalorder %s17, 1
      %s563 = scalar_select %p562, %s17, 1
      %s564 = smul.addr %s563, 8
      %s565 = scalar_lea.vmem %s4, %s564
      // Predicated region
      $region37: #{cnn_d_forward.7} parent=35 // pred_check
        %p566 = pneg %p129
      $region38: #{cnn_d_forward.7} parent=35 // pred_check_branch
        %568 = sbr.rel (%p566) target = $region40
      $region39: #{cnn_d_forward.7} parent=35 // pred_region
        _
      $region40: #{cnn_d_forward.7} parent=35 // pred_fallthru
        _
    $region36: #{cnn_d_forward.7} parent=5 // pred_fallthru
      _
    %p569 = scmp.le.s32.totalorder 2, %s12
    // Predicated region
    $region41: #{cnn_d_forward.7} parent=5 // pred_check
      %p570 = pneg %p569
    $region42: #{cnn_d_forward.7} parent=5 // pred_check_branch
      %572 = sbr.rel (%p570) target = $region44
    $region43: #{cnn_d_forward.7} parent=5 // pred_region
      %s573 = ssub.s32 %s12, 2
      // Predicated region
      $region45: #{cnn_d_forward.7} parent=43 // pred_check
        %p574 = pneg %p135
      $region46: #{cnn_d_forward.7} parent=43 // pred_check_branch
        %576 = sbr.rel (%p574) target = $region48
      $region47: #{cnn_d_forward.7} parent=43 // pred_region
        %p577 = scmp.lt.s32.totalorder %s18, 1
        %s578 = scalar_select %p577, %s18, 1
        %s579 = smul.addr %s578, 8
        %s580 = scalar_lea.vmem %s4, %s579
      $region48: #{cnn_d_forward.7} parent=43 // pred_fallthru
        _
    $region44: #{cnn_d_forward.7} parent=5 // pred_fallthru
      _
  $region6: #{cnn_d_forward.7} parent=0 // loop_footer
    %s16 = sadd.s32 1, %s12
  $region7: #{cnn_d_forward.7} parent=0 // loop_footer_branch
    %11 = sbr.rel target = $region3
  $region8: #{cnn_d_forward.7} parent=0 // loop_exit
    _

</llo_original>
